<compile_context>
chip_gen: v7x
topology: tpu7x:2x2x1
jax: 0.10.0
libtpu: 0.0.40
codegen_flags: <defaults>
</compile_context>

<pallas_src>
import functools
import math

import jax
import jax.numpy as jnp
from jax import lax
from jax.experimental import pallas as pl
from jax.experimental.pallas import tpu as pltpu


# ---------------------------------------------------------------------------
# Kernel: one grid step == (batch b, query tile i, key tile j), all heads.
# ---------------------------------------------------------------------------
def _synapse_attention_kernel(qx_ref, kx_ref, wq_ref, wkv_ref, wo_ref, bo_ref,
                              o_ref, q_sc, m_sc, l_sc, acc_sc, *,
                              heads, dim_head, mxu_dtype):
    inner = heads * dim_head
    j = pl.program_id(2)
    last_j = pl.num_programs(2) - 1

    def mm(x, w_ref):
        # x: (m, c) value, w_ref: (c, n) ref in "NN" layout -> (m, n) f32 (MXU).
        return lax.dot_general(x, w_ref[...],
                               dimension_numbers=(((1,), (0,)), ((), ())),
                               preferred_element_type=jnp.float32)

    # ---- first key tile of this (b, i): q projection + running-stat init ----
    @pl.when(j == 0)
    def _init():
        # softmax scale is pre-folded into wq in the wrapper.
        q_sc[...] = mm(qx_ref[...], wq_ref).astype(q_sc.dtype)      # (tq, inner)
        m_sc[...] = jnp.full(m_sc.shape, -jnp.inf, m_sc.dtype)
        l_sc[...] = jnp.zeros(l_sc.shape, l_sc.dtype)
        acc_sc[...] = jnp.zeros(acc_sc.shape, acc_sc.dtype)

    # ---- K/V projection for the current key tile ----
    kv = mm(kx_ref[...], wkv_ref).astype(mxu_dtype)                  # (tk, 2*inner)

    # ---- per-head online-softmax attention (flash over the Nk grid axis) ----
    for h in range(heads):
        lo, hi = h * dim_head, (h + 1) * dim_head
        qh = q_sc[:, lo:hi]                                          # (tq, Dh)
        kh = kv[:, lo:hi]                                            # (tk, Dh)
        vh = kv[:, inner + lo:inner + hi]                            # (tk, Dh)

        # scores: contract the Dh axes directly (no K transpose).
        s = lax.dot_general(qh, kh,
                            dimension_numbers=(((1,), (1,)), ((), ())),
                            preferred_element_type=jnp.float32)      # (tq, tk)

        m_prev = m_sc[h]                                             # (tq, 1)
        m_new = jnp.maximum(m_prev, jnp.max(s, axis=-1, keepdims=True))
        alpha = jnp.exp(m_prev - m_new)                              # (tq, 1)
        p = jnp.exp(s - m_new)                                       # (tq, tk) f32

        l_sc[h] = alpha * l_sc[h] + jnp.sum(p, axis=-1, keepdims=True)
        pv = lax.dot_general(p.astype(mxu_dtype), vh,
                             dimension_numbers=(((1,), (0,)), ((), ())),
                             preferred_element_type=jnp.float32)     # (tq, Dh)
        acc_sc[:, lo:hi] = alpha * acc_sc[:, lo:hi] + pv
        m_sc[h] = m_new

    # ---- last key tile: normalize, out-projection + bias, lane-dense store ----
    @pl.when(j == last_j)
    def _finalize():
        for h in range(heads):
            lo, hi = h * dim_head, (h + 1) * dim_head
            acc_sc[:, lo:hi] = acc_sc[:, lo:hi] / l_sc[h]            # exact divide
        y = mm(acc_sc[...].astype(mxu_dtype), wo_ref) + bo_ref[...]  # (tq, dim_pad)
        o_ref[...] = y.astype(o_ref.dtype)


# ---------------------------------------------------------------------------
# Wrapper helpers
# ---------------------------------------------------------------------------
def _pick_tile(n, preferred):
    """Largest tile <= preferred that divides n with a sublane-friendly size."""
    if n <= preferred:
        return n
    for cand in range(preferred - preferred % 8, 7, -8):
        if n % cand == 0:
            return cand
    return n


def _vmem_limit_bytes():
    # Generation-aware ceiling: ~100 MiB on 128 MiB parts (v5e/v6e), ~56 MiB on
    # v7x (64 MiB physical). Falls back safely off-TPU / in interpret mode.
    try:
        cap = int(pltpu.get_tpu_info().vmem_capacity_bytes)
    except Exception:
        cap = 64 * 1024 * 1024
    if cap < 32 * 1024 * 1024:
        cap = 64 * 1024 * 1024
    return int(min(cap - 8 * 1024 * 1024, 100 * 1024 * 1024))


# ---------------------------------------------------------------------------
# Wrapper
# ---------------------------------------------------------------------------
def synapse_attention_forward(qx, kx, params, heads, dim_head, weights=None,
                              mxu_dtype=None, q_tile=256, k_tile=512):
    """qx: (B, Nq, dim), kx: (B, Nk, dim) -> (B, Nq, dim).

    `weights` is accepted for signature parity with the PyTorch module; the
    reference applies a plain softmax on every branch, so it never changes the
    math. `mxu_dtype=jnp.bfloat16` enables the fast MXU path on v5e/v6e/v7x
    (softmax / accumulation stay f32 inside the kernel).
    """
    del weights
    B, Nq, dim = qx.shape
    Nk = kx.shape[1]
    inner = heads * dim_head
    scale = dim_head ** (-0.5)
    if mxu_dtype is None:
        mxu_dtype = qx.dtype
    mxu_dtype = jnp.dtype(mxu_dtype)

    # One-time wrapper-side weight prep (runs once, outside the kernel):
    #  * transpose to "NN" layout (contract rhs dim 0 -> no per-step transposes),
    #  * fold the softmax scale into wq,
    #  * cast to mxu_dtype once (halves weight DMA/VMEM on the bf16 path),
    #  * pad the out-projection to a lane-dense multiple of 128.
    wq_nn = (jnp.asarray(params["wq"]).T * scale).astype(mxu_dtype)   # (dim, inner)
    wkv_nn = jnp.asarray(params["wkv"]).T.astype(mxu_dtype)           # (dim, 2*inner)
    wo_nn = jnp.asarray(params["wo"]).T                               # (inner, dim)
    bo = jnp.asarray(params["bo"]).astype(jnp.float32)                # (dim,)

    dim_pad = max(dim, ((dim + 127) // 128) * 128)
    if dim_pad != dim:
        wo_nn = jnp.pad(wo_nn, ((0, 0), (0, dim_pad - dim)))
        bo = jnp.pad(bo, (0, dim_pad - dim))
    wo_nn = wo_nn.astype(mxu_dtype)
    bo2 = bo.reshape(1, dim_pad)

    qx_m = qx.astype(mxu_dtype)
    kx_m = kx.astype(mxu_dtype)

    tq = _pick_tile(Nq, q_tile)
    tk = _pick_tile(Nk, k_tile)
    nq_t = Nq // tq
    nk_t = Nk // tk

    kernel = functools.partial(_synapse_attention_kernel, heads=heads,
                               dim_head=dim_head, mxu_dtype=mxu_dtype)

    def nbytes(a):
        return int(a.size) * int(a.dtype.itemsize)

    flops = 2 * B * (Nq * dim * inner                     # q proj
                     + nq_t * Nk * dim * 2 * inner        # kv proj (per q-tile)
                     + 2 * heads * Nq * Nk * dim_head     # scores + PV
                     + Nq * inner * dim_pad)              # out proj
    cost = pl.CostEstimate(
        flops=int(flops),
        transcendentals=int(B * heads * Nq * Nk),
        bytes_accessed=int(nbytes(qx_m) + nbytes(kx_m) + nbytes(wq_nn)
                           + nbytes(wkv_nn) + nbytes(wo_nn) + nbytes(bo2)
                           + B * Nq * dim_pad * jnp.dtype(qx.dtype).itemsize))

    def _build(const_mode):
        in_specs = [
            pl.BlockSpec((None, tq, dim), lambda b, i, j: (b, i, 0)),      # qx tile
            pl.BlockSpec((None, tk, dim), lambda b, i, j: (b, j, 0)),      # kx tile
            pl.BlockSpec((dim, inner), lambda b, i, j: (0, 0),
                         pipeline_mode=const_mode),                        # wq  (resident)
            pl.BlockSpec((dim, 2 * inner), lambda b, i, j: (0, 0),
                         pipeline_mode=const_mode),                        # wkv (resident)
            pl.BlockSpec((inner, dim_pad), lambda b, i, j: (0, 0),
                         pipeline_mode=const_mode),                        # wo  (resident)
            pl.BlockSpec((1, dim_pad), lambda b, i, j: (0, 0),
                         pipeline_mode=const_mode),                        # bias
        ]
        return pl.pallas_call(
            kernel,
            out_shape=jax.ShapeDtypeStruct((B, Nq, dim_pad), qx.dtype),
            grid=(B, nq_t, nk_t),
            in_specs=in_specs,
            out_specs=pl.BlockSpec((None, tq, dim_pad), lambda b, i, j: (b, i, 0)),
            scratch_shapes=[
                pltpu.VMEM((tq, inner), mxu_dtype),        # q_sc (scaled q proj)
                pltpu.VMEM((heads, tq, 1), jnp.float32),   # m_sc (running max)
                pltpu.VMEM((heads, tq, 1), jnp.float32),   # l_sc (running sum)
                pltpu.VMEM((tq, inner), jnp.float32),      # acc_sc (running ctx)
            ],
            compiler_params=pltpu.CompilerParams(
                dimension_semantics=("parallel", "parallel", "arbitrary"),
                vmem_limit_bytes=_vmem_limit_bytes()),
            cost_estimate=cost,
        )

    args = (qx_m, kx_m, wq_nn, wkv_nn, wo_nn, bo2)
    try:
        # Single-buffer the resident weights/bias (constant index_map): halves
        # their VMEM footprint vs. default double buffering.
        out = _build(pl.Buffered(1))(*args)
    except Exception:
        # Fallback: default (double) buffering if Buffered(1) is unsupported.
        out = _build(None)(*args)

    if dim_pad != dim:
        out = out[..., :dim]
    return out


# ---------------------------------------------------------------------------
# Pure-JAX reference for validation.
# ---------------------------------------------------------------------------
def reference_forward(qx, kx, params, heads, dim_head):
    B, Nq, dim = qx.shape
    Nk = kx.shape[1]
    inner = heads * dim_head
    scale = dim_head ** (-0.5)
    q = qx @ params["wq"].T
    kv = kx @ params["wkv"].T
    k, v = kv[..., :inner], kv[..., inner:]
    q = q.reshape(B, Nq, heads, dim_head).transpose(0, 2, 1, 3)
    k = k.reshape(B, Nk, heads, dim_head).transpose(0, 2, 1, 3)
    v = v.reshape(B, Nk, heads, dim_head).transpose(0, 2, 1, 3)
    dots = jnp.einsum("bhqd,bhkd->bhqk", q, k) * scale
    attn = jax.nn.softmax(dots, axis=-1)
    out = jnp.einsum("bhqk,bhkd->bhqd", attn, v)
    out = out.transpose(0, 2, 1, 3).reshape(B, Nq, inner)
    return out @ params["wo"].T + params["bo"]


if __name__ == "__main__":
    # Small, module-consistent shapes.
    B, N, dim = 2, 8, 32
    heads, dim_head = 4, 16
    inner_dim = heads * dim_head  # 64

    key = jax.random.PRNGKey(0)
    k0, k1, k2, k3, k4, k5 = jax.random.split(key, 6)

    # PyTorch Linear convention: weight is (out, in).
    params = {
        "wq": jax.random.normal(k0, (inner_dim, dim), jnp.float32) * (1.0 / math.sqrt(dim)),
        "wkv": jax.random.normal(k1, (2 * inner_dim, dim), jnp.float32) * (1.0 / math.sqrt(dim)),
        "wo": jax.random.normal(k2, (dim, inner_dim), jnp.float32) * (1.0 / math.sqrt(inner_dim)),
        "bo": jax.random.normal(k3, (dim,), jnp.float32) * 0.01,
    }

    qx = jax.random.normal(k4, (B, N, dim), jnp.float32)
    kx = jax.random.normal(k5, (B, N, dim), jnp.float32)

    ref = reference_forward(qx, kx, params, heads, dim_head)

    # f32 MXU path (exact softmax divide -> tight tolerance).
    out = synapse_attention_forward(qx, kx, params, heads, dim_head, weights=None)
    out = jax.block_until_ready(out)
    assert out.shape == (B, N, dim)
    max_err = float(jnp.max(jnp.abs(out - ref)))
    assert jnp.allclose(out, ref, atol=1e-3, rtol=1e-3), (
        f"f32 path mismatch vs reference (max abs err {max_err})")

    # bf16 MXU fast path (valid on v5e/v6e/v7x); softmax stays f32 in-kernel.
    out_bf16 = synapse_attention_forward(qx, kx, params, heads, dim_head,
                                         mxu_dtype=jnp.bfloat16)
    out_bf16 = jax.block_until_ready(out_bf16)
    assert jnp.allclose(out_bf16, ref, atol=1e-1, rtol=1e-1), (
        "bf16 MXU path mismatch vs reference")

    print("KERNEL_OK")
</pallas_src>

<mosaic_0001>
module attributes {stable_mosaic.version = 11 : i64} {
  func.func @_synapse_attention_kernel(%arg0: i32, %arg1: i32, %arg2: i32, %arg3: memref<1x8x32xf32, #tpu.memory_space<vmem>>, %arg4: memref<1x8x32xf32, #tpu.memory_space<vmem>>, %arg5: memref<32x64xf32, #tpu.memory_space<vmem>>, %arg6: memref<32x128xf32, #tpu.memory_space<vmem>>, %arg7: memref<64x128xf32, #tpu.memory_space<vmem>>, %arg8: memref<1x128xf32, #tpu.memory_space<vmem>>, %arg9: memref<1x8x128xf32, #tpu.memory_space<vmem>>, %arg10: memref<8x64xf32, #tpu.memory_space<vmem>>, %arg11: memref<4x8x1xf32, #tpu.memory_space<vmem>>, %arg12: memref<4x8x1xf32, #tpu.memory_space<vmem>>, %arg13: memref<8x64xf32, #tpu.memory_space<vmem>>) attributes {dimension_semantics = [#tpu.dimension_semantics<parallel>, #tpu.dimension_semantics<parallel>, #tpu.dimension_semantics<arbitrary>], iteration_bounds = array<i64: 2, 1, 1>, scalar_prefetch = 0 : i64, scratch_operands = 4 : i64, tpu.core_type = #tpu.core_type<tc>, window_params = [{transform_indices = @transform_0, window_bounds = array<i64: 1, 8, 32>}, {transform_indices = @transform_1, window_bounds = array<i64: 1, 8, 32>}, {pipeline_mode = #tpu.pipeline_mode<synchronous>, transform_indices = @transform_2, window_bounds = array<i64: 32, 64>}, {pipeline_mode = #tpu.pipeline_mode<synchronous>, transform_indices = @transform_3, window_bounds = array<i64: 32, 128>}, {pipeline_mode = #tpu.pipeline_mode<synchronous>, transform_indices = @transform_4, window_bounds = array<i64: 64, 128>}, {pipeline_mode = #tpu.pipeline_mode<synchronous>, transform_indices = @transform_5, window_bounds = array<i64: 1, 128>}, {transform_indices = @transform_6, window_bounds = array<i64: 1, 8, 128>}]} {
    %c0_i32 = arith.constant 0 : i32
    %0 = arith.cmpi eq, %arg2, %c0_i32 : i32
    %1 = arith.extui %0 : i1 to i32
    %c0_i32_0 = arith.constant 0 : i32
    %2 = arith.cmpi ne, %1, %c0_i32_0 : i32
    scf.if %2 {
      %c0_89 = arith.constant 0 : index
      %c0_90 = arith.constant 0 : index
      %c0_91 = arith.constant 0 : index
      %138 = vector.load %arg3[%c0_89, %c0_90, %c0_91] : memref<1x8x32xf32, #tpu.memory_space<vmem>>, vector<1x8x32xf32>
      %139 = vector.shape_cast %138 : vector<1x8x32xf32> to vector<8x32xf32>
      %c0_92 = arith.constant 0 : index
      %c0_93 = arith.constant 0 : index
      %140 = vector.load %arg5[%c0_92, %c0_93] : memref<32x64xf32, #tpu.memory_space<vmem>>, vector<32x64xf32>
      %cst_94 = arith.constant dense<0.000000e+00> : vector<8x64xf32>
      %141 = tpu.matmul %139, %140, %cst_94 {dimension_numbers = #tpu.dot_dimension_numbers<[1], [0], [0], [1], [0, 0, 1, 1], [], []>} : vector<8x32xf32>, vector<32x64xf32>, vector<8x64xf32> -> vector<8x64xf32>
      %c0_95 = arith.constant 0 : index
      %c0_96 = arith.constant 0 : index
      %142 = vector.load %arg10[%c0_95, %c0_96] : memref<8x64xf32, #tpu.memory_space<vmem>>, vector<8x64xf32>
      tpu.vector_store %arg10[%c0_95, %c0_96], %141 {strides = array<i32>} : memref<8x64xf32, #tpu.memory_space<vmem>>, vector<8x64xf32>,
      %cst_97 = arith.constant 0xFF800000 : f32
      %143 = vector.broadcast %cst_97 : f32 to vector<4x8x1xf32>
      %c0_98 = arith.constant 0 : index
      %c0_99 = arith.constant 0 : index
      %c0_100 = arith.constant 0 : index
      %144 = vector.load %arg11[%c0_98, %c0_99, %c0_100] : memref<4x8x1xf32, #tpu.memory_space<vmem>>, vector<4x8x1xf32>
      tpu.vector_store %arg11[%c0_98, %c0_99, %c0_100], %143 {strides = array<i32>} : memref<4x8x1xf32, #tpu.memory_space<vmem>>, vector<4x8x1xf32>,
      %cst_101 = arith.constant 0.000000e+00 : f32
      %145 = vector.broadcast %cst_101 : f32 to vector<4x8x1xf32>
      %c0_102 = arith.constant 0 : index
      %c0_103 = arith.constant 0 : index
      %c0_104 = arith.constant 0 : index
      %146 = vector.load %arg12[%c0_102, %c0_103, %c0_104] : memref<4x8x1xf32, #tpu.memory_space<vmem>>, vector<4x8x1xf32>
      tpu.vector_store %arg12[%c0_102, %c0_103, %c0_104], %145 {strides = array<i32>} : memref<4x8x1xf32, #tpu.memory_space<vmem>>, vector<4x8x1xf32>,
      %cst_105 = arith.constant 0.000000e+00 : f32
      %147 = vector.broadcast %cst_105 : f32 to vector<8x64xf32>
      %c0_106 = arith.constant 0 : index
      %c0_107 = arith.constant 0 : index
      %148 = vector.load %arg13[%c0_106, %c0_107] : memref<8x64xf32, #tpu.memory_space<vmem>>, vector<8x64xf32>
      tpu.vector_store %arg13[%c0_106, %c0_107], %147 {strides = array<i32>} : memref<8x64xf32, #tpu.memory_space<vmem>>, vector<8x64xf32>,
    } else {
    }
    %c0 = arith.constant 0 : index
    %c0_1 = arith.constant 0 : index
    %c0_2 = arith.constant 0 : index
    %3 = vector.load %arg4[%c0, %c0_1, %c0_2] : memref<1x8x32xf32, #tpu.memory_space<vmem>>, vector<1x8x32xf32>
    %4 = vector.shape_cast %3 : vector<1x8x32xf32> to vector<8x32xf32>
    %c0_3 = arith.constant 0 : index
    %c0_4 = arith.constant 0 : index
    %5 = vector.load %arg6[%c0_3, %c0_4] : memref<32x128xf32, #tpu.memory_space<vmem>>, vector<32x128xf32>
    %cst = arith.constant dense<0.000000e+00> : vector<8x128xf32>
    %6 = tpu.matmul %4, %5, %cst {dimension_numbers = #tpu.dot_dimension_numbers<[1], [0], [0], [1], [0, 0, 1, 1], [], []>} : vector<8x32xf32>, vector<32x128xf32>, vector<8x128xf32> -> vector<8x128xf32>
    %c0_5 = arith.constant 0 : index
    %c0_6 = arith.constant 0 : index
    %7 = vector.load %arg10[%c0_5, %c0_6] : memref<8x64xf32, #tpu.memory_space<vmem>>, vector<8x16xf32>
    %8 = vector.extract_strided_slice %6 {offsets = [0, 0], sizes = [8, 16], strides = [1, 1]} : vector<8x128xf32> to vector<8x16xf32>
    %9 = vector.extract_strided_slice %6 {offsets = [0, 64], sizes = [8, 16], strides = [1, 1]} : vector<8x128xf32> to vector<8x16xf32>
    %cst_7 = arith.constant dense<0.000000e+00> : vector<8x8xf32>
    %10 = tpu.matmul %7, %8, %cst_7 {dimension_numbers = #tpu.dot_dimension_numbers<[1], [1], [0], [0], [0, 0, 1, 0], [], []>} : vector<8x16xf32>, vector<8x16xf32>, vector<8x8xf32> -> vector<8x8xf32>
    %c0_8 = arith.constant 0 : index
    %c0_9 = arith.constant 0 : index
    %c0_10 = arith.constant 0 : index
    %11 = vector.load %arg11[%c0_8, %c0_9, %c0_10] : memref<4x8x1xf32, #tpu.memory_space<vmem>>, vector<1x8x1xf32>
    %12 = vector.shape_cast %11 : vector<1x8x1xf32> to vector<8x1xf32>
    %cst_11 = arith.constant dense<0xFF800000> : vector<8xf32>
    %13 = vector.multi_reduction <maximumf>, %10, %cst_11 [1] : vector<8x8xf32> to vector<8xf32>
    %14 = vector.shape_cast %13 : vector<8xf32> to vector<8x1xf32>
    %15 = arith.maximumf %12, %14 : vector<8x1xf32>
    %16 = arith.subf %12, %15 : vector<8x1xf32>
    %17 = math.exp %16 : vector<8x1xf32>
    %18 = vector.broadcast %15 : vector<8x1xf32> to vector<8x8xf32>
    %19 = arith.subf %10, %18 : vector<8x8xf32>
    %20 = math.exp %19 : vector<8x8xf32>
    %c0_12 = arith.constant 0 : index
    %c0_13 = arith.constant 0 : index
    %c0_14 = arith.constant 0 : index
    %21 = vector.load %arg12[%c0_12, %c0_13, %c0_14] : memref<4x8x1xf32, #tpu.memory_space<vmem>>, vector<1x8x1xf32>
    %22 = vector.shape_cast %21 : vector<1x8x1xf32> to vector<8x1xf32>
    %23 = arith.mulf %17, %22 : vector<8x1xf32>
    %cst_15 = arith.constant dense<0.000000e+00> : vector<8xf32>
    %24 = vector.multi_reduction <add>, %20, %cst_15 [1] : vector<8x8xf32> to vector<8xf32>
    %25 = vector.shape_cast %24 : vector<8xf32> to vector<8x1xf32>
    %26 = arith.addf %23, %25 : vector<8x1xf32>
    %c0_16 = arith.constant 0 : index
    %c0_17 = arith.constant 0 : index
    %c0_18 = arith.constant 0 : index
    %27 = vector.load %arg12[%c0_16, %c0_17, %c0_18] : memref<4x8x1xf32, #tpu.memory_space<vmem>>, vector<1x8x1xf32>
    %28 = vector.shape_cast %27 : vector<1x8x1xf32> to vector<8x1xf32>
    %29 = vector.shape_cast %26 : vector<8x1xf32> to vector<1x8x1xf32>
    tpu.vector_store %arg12[%c0_16, %c0_17, %c0_18], %29 {strides = array<i32>} : memref<4x8x1xf32, #tpu.memory_space<vmem>>, vector<1x8x1xf32>,
    %cst_19 = arith.constant dense<0.000000e+00> : vector<8x16xf32>
    %30 = tpu.matmul %20, %9, %cst_19 {dimension_numbers = #tpu.dot_dimension_numbers<[1], [0], [0], [1], [0, 0, 1, 1], [], []>} : vector<8x8xf32>, vector<8x16xf32>, vector<8x16xf32> -> vector<8x16xf32>
    %c0_20 = arith.constant 0 : index
    %c0_21 = arith.constant 0 : index
    %31 = vector.load %arg13[%c0_20, %c0_21] : memref<8x64xf32, #tpu.memory_space<vmem>>, vector<8x16xf32>
    %32 = vector.broadcast %17 : vector<8x1xf32> to vector<8x16xf32>
    %33 = arith.mulf %32, %31 : vector<8x16xf32>
    %34 = arith.addf %33, %30 : vector<8x16xf32>
    %c0_22 = arith.constant 0 : index
    %c0_23 = arith.constant 0 : index
    %35 = vector.load %arg13[%c0_22, %c0_23] : memref<8x64xf32, #tpu.memory_space<vmem>>, vector<8x16xf32>
    tpu.vector_store %arg13[%c0_22, %c0_23], %34 {strides = array<i32>} : memref<8x64xf32, #tpu.memory_space<vmem>>, vector<8x16xf32>,
    %c0_24 = arith.constant 0 : index
    %c0_25 = arith.constant 0 : index
    %c0_26 = arith.constant 0 : index
    %36 = vector.load %arg11[%c0_24, %c0_25, %c0_26] : memref<4x8x1xf32, #tpu.memory_space<vmem>>, vector<1x8x1xf32>
    %37 = vector.shape_cast %36 : vector<1x8x1xf32> to vector<8x1xf32>
    %38 = vector.shape_cast %15 : vector<8x1xf32> to vector<1x8x1xf32>
    tpu.vector_store %arg11[%c0_24, %c0_25, %c0_26], %38 {strides = array<i32>} : memref<4x8x1xf32, #tpu.memory_space<vmem>>, vector<1x8x1xf32>,
    %c0_27 = arith.constant 0 : index
    %c16 = arith.constant 16 : index
    %39 = vector.load %arg10[%c0_27, %c16] : memref<8x64xf32, #tpu.memory_space<vmem>>, vector<8x16xf32>
    %40 = vector.extract_strided_slice %6 {offsets = [0, 16], sizes = [8, 16], strides = [1, 1]} : vector<8x128xf32> to vector<8x16xf32>
    %41 = vector.extract_strided_slice %6 {offsets = [0, 80], sizes = [8, 16], strides = [1, 1]} : vector<8x128xf32> to vector<8x16xf32>
    %cst_28 = arith.constant dense<0.000000e+00> : vector<8x8xf32>
    %42 = tpu.matmul %39, %40, %cst_28 {dimension_numbers = #tpu.dot_dimension_numbers<[1], [1], [0], [0], [0, 0, 1, 0], [], []>} : vector<8x16xf32>, vector<8x16xf32>, vector<8x8xf32> -> vector<8x8xf32>
    %c1 = arith.constant 1 : index
    %c0_29 = arith.constant 0 : index
    %c0_30 = arith.constant 0 : index
    %43 = vector.load %arg11[%c1, %c0_29, %c0_30] : memref<4x8x1xf32, #tpu.memory_space<vmem>>, vector<1x8x1xf32>
    %44 = vector.shape_cast %43 : vector<1x8x1xf32> to vector<8x1xf32>
    %cst_31 = arith.constant dense<0xFF800000> : vector<8xf32>
    %45 = vector.multi_reduction <maximumf>, %42, %cst_31 [1] : vector<8x8xf32> to vector<8xf32>
    %46 = vector.shape_cast %45 : vector<8xf32> to vector<8x1xf32>
    %47 = arith.maximumf %44, %46 : vector<8x1xf32>
    %48 = arith.subf %44, %47 : vector<8x1xf32>
    %49 = math.exp %48 : vector<8x1xf32>
    %50 = vector.broadcast %47 : vector<8x1xf32> to vector<8x8xf32>
    %51 = arith.subf %42, %50 : vector<8x8xf32>
    %52 = math.exp %51 : vector<8x8xf32>
    %c1_32 = arith.constant 1 : index
    %c0_33 = arith.constant 0 : index
    %c0_34 = arith.constant 0 : index
    %53 = vector.load %arg12[%c1_32, %c0_33, %c0_34] : memref<4x8x1xf32, #tpu.memory_space<vmem>>, vector<1x8x1xf32>
    %54 = vector.shape_cast %53 : vector<1x8x1xf32> to vector<8x1xf32>
    %55 = arith.mulf %49, %54 : vector<8x1xf32>
    %cst_35 = arith.constant dense<0.000000e+00> : vector<8xf32>
    %56 = vector.multi_reduction <add>, %52, %cst_35 [1] : vector<8x8xf32> to vector<8xf32>
    %57 = vector.shape_cast %56 : vector<8xf32> to vector<8x1xf32>
    %58 = arith.addf %55, %57 : vector<8x1xf32>
    %c1_36 = arith.constant 1 : index
    %c0_37 = arith.constant 0 : index
    %c0_38 = arith.constant 0 : index
    %59 = vector.load %arg12[%c1_36, %c0_37, %c0_38] : memref<4x8x1xf32, #tpu.memory_space<vmem>>, vector<1x8x1xf32>
    %60 = vector.shape_cast %59 : vector<1x8x1xf32> to vector<8x1xf32>
    %61 = vector.shape_cast %58 : vector<8x1xf32> to vector<1x8x1xf32>
    tpu.vector_store %arg12[%c1_36, %c0_37, %c0_38], %61 {strides = array<i32>} : memref<4x8x1xf32, #tpu.memory_space<vmem>>, vector<1x8x1xf32>,
    %cst_39 = arith.constant dense<0.000000e+00> : vector<8x16xf32>
    %62 = tpu.matmul %52, %41, %cst_39 {dimension_numbers = #tpu.dot_dimension_numbers<[1], [0], [0], [1], [0, 0, 1, 1], [], []>} : vector<8x8xf32>, vector<8x16xf32>, vector<8x16xf32> -> vector<8x16xf32>
    %c0_40 = arith.constant 0 : index
    %c16_41 = arith.constant 16 : index
    %63 = vector.load %arg13[%c0_40, %c16_41] : memref<8x64xf32, #tpu.memory_space<vmem>>, vector<8x16xf32>
    %64 = vector.broadcast %49 : vector<8x1xf32> to vector<8x16xf32>
    %65 = arith.mulf %64, %63 : vector<8x16xf32>
    %66 = arith.addf %65, %62 : vector<8x16xf32>
    %c0_42 = arith.constant 0 : index
    %c16_43 = arith.constant 16 : index
    %67 = vector.load %arg13[%c0_42, %c16_43] : memref<8x64xf32, #tpu.memory_space<vmem>>, vector<8x16xf32>
    tpu.vector_store %arg13[%c0_42, %c16_43], %66 {strides = array<i32>} : memref<8x64xf32, #tpu.memory_space<vmem>>, vector<8x16xf32>,
    %c1_44 = arith.constant 1 : index
    %c0_45 = arith.constant 0 : index
    %c0_46 = arith.constant 0 : index
    %68 = vector.load %arg11[%c1_44, %c0_45, %c0_46] : memref<4x8x1xf32, #tpu.memory_space<vmem>>, vector<1x8x1xf32>
    %69 = vector.shape_cast %68 : vector<1x8x1xf32> to vector<8x1xf32>
    %70 = vector.shape_cast %47 : vector<8x1xf32> to vector<1x8x1xf32>
    tpu.vector_store %arg11[%c1_44, %c0_45, %c0_46], %70 {strides = array<i32>} : memref<4x8x1xf32, #tpu.memory_space<vmem>>, vector<1x8x1xf32>,
    %c0_47 = arith.constant 0 : index
    %c32 = arith.constant 32 : index
    %71 = vector.load %arg10[%c0_47, %c32] : memref<8x64xf32, #tpu.memory_space<vmem>>, vector<8x16xf32>
    %72 = vector.extract_strided_slice %6 {offsets = [0, 32], sizes = [8, 16], strides = [1, 1]} : vector<8x128xf32> to vector<8x16xf32>
    %73 = vector.extract_strided_slice %6 {offsets = [0, 96], sizes = [8, 16], strides = [1, 1]} : vector<8x128xf32> to vector<8x16xf32>
    %cst_48 = arith.constant dense<0.000000e+00> : vector<8x8xf32>
    %74 = tpu.matmul %71, %72, %cst_48 {dimension_numbers = #tpu.dot_dimension_numbers<[1], [1], [0], [0], [0, 0, 1, 0], [], []>} : vector<8x16xf32>, vector<8x16xf32>, vector<8x8xf32> -> vector<8x8xf32>
    %c2 = arith.constant 2 : index
    %c0_49 = arith.constant 0 : index
    %c0_50 = arith.constant 0 : index
    %75 = vector.load %arg11[%c2, %c0_49, %c0_50] : memref<4x8x1xf32, #tpu.memory_space<vmem>>, vector<1x8x1xf32>
    %76 = vector.shape_cast %75 : vector<1x8x1xf32> to vector<8x1xf32>
    %cst_51 = arith.constant dense<0xFF800000> : vector<8xf32>
    %77 = vector.multi_reduction <maximumf>, %74, %cst_51 [1] : vector<8x8xf32> to vector<8xf32>
    %78 = vector.shape_cast %77 : vector<8xf32> to vector<8x1xf32>
    %79 = arith.maximumf %76, %78 : vector<8x1xf32>
    %80 = arith.subf %76, %79 : vector<8x1xf32>
    %81 = math.exp %80 : vector<8x1xf32>
    %82 = vector.broadcast %79 : vector<8x1xf32> to vector<8x8xf32>
    %83 = arith.subf %74, %82 : vector<8x8xf32>
    %84 = math.exp %83 : vector<8x8xf32>
    %c2_52 = arith.constant 2 : index
    %c0_53 = arith.constant 0 : index
    %c0_54 = arith.constant 0 : index
    %85 = vector.load %arg12[%c2_52, %c0_53, %c0_54] : memref<4x8x1xf32, #tpu.memory_space<vmem>>, vector<1x8x1xf32>
    %86 = vector.shape_cast %85 : vector<1x8x1xf32> to vector<8x1xf32>
    %87 = arith.mulf %81, %86 : vector<8x1xf32>
    %cst_55 = arith.constant dense<0.000000e+00> : vector<8xf32>
    %88 = vector.multi_reduction <add>, %84, %cst_55 [1] : vector<8x8xf32> to vector<8xf32>
    %89 = vector.shape_cast %88 : vector<8xf32> to vector<8x1xf32>
    %90 = arith.addf %87, %89 : vector<8x1xf32>
    %c2_56 = arith.constant 2 : index
    %c0_57 = arith.constant 0 : index
    %c0_58 = arith.constant 0 : index
    %91 = vector.load %arg12[%c2_56, %c0_57, %c0_58] : memref<4x8x1xf32, #tpu.memory_space<vmem>>, vector<1x8x1xf32>
    %92 = vector.shape_cast %91 : vector<1x8x1xf32> to vector<8x1xf32>
    %93 = vector.shape_cast %90 : vector<8x1xf32> to vector<1x8x1xf32>
    tpu.vector_store %arg12[%c2_56, %c0_57, %c0_58], %93 {strides = array<i32>} : memref<4x8x1xf32, #tpu.memory_space<vmem>>, vector<1x8x1xf32>,
    %cst_59 = arith.constant dense<0.000000e+00> : vector<8x16xf32>
    %94 = tpu.matmul %84, %73, %cst_59 {dimension_numbers = #tpu.dot_dimension_numbers<[1], [0], [0], [1], [0, 0, 1, 1], [], []>} : vector<8x8xf32>, vector<8x16xf32>, vector<8x16xf32> -> vector<8x16xf32>
    %c0_60 = arith.constant 0 : index
    %c32_61 = arith.constant 32 : index
    %95 = vector.load %arg13[%c0_60, %c32_61] : memref<8x64xf32, #tpu.memory_space<vmem>>, vector<8x16xf32>
    %96 = vector.broadcast %81 : vector<8x1xf32> to vector<8x16xf32>
    %97 = arith.mulf %96, %95 : vector<8x16xf32>
    %98 = arith.addf %97, %94 : vector<8x16xf32>
    %c0_62 = arith.constant 0 : index
    %c32_63 = arith.constant 32 : index
    %99 = vector.load %arg13[%c0_62, %c32_63] : memref<8x64xf32, #tpu.memory_space<vmem>>, vector<8x16xf32>
    tpu.vector_store %arg13[%c0_62, %c32_63], %98 {strides = array<i32>} : memref<8x64xf32, #tpu.memory_space<vmem>>, vector<8x16xf32>,
    %c2_64 = arith.constant 2 : index
    %c0_65 = arith.constant 0 : index
    %c0_66 = arith.constant 0 : index
    %100 = vector.load %arg11[%c2_64, %c0_65, %c0_66] : memref<4x8x1xf32, #tpu.memory_space<vmem>>, vector<1x8x1xf32>
    %101 = vector.shape_cast %100 : vector<1x8x1xf32> to vector<8x1xf32>
    %102 = vector.shape_cast %79 : vector<8x1xf32> to vector<1x8x1xf32>
    tpu.vector_store %arg11[%c2_64, %c0_65, %c0_66], %102 {strides = array<i32>} : memref<4x8x1xf32, #tpu.memory_space<vmem>>, vector<1x8x1xf32>,
    %c0_67 = arith.constant 0 : index
    %c48 = arith.constant 48 : index
    %103 = vector.load %arg10[%c0_67, %c48] : memref<8x64xf32, #tpu.memory_space<vmem>>, vector<8x16xf32>
    %104 = vector.extract_strided_slice %6 {offsets = [0, 48], sizes = [8, 16], strides = [1, 1]} : vector<8x128xf32> to vector<8x16xf32>
    %105 = vector.extract_strided_slice %6 {offsets = [0, 112], sizes = [8, 16], strides = [1, 1]} : vector<8x128xf32> to vector<8x16xf32>
    %cst_68 = arith.constant dense<0.000000e+00> : vector<8x8xf32>
    %106 = tpu.matmul %103, %104, %cst_68 {dimension_numbers = #tpu.dot_dimension_numbers<[1], [1], [0], [0], [0, 0, 1, 0], [], []>} : vector<8x16xf32>, vector<8x16xf32>, vector<8x8xf32> -> vector<8x8xf32>
    %c3 = arith.constant 3 : index
    %c0_69 = arith.constant 0 : index
    %c0_70 = arith.constant 0 : index
    %107 = vector.load %arg11[%c3, %c0_69, %c0_70] : memref<4x8x1xf32, #tpu.memory_space<vmem>>, vector<1x8x1xf32>
    %108 = vector.shape_cast %107 : vector<1x8x1xf32> to vector<8x1xf32>
    %cst_71 = arith.constant dense<0xFF800000> : vector<8xf32>
    %109 = vector.multi_reduction <maximumf>, %106, %cst_71 [1] : vector<8x8xf32> to vector<8xf32>
    %110 = vector.shape_cast %109 : vector<8xf32> to vector<8x1xf32>
    %111 = arith.maximumf %108, %110 : vector<8x1xf32>
    %112 = arith.subf %108, %111 : vector<8x1xf32>
    %113 = math.exp %112 : vector<8x1xf32>
    %114 = vector.broadcast %111 : vector<8x1xf32> to vector<8x8xf32>
    %115 = arith.subf %106, %114 : vector<8x8xf32>
    %116 = math.exp %115 : vector<8x8xf32>
    %c3_72 = arith.constant 3 : index
    %c0_73 = arith.constant 0 : index
    %c0_74 = arith.constant 0 : index
    %117 = vector.load %arg12[%c3_72, %c0_73, %c0_74] : memref<4x8x1xf32, #tpu.memory_space<vmem>>, vector<1x8x1xf32>
    %118 = vector.shape_cast %117 : vector<1x8x1xf32> to vector<8x1xf32>
    %119 = arith.mulf %113, %118 : vector<8x1xf32>
    %cst_75 = arith.constant dense<0.000000e+00> : vector<8xf32>
    %120 = vector.multi_reduction <add>, %116, %cst_75 [1] : vector<8x8xf32> to vector<8xf32>
    %121 = vector.shape_cast %120 : vector<8xf32> to vector<8x1xf32>
    %122 = arith.addf %119, %121 : vector<8x1xf32>
    %c3_76 = arith.constant 3 : index
    %c0_77 = arith.constant 0 : index
    %c0_78 = arith.constant 0 : index
    %123 = vector.load %arg12[%c3_76, %c0_77, %c0_78] : memref<4x8x1xf32, #tpu.memory_space<vmem>>, vector<1x8x1xf32>
    %124 = vector.shape_cast %123 : vector<1x8x1xf32> to vector<8x1xf32>
    %125 = vector.shape_cast %122 : vector<8x1xf32> to vector<1x8x1xf32>
    tpu.vector_store %arg12[%c3_76, %c0_77, %c0_78], %125 {strides = array<i32>} : memref<4x8x1xf32, #tpu.memory_space<vmem>>, vector<1x8x1xf32>,
    %cst_79 = arith.constant dense<0.000000e+00> : vector<8x16xf32>
    %126 = tpu.matmul %116, %105, %cst_79 {dimension_numbers = #tpu.dot_dimension_numbers<[1], [0], [0], [1], [0, 0, 1, 1], [], []>} : vector<8x8xf32>, vector<8x16xf32>, vector<8x16xf32> -> vector<8x16xf32>
    %c0_80 = arith.constant 0 : index
    %c48_81 = arith.constant 48 : index
    %127 = vector.load %arg13[%c0_80, %c48_81] : memref<8x64xf32, #tpu.memory_space<vmem>>, vector<8x16xf32>
    %128 = vector.broadcast %113 : vector<8x1xf32> to vector<8x16xf32>
    %129 = arith.mulf %128, %127 : vector<8x16xf32>
    %130 = arith.addf %129, %126 : vector<8x16xf32>
    %c0_82 = arith.constant 0 : index
    %c48_83 = arith.constant 48 : index
    %131 = vector.load %arg13[%c0_82, %c48_83] : memref<8x64xf32, #tpu.memory_space<vmem>>, vector<8x16xf32>
    tpu.vector_store %arg13[%c0_82, %c48_83], %130 {strides = array<i32>} : memref<8x64xf32, #tpu.memory_space<vmem>>, vector<8x16xf32>,
    %c3_84 = arith.constant 3 : index
    %c0_85 = arith.constant 0 : index
    %c0_86 = arith.constant 0 : index
    %132 = vector.load %arg11[%c3_84, %c0_85, %c0_86] : memref<4x8x1xf32, #tpu.memory_space<vmem>>, vector<1x8x1xf32>
    %133 = vector.shape_cast %132 : vector<1x8x1xf32> to vector<8x1xf32>
    %134 = vector.shape_cast %111 : vector<8x1xf32> to vector<1x8x1xf32>
    tpu.vector_store %arg11[%c3_84, %c0_85, %c0_86], %134 {strides = array<i32>} : memref<4x8x1xf32, #tpu.memory_space<vmem>>, vector<1x8x1xf32>,
    %c0_i32_87 = arith.constant 0 : i32
    %135 = arith.cmpi eq, %arg2, %c0_i32_87 : i32
    %136 = arith.extui %135 : i1 to i32
    %c0_i32_88 = arith.constant 0 : i32
    %137 = arith.cmpi ne, %136, %c0_i32_88 : i32
    scf.if %137 {
      %c0_89 = arith.constant 0 : index
      %c0_90 = arith.constant 0 : index
      %138 = vector.load %arg13[%c0_89, %c0_90] : memref<8x64xf32, #tpu.memory_space<vmem>>, vector<8x16xf32>
      %c0_91 = arith.constant 0 : index
      %c0_92 = arith.constant 0 : index
      %c0_93 = arith.constant 0 : index
      %139 = vector.load %arg12[%c0_91, %c0_92, %c0_93] : memref<4x8x1xf32, #tpu.memory_space<vmem>>, vector<1x8x1xf32>
      %140 = vector.shape_cast %139 : vector<1x8x1xf32> to vector<8x1xf32>
      %141 = vector.broadcast %140 : vector<8x1xf32> to vector<8x16xf32>
      %142 = arith.divf %138, %141 : vector<8x16xf32>
      %c0_94 = arith.constant 0 : index
      %c0_95 = arith.constant 0 : index
      %143 = vector.load %arg13[%c0_94, %c0_95] : memref<8x64xf32, #tpu.memory_space<vmem>>, vector<8x16xf32>
      tpu.vector_store %arg13[%c0_94, %c0_95], %142 {strides = array<i32>} : memref<8x64xf32, #tpu.memory_space<vmem>>, vector<8x16xf32>,
      %c0_96 = arith.constant 0 : index
      %c16_97 = arith.constant 16 : index
      %144 = vector.load %arg13[%c0_96, %c16_97] : memref<8x64xf32, #tpu.memory_space<vmem>>, vector<8x16xf32>
      %c1_98 = arith.constant 1 : index
      %c0_99 = arith.constant 0 : index
      %c0_100 = arith.constant 0 : index
      %145 = vector.load %arg12[%c1_98, %c0_99, %c0_100] : memref<4x8x1xf32, #tpu.memory_space<vmem>>, vector<1x8x1xf32>
      %146 = vector.shape_cast %145 : vector<1x8x1xf32> to vector<8x1xf32>
      %147 = vector.broadcast %146 : vector<8x1xf32> to vector<8x16xf32>
      %148 = arith.divf %144, %147 : vector<8x16xf32>
      %c0_101 = arith.constant 0 : index
      %c16_102 = arith.constant 16 : index
      %149 = vector.load %arg13[%c0_101, %c16_102] : memref<8x64xf32, #tpu.memory_space<vmem>>, vector<8x16xf32>
      tpu.vector_store %arg13[%c0_101, %c16_102], %148 {strides = array<i32>} : memref<8x64xf32, #tpu.memory_space<vmem>>, vector<8x16xf32>,
      %c0_103 = arith.constant 0 : index
      %c32_104 = arith.constant 32 : index
      %150 = vector.load %arg13[%c0_103, %c32_104] : memref<8x64xf32, #tpu.memory_space<vmem>>, vector<8x16xf32>
      %c2_105 = arith.constant 2 : index
      %c0_106 = arith.constant 0 : index
      %c0_107 = arith.constant 0 : index
      %151 = vector.load %arg12[%c2_105, %c0_106, %c0_107] : memref<4x8x1xf32, #tpu.memory_space<vmem>>, vector<1x8x1xf32>
      %152 = vector.shape_cast %151 : vector<1x8x1xf32> to vector<8x1xf32>
      %153 = vector.broadcast %152 : vector<8x1xf32> to vector<8x16xf32>
      %154 = arith.divf %150, %153 : vector<8x16xf32>
      %c0_108 = arith.constant 0 : index
      %c32_109 = arith.constant 32 : index
      %155 = vector.load %arg13[%c0_108, %c32_109] : memref<8x64xf32, #tpu.memory_space<vmem>>, vector<8x16xf32>
      tpu.vector_store %arg13[%c0_108, %c32_109], %154 {strides = array<i32>} : memref<8x64xf32, #tpu.memory_space<vmem>>, vector<8x16xf32>,
      %c0_110 = arith.constant 0 : index
      %c48_111 = arith.constant 48 : index
      %156 = vector.load %arg13[%c0_110, %c48_111] : memref<8x64xf32, #tpu.memory_space<vmem>>, vector<8x16xf32>
      %c3_112 = arith.constant 3 : index
      %c0_113 = arith.constant 0 : index
      %c0_114 = arith.constant 0 : index
      %157 = vector.load %arg12[%c3_112, %c0_113, %c0_114] : memref<4x8x1xf32, #tpu.memory_space<vmem>>, vector<1x8x1xf32>
      %158 = vector.shape_cast %157 : vector<1x8x1xf32> to vector<8x1xf32>
      %159 = vector.broadcast %158 : vector<8x1xf32> to vector<8x16xf32>
      %160 = arith.divf %156, %159 : vector<8x16xf32>
      %c0_115 = arith.constant 0 : index
      %c48_116 = arith.constant 48 : index
      %161 = vector.load %arg13[%c0_115, %c48_116] : memref<8x64xf32, #tpu.memory_space<vmem>>, vector<8x16xf32>
      tpu.vector_store %arg13[%c0_115, %c48_116], %160 {strides = array<i32>} : memref<8x64xf32, #tpu.memory_space<vmem>>, vector<8x16xf32>,
      %c0_117 = arith.constant 0 : index
      %c0_118 = arith.constant 0 : index
      %162 = vector.load %arg13[%c0_117, %c0_118] : memref<8x64xf32, #tpu.memory_space<vmem>>, vector<8x64xf32>
      %c0_119 = arith.constant 0 : index
      %c0_120 = arith.constant 0 : index
      %163 = vector.load %arg7[%c0_119, %c0_120] : memref<64x128xf32, #tpu.memory_space<vmem>>, vector<64x128xf32>
      %cst_121 = arith.constant dense<0.000000e+00> : vector<8x128xf32>
      %164 = tpu.matmul %162, %163, %cst_121 {dimension_numbers = #tpu.dot_dimension_numbers<[1], [0], [0], [1], [0, 0, 1, 1], [], []>} : vector<8x64xf32>, vector<64x128xf32>, vector<8x128xf32> -> vector<8x128xf32>
      %c0_122 = arith.constant 0 : index
      %c0_123 = arith.constant 0 : index
      %165 = vector.load %arg8[%c0_122, %c0_123] : memref<1x128xf32, #tpu.memory_space<vmem>>, vector<1x128xf32>
      %166 = vector.broadcast %165 : vector<1x128xf32> to vector<8x128xf32>
      %167 = arith.addf %164, %166 : vector<8x128xf32>
      %c0_124 = arith.constant 0 : index
      %c0_125 = arith.constant 0 : index
      %c0_126 = arith.constant 0 : index
      %168 = vector.load %arg9[%c0_124, %c0_125, %c0_126] : memref<1x8x128xf32, #tpu.memory_space<vmem>>, vector<1x8x128xf32>
      %169 = vector.shape_cast %168 : vector<1x8x128xf32> to vector<8x128xf32>
      %170 = vector.shape_cast %167 : vector<8x128xf32> to vector<1x8x128xf32>
      tpu.vector_store %arg9[%c0_124, %c0_125, %c0_126], %170 {strides = array<i32>} : memref<1x8x128xf32, #tpu.memory_space<vmem>>, vector<1x8x128xf32>,
    } else {
    }
    return
  }
  func.func @transform_0(%arg0: i32, %arg1: i32, %arg2: i32) -> (i32, i32, i32) {
    %c0_i32 = arith.constant 0 : i32
    %c0_i32_0 = arith.constant 0 : i32
    return %arg0, %arg1, %c0_i32 : i32, i32, i32
  }
  func.func @transform_1(%arg0: i32, %arg1: i32, %arg2: i32) -> (i32, i32, i32) {
    %c0_i32 = arith.constant 0 : i32
    %c0_i32_0 = arith.constant 0 : i32
    return %arg0, %arg2, %c0_i32 : i32, i32, i32
  }
  func.func @transform_2(%arg0: i32, %arg1: i32, %arg2: i32) -> (i32, i32) {
    %c0_i32 = arith.constant 0 : i32
    %c0_i32_0 = arith.constant 0 : i32
    %c0_i32_1 = arith.constant 0 : i32
    return %c0_i32, %c0_i32_0 : i32, i32
  }
  func.func @transform_3(%arg0: i32, %arg1: i32, %arg2: i32) -> (i32, i32) {
    %c0_i32 = arith.constant 0 : i32
    %c0_i32_0 = arith.constant 0 : i32
    %c0_i32_1 = arith.constant 0 : i32
    return %c0_i32, %c0_i32_0 : i32, i32
  }
  func.func @transform_4(%arg0: i32, %arg1: i32, %arg2: i32) -> (i32, i32) {
    %c0_i32 = arith.constant 0 : i32
    %c0_i32_0 = arith.constant 0 : i32
    %c0_i32_1 = arith.constant 0 : i32
    return %c0_i32, %c0_i32_0 : i32, i32
  }
  func.func @transform_5(%arg0: i32, %arg1: i32, %arg2: i32) -> (i32, i32) {
    %c0_i32 = arith.constant 0 : i32
    %c0_i32_0 = arith.constant 0 : i32
    %c0_i32_1 = arith.constant 0 : i32
    return %c0_i32, %c0_i32_0 : i32, i32
  }
  func.func @transform_6(%arg0: i32, %arg1: i32, %arg2: i32) -> (i32, i32, i32) {
    %c0_i32 = arith.constant 0 : i32
    %c0_i32_0 = arith.constant 0 : i32
    return %arg0, %arg1, %c0_i32 : i32, i32, i32
  }
}

module attributes {stable_mosaic.version = 11 : i64} {
  func.func @_synapse_attention_kernel(%arg0: i32, %arg1: i32, %arg2: i32, %arg3: memref<1x8x32xf32, #tpu.memory_space<vmem>>, %arg4: memref<1x8x32xf32, #tpu.memory_space<vmem>>, %arg5: memref<32x64xf32, #tpu.memory_space<vmem>>, %arg6: memref<32x128xf32, #tpu.memory_space<vmem>>, %arg7: memref<64x128xf32, #tpu.memory_space<vmem>>, %arg8: memref<1x128xf32, #tpu.memory_space<vmem>>, %arg9: memref<1x8x128xf32, #tpu.memory_space<vmem>>, %arg10: memref<8x64xf32, #tpu.memory_space<vmem>>, %arg11: memref<4x8x1xf32, #tpu.memory_space<vmem>>, %arg12: memref<4x8x1xf32, #tpu.memory_space<vmem>>, %arg13: memref<8x64xf32, #tpu.memory_space<vmem>>) attributes {dimension_semantics = [#tpu.dimension_semantics<parallel>, #tpu.dimension_semantics<parallel>, #tpu.dimension_semantics<arbitrary>], iteration_bounds = array<i64: 2, 1, 1>, scalar_prefetch = 0 : i64, scratch_operands = 4 : i64, tpu.core_type = #tpu.core_type<tc>, window_params = [{transform_indices = @transform_0, window_bounds = array<i64: 1, 8, 32>}, {transform_indices = @transform_1, window_bounds = array<i64: 1, 8, 32>}, {pipeline_mode = #tpu.pipeline_mode<synchronous>, transform_indices = @transform_2, window_bounds = array<i64: 32, 64>}, {pipeline_mode = #tpu.pipeline_mode<synchronous>, transform_indices = @transform_3, window_bounds = array<i64: 32, 128>}, {pipeline_mode = #tpu.pipeline_mode<synchronous>, transform_indices = @transform_4, window_bounds = array<i64: 64, 128>}, {pipeline_mode = #tpu.pipeline_mode<synchronous>, transform_indices = @transform_5, window_bounds = array<i64: 1, 128>}, {transform_indices = @transform_6, window_bounds = array<i64: 1, 8, 128>}]} {
    %c0_i32 = arith.constant 0 : i32
    %0 = arith.cmpi eq, %arg2, %c0_i32 : i32
    %1 = arith.extui %0 : i1 to i32
    %c0_i32_0 = arith.constant 0 : i32
    %2 = arith.cmpi ne, %1, %c0_i32_0 : i32
    scf.if %2 {
      %c0_89 = arith.constant 0 : index
      %c0_90 = arith.constant 0 : index
      %c0_91 = arith.constant 0 : index
      %138 = vector.load %arg3[%c0_89, %c0_90, %c0_91] : memref<1x8x32xf32, #tpu.memory_space<vmem>>, vector<1x8x32xf32>
      %139 = vector.shape_cast %138 : vector<1x8x32xf32> to vector<8x32xf32>
      %c0_92 = arith.constant 0 : index
      %c0_93 = arith.constant 0 : index
      %140 = vector.load %arg5[%c0_92, %c0_93] : memref<32x64xf32, #tpu.memory_space<vmem>>, vector<32x64xf32>
      %cst_94 = arith.constant dense<0.000000e+00> : vector<8x64xf32>
      %141 = tpu.matmul %139, %140, %cst_94 {dimension_numbers = #tpu.dot_dimension_numbers<[1], [0], [0], [1], [0, 0, 1, 1], [], []>} : vector<8x32xf32>, vector<32x64xf32>, vector<8x64xf32> -> vector<8x64xf32>
      %c0_95 = arith.constant 0 : index
      %c0_96 = arith.constant 0 : index
      %142 = vector.load %arg10[%c0_95, %c0_96] : memref<8x64xf32, #tpu.memory_space<vmem>>, vector<8x64xf32>
      tpu.vector_store %arg10[%c0_95, %c0_96], %141 {strides = array<i32>} : memref<8x64xf32, #tpu.memory_space<vmem>>, vector<8x64xf32>,
      %cst_97 = arith.constant 0xFF800000 : f32
      %143 = vector.broadcast %cst_97 : f32 to vector<4x8x1xf32>
      %c0_98 = arith.constant 0 : index
      %c0_99 = arith.constant 0 : index
      %c0_100 = arith.constant 0 : index
      %144 = vector.load %arg11[%c0_98, %c0_99, %c0_100] : memref<4x8x1xf32, #tpu.memory_space<vmem>>, vector<4x8x1xf32>
      tpu.vector_store %arg11[%c0_98, %c0_99, %c0_100], %143 {strides = array<i32>} : memref<4x8x1xf32, #tpu.memory_space<vmem>>, vector<4x8x1xf32>,
      %cst_101 = arith.constant 0.000000e+00 : f32
      %145 = vector.broadcast %cst_101 : f32 to vector<4x8x1xf32>
      %c0_102 = arith.constant 0 : index
      %c0_103 = arith.constant 0 : index
      %c0_104 = arith.constant 0 : index
      %146 = vector.load %arg12[%c0_102, %c0_103, %c0_104] : memref<4x8x1xf32, #tpu.memory_space<vmem>>, vector<4x8x1xf32>
      tpu.vector_store %arg12[%c0_102, %c0_103, %c0_104], %145 {strides = array<i32>} : memref<4x8x1xf32, #tpu.memory_space<vmem>>, vector<4x8x1xf32>,
      %cst_105 = arith.constant 0.000000e+00 : f32
      %147 = vector.broadcast %cst_105 : f32 to vector<8x64xf32>
      %c0_106 = arith.constant 0 : index
      %c0_107 = arith.constant 0 : index
      %148 = vector.load %arg13[%c0_106, %c0_107] : memref<8x64xf32, #tpu.memory_space<vmem>>, vector<8x64xf32>
      tpu.vector_store %arg13[%c0_106, %c0_107], %147 {strides = array<i32>} : memref<8x64xf32, #tpu.memory_space<vmem>>, vector<8x64xf32>,
    } else {
    }
    %c0 = arith.constant 0 : index
    %c0_1 = arith.constant 0 : index
    %c0_2 = arith.constant 0 : index
    %3 = vector.load %arg4[%c0, %c0_1, %c0_2] : memref<1x8x32xf32, #tpu.memory_space<vmem>>, vector<1x8x32xf32>
    %4 = vector.shape_cast %3 : vector<1x8x32xf32> to vector<8x32xf32>
    %c0_3 = arith.constant 0 : index
    %c0_4 = arith.constant 0 : index
    %5 = vector.load %arg6[%c0_3, %c0_4] : memref<32x128xf32, #tpu.memory_space<vmem>>, vector<32x128xf32>
    %cst = arith.constant dense<0.000000e+00> : vector<8x128xf32>
    %6 = tpu.matmul %4, %5, %cst {dimension_numbers = #tpu.dot_dimension_numbers<[1], [0], [0], [1], [0, 0, 1, 1], [], []>} : vector<8x32xf32>, vector<32x128xf32>, vector<8x128xf32> -> vector<8x128xf32>
    %c0_5 = arith.constant 0 : index
    %c0_6 = arith.constant 0 : index
    %7 = vector.load %arg10[%c0_5, %c0_6] : memref<8x64xf32, #tpu.memory_space<vmem>>, vector<8x16xf32>
    %8 = vector.extract_strided_slice %6 {offsets = [0, 0], sizes = [8, 16], strides = [1, 1]} : vector<8x128xf32> to vector<8x16xf32>
    %9 = vector.extract_strided_slice %6 {offsets = [0, 64], sizes = [8, 16], strides = [1, 1]} : vector<8x128xf32> to vector<8x16xf32>
    %cst_7 = arith.constant dense<0.000000e+00> : vector<8x8xf32>
    %10 = tpu.matmul %7, %8, %cst_7 {dimension_numbers = #tpu.dot_dimension_numbers<[1], [1], [0], [0], [0, 0, 1, 0], [], []>} : vector<8x16xf32>, vector<8x16xf32>, vector<8x8xf32> -> vector<8x8xf32>
    %c0_8 = arith.constant 0 : index
    %c0_9 = arith.constant 0 : index
    %c0_10 = arith.constant 0 : index
    %11 = vector.load %arg11[%c0_8, %c0_9, %c0_10] : memref<4x8x1xf32, #tpu.memory_space<vmem>>, vector<1x8x1xf32>
    %12 = vector.shape_cast %11 : vector<1x8x1xf32> to vector<8x1xf32>
    %cst_11 = arith.constant dense<0xFF800000> : vector<8xf32>
    %13 = vector.multi_reduction <maximumf>, %10, %cst_11 [1] : vector<8x8xf32> to vector<8xf32>
    %14 = vector.shape_cast %13 : vector<8xf32> to vector<8x1xf32>
    %15 = arith.maximumf %12, %14 : vector<8x1xf32>
    %16 = arith.subf %12, %15 : vector<8x1xf32>
    %17 = math.exp %16 : vector<8x1xf32>
    %18 = vector.broadcast %15 : vector<8x1xf32> to vector<8x8xf32>
    %19 = arith.subf %10, %18 : vector<8x8xf32>
    %20 = math.exp %19 : vector<8x8xf32>
    %c0_12 = arith.constant 0 : index
    %c0_13 = arith.constant 0 : index
    %c0_14 = arith.constant 0 : index
    %21 = vector.load %arg12[%c0_12, %c0_13, %c0_14] : memref<4x8x1xf32, #tpu.memory_space<vmem>>, vector<1x8x1xf32>
    %22 = vector.shape_cast %21 : vector<1x8x1xf32> to vector<8x1xf32>
    %23 = arith.mulf %17, %22 : vector<8x1xf32>
    %cst_15 = arith.constant dense<0.000000e+00> : vector<8xf32>
    %24 = vector.multi_reduction <add>, %20, %cst_15 [1] : vector<8x8xf32> to vector<8xf32>
    %25 = vector.shape_cast %24 : vector<8xf32> to vector<8x1xf32>
    %26 = arith.addf %23, %25 : vector<8x1xf32>
    %c0_16 = arith.constant 0 : index
    %c0_17 = arith.constant 0 : index
    %c0_18 = arith.constant 0 : index
    %27 = vector.load %arg12[%c0_16, %c0_17, %c0_18] : memref<4x8x1xf32, #tpu.memory_space<vmem>>, vector<1x8x1xf32>
    %28 = vector.shape_cast %27 : vector<1x8x1xf32> to vector<8x1xf32>
    %29 = vector.shape_cast %26 : vector<8x1xf32> to vector<1x8x1xf32>
    tpu.vector_store %arg12[%c0_16, %c0_17, %c0_18], %29 {strides = array<i32>} : memref<4x8x1xf32, #tpu.memory_space<vmem>>, vector<1x8x1xf32>,
    %cst_19 = arith.constant dense<0.000000e+00> : vector<8x16xf32>
    %30 = tpu.matmul %20, %9, %cst_19 {dimension_numbers = #tpu.dot_dimension_numbers<[1], [0], [0], [1], [0, 0, 1, 1], [], []>} : vector<8x8xf32>, vector<8x16xf32>, vector<8x16xf32> -> vector<8x16xf32>
    %c0_20 = arith.constant 0 : index
    %c0_21 = arith.constant 0 : index
    %31 = vector.load %arg13[%c0_20, %c0_21] : memref<8x64xf32, #tpu.memory_space<vmem>>, vector<8x16xf32>
    %32 = vector.broadcast %17 : vector<8x1xf32> to vector<8x16xf32>
    %33 = arith.mulf %32, %31 : vector<8x16xf32>
    %34 = arith.addf %33, %30 : vector<8x16xf32>
    %c0_22 = arith.constant 0 : index
    %c0_23 = arith.constant 0 : index
    %35 = vector.load %arg13[%c0_22, %c0_23] : memref<8x64xf32, #tpu.memory_space<vmem>>, vector<8x16xf32>
    tpu.vector_store %arg13[%c0_22, %c0_23], %34 {strides = array<i32>} : memref<8x64xf32, #tpu.memory_space<vmem>>, vector<8x16xf32>,
    %c0_24 = arith.constant 0 : index
    %c0_25 = arith.constant 0 : index
    %c0_26 = arith.constant 0 : index
    %36 = vector.load %arg11[%c0_24, %c0_25, %c0_26] : memref<4x8x1xf32, #tpu.memory_space<vmem>>, vector<1x8x1xf32>
    %37 = vector.shape_cast %36 : vector<1x8x1xf32> to vector<8x1xf32>
    %38 = vector.shape_cast %15 : vector<8x1xf32> to vector<1x8x1xf32>
    tpu.vector_store %arg11[%c0_24, %c0_25, %c0_26], %38 {strides = array<i32>} : memref<4x8x1xf32, #tpu.memory_space<vmem>>, vector<1x8x1xf32>,
    %c0_27 = arith.constant 0 : index
    %c16 = arith.constant 16 : index
    %39 = vector.load %arg10[%c0_27, %c16] : memref<8x64xf32, #tpu.memory_space<vmem>>, vector<8x16xf32>
    %40 = vector.extract_strided_slice %6 {offsets = [0, 16], sizes = [8, 16], strides = [1, 1]} : vector<8x128xf32> to vector<8x16xf32>
    %41 = vector.extract_strided_slice %6 {offsets = [0, 80], sizes = [8, 16], strides = [1, 1]} : vector<8x128xf32> to vector<8x16xf32>
    %cst_28 = arith.constant dense<0.000000e+00> : vector<8x8xf32>
    %42 = tpu.matmul %39, %40, %cst_28 {dimension_numbers = #tpu.dot_dimension_numbers<[1], [1], [0], [0], [0, 0, 1, 0], [], []>} : vector<8x16xf32>, vector<8x16xf32>, vector<8x8xf32> -> vector<8x8xf32>
    %c1 = arith.constant 1 : index
    %c0_29 = arith.constant 0 : index
    %c0_30 = arith.constant 0 : index
    %43 = vector.load %arg11[%c1, %c0_29, %c0_30] : memref<4x8x1xf32, #tpu.memory_space<vmem>>, vector<1x8x1xf32>
    %44 = vector.shape_cast %43 : vector<1x8x1xf32> to vector<8x1xf32>
    %cst_31 = arith.constant dense<0xFF800000> : vector<8xf32>
    %45 = vector.multi_reduction <maximumf>, %42, %cst_31 [1] : vector<8x8xf32> to vector<8xf32>
    %46 = vector.shape_cast %45 : vector<8xf32> to vector<8x1xf32>
    %47 = arith.maximumf %44, %46 : vector<8x1xf32>
    %48 = arith.subf %44, %47 : vector<8x1xf32>
    %49 = math.exp %48 : vector<8x1xf32>
    %50 = vector.broadcast %47 : vector<8x1xf32> to vector<8x8xf32>
    %51 = arith.subf %42, %50 : vector<8x8xf32>
    %52 = math.exp %51 : vector<8x8xf32>
    %c1_32 = arith.constant 1 : index
    %c0_33 = arith.constant 0 : index
    %c0_34 = arith.constant 0 : index
    %53 = vector.load %arg12[%c1_32, %c0_33, %c0_34] : memref<4x8x1xf32, #tpu.memory_space<vmem>>, vector<1x8x1xf32>
    %54 = vector.shape_cast %53 : vector<1x8x1xf32> to vector<8x1xf32>
    %55 = arith.mulf %49, %54 : vector<8x1xf32>
    %cst_35 = arith.constant dense<0.000000e+00> : vector<8xf32>
    %56 = vector.multi_reduction <add>, %52, %cst_35 [1] : vector<8x8xf32> to vector<8xf32>
    %57 = vector.shape_cast %56 : vector<8xf32> to vector<8x1xf32>
    %58 = arith.addf %55, %57 : vector<8x1xf32>
    %c1_36 = arith.constant 1 : index
    %c0_37 = arith.constant 0 : index
    %c0_38 = arith.constant 0 : index
    %59 = vector.load %arg12[%c1_36, %c0_37, %c0_38] : memref<4x8x1xf32, #tpu.memory_space<vmem>>, vector<1x8x1xf32>
    %60 = vector.shape_cast %59 : vector<1x8x1xf32> to vector<8x1xf32>
    %61 = vector.shape_cast %58 : vector<8x1xf32> to vector<1x8x1xf32>
    tpu.vector_store %arg12[%c1_36, %c0_37, %c0_38], %61 {strides = array<i32>} : memref<4x8x1xf32, #tpu.memory_space<vmem>>, vector<1x8x1xf32>,
    %cst_39 = arith.constant dense<0.000000e+00> : vector<8x16xf32>
    %62 = tpu.matmul %52, %41, %cst_39 {dimension_numbers = #tpu.dot_dimension_numbers<[1], [0], [0], [1], [0, 0, 1, 1], [], []>} : vector<8x8xf32>, vector<8x16xf32>, vector<8x16xf32> -> vector<8x16xf32>
    %c0_40 = arith.constant 0 : index
    %c16_41 = arith.constant 16 : index
    %63 = vector.load %arg13[%c0_40, %c16_41] : memref<8x64xf32, #tpu.memory_space<vmem>>, vector<8x16xf32>
    %64 = vector.broadcast %49 : vector<8x1xf32> to vector<8x16xf32>
    %65 = arith.mulf %64, %63 : vector<8x16xf32>
    %66 = arith.addf %65, %62 : vector<8x16xf32>
    %c0_42 = arith.constant 0 : index
    %c16_43 = arith.constant 16 : index
    %67 = vector.load %arg13[%c0_42, %c16_43] : memref<8x64xf32, #tpu.memory_space<vmem>>, vector<8x16xf32>
    tpu.vector_store %arg13[%c0_42, %c16_43], %66 {strides = array<i32>} : memref<8x64xf32, #tpu.memory_space<vmem>>, vector<8x16xf32>,
    %c1_44 = arith.constant 1 : index
    %c0_45 = arith.constant 0 : index
    %c0_46 = arith.constant 0 : index
    %68 = vector.load %arg11[%c1_44, %c0_45, %c0_46] : memref<4x8x1xf32, #tpu.memory_space<vmem>>, vector<1x8x1xf32>
    %69 = vector.shape_cast %68 : vector<1x8x1xf32> to vector<8x1xf32>
    %70 = vector.shape_cast %47 : vector<8x1xf32> to vector<1x8x1xf32>
    tpu.vector_store %arg11[%c1_44, %c0_45, %c0_46], %70 {strides = array<i32>} : memref<4x8x1xf32, #tpu.memory_space<vmem>>, vector<1x8x1xf32>,
    %c0_47 = arith.constant 0 : index
    %c32 = arith.constant 32 : index
    %71 = vector.load %arg10[%c0_47, %c32] : memref<8x64xf32, #tpu.memory_space<vmem>>, vector<8x16xf32>
    %72 = vector.extract_strided_slice %6 {offsets = [0, 32], sizes = [8, 16], strides = [1, 1]} : vector<8x128xf32> to vector<8x16xf32>
    %73 = vector.extract_strided_slice %6 {offsets = [0, 96], sizes = [8, 16], strides = [1, 1]} : vector<8x128xf32> to vector<8x16xf32>
    %cst_48 = arith.constant dense<0.000000e+00> : vector<8x8xf32>
    %74 = tpu.matmul %71, %72, %cst_48 {dimension_numbers = #tpu.dot_dimension_numbers<[1], [1], [0], [0], [0, 0, 1, 0], [], []>} : vector<8x16xf32>, vector<8x16xf32>, vector<8x8xf32> -> vector<8x8xf32>
    %c2 = arith.constant 2 : index
    %c0_49 = arith.constant 0 : index
    %c0_50 = arith.constant 0 : index
    %75 = vector.load %arg11[%c2, %c0_49, %c0_50] : memref<4x8x1xf32, #tpu.memory_space<vmem>>, vector<1x8x1xf32>
    %76 = vector.shape_cast %75 : vector<1x8x1xf32> to vector<8x1xf32>
    %cst_51 = arith.constant dense<0xFF800000> : vector<8xf32>
    %77 = vector.multi_reduction <maximumf>, %74, %cst_51 [1] : vector<8x8xf32> to vector<8xf32>
    %78 = vector.shape_cast %77 : vector<8xf32> to vector<8x1xf32>
    %79 = arith.maximumf %76, %78 : vector<8x1xf32>
    %80 = arith.subf %76, %79 : vector<8x1xf32>
    %81 = math.exp %80 : vector<8x1xf32>
    %82 = vector.broadcast %79 : vector<8x1xf32> to vector<8x8xf32>
    %83 = arith.subf %74, %82 : vector<8x8xf32>
    %84 = math.exp %83 : vector<8x8xf32>
    %c2_52 = arith.constant 2 : index
    %c0_53 = arith.constant 0 : index
    %c0_54 = arith.constant 0 : index
    %85 = vector.load %arg12[%c2_52, %c0_53, %c0_54] : memref<4x8x1xf32, #tpu.memory_space<vmem>>, vector<1x8x1xf32>
    %86 = vector.shape_cast %85 : vector<1x8x1xf32> to vector<8x1xf32>
    %87 = arith.mulf %81, %86 : vector<8x1xf32>
    %cst_55 = arith.constant dense<0.000000e+00> : vector<8xf32>
    %88 = vector.multi_reduction <add>, %84, %cst_55 [1] : vector<8x8xf32> to vector<8xf32>
    %89 = vector.shape_cast %88 : vector<8xf32> to vector<8x1xf32>
    %90 = arith.addf %87, %89 : vector<8x1xf32>
    %c2_56 = arith.constant 2 : index
    %c0_57 = arith.constant 0 : index
    %c0_58 = arith.constant 0 : index
    %91 = vector.load %arg12[%c2_56, %c0_57, %c0_58] : memref<4x8x1xf32, #tpu.memory_space<vmem>>, vector<1x8x1xf32>
    %92 = vector.shape_cast %91 : vector<1x8x1xf32> to vector<8x1xf32>
    %93 = vector.shape_cast %90 : vector<8x1xf32> to vector<1x8x1xf32>
    tpu.vector_store %arg12[%c2_56, %c0_57, %c0_58], %93 {strides = array<i32>} : memref<4x8x1xf32, #tpu.memory_space<vmem>>, vector<1x8x1xf32>,
    %cst_59 = arith.constant dense<0.000000e+00> : vector<8x16xf32>
    %94 = tpu.matmul %84, %73, %cst_59 {dimension_numbers = #tpu.dot_dimension_numbers<[1], [0], [0], [1], [0, 0, 1, 1], [], []>} : vector<8x8xf32>, vector<8x16xf32>, vector<8x16xf32> -> vector<8x16xf32>
    %c0_60 = arith.constant 0 : index
    %c32_61 = arith.constant 32 : index
    %95 = vector.load %arg13[%c0_60, %c32_61] : memref<8x64xf32, #tpu.memory_space<vmem>>, vector<8x16xf32>
    %96 = vector.broadcast %81 : vector<8x1xf32> to vector<8x16xf32>
    %97 = arith.mulf %96, %95 : vector<8x16xf32>
    %98 = arith.addf %97, %94 : vector<8x16xf32>
    %c0_62 = arith.constant 0 : index
    %c32_63 = arith.constant 32 : index
    %99 = vector.load %arg13[%c0_62, %c32_63] : memref<8x64xf32, #tpu.memory_space<vmem>>, vector<8x16xf32>
    tpu.vector_store %arg13[%c0_62, %c32_63], %98 {strides = array<i32>} : memref<8x64xf32, #tpu.memory_space<vmem>>, vector<8x16xf32>,
    %c2_64 = arith.constant 2 : index
    %c0_65 = arith.constant 0 : index
    %c0_66 = arith.constant 0 : index
    %100 = vector.load %arg11[%c2_64, %c0_65, %c0_66] : memref<4x8x1xf32, #tpu.memory_space<vmem>>, vector<1x8x1xf32>
    %101 = vector.shape_cast %100 : vector<1x8x1xf32> to vector<8x1xf32>
    %102 = vector.shape_cast %79 : vector<8x1xf32> to vector<1x8x1xf32>
    tpu.vector_store %arg11[%c2_64, %c0_65, %c0_66], %102 {strides = array<i32>} : memref<4x8x1xf32, #tpu.memory_space<vmem>>, vector<1x8x1xf32>,
    %c0_67 = arith.constant 0 : index
    %c48 = arith.constant 48 : index
    %103 = vector.load %arg10[%c0_67, %c48] : memref<8x64xf32, #tpu.memory_space<vmem>>, vector<8x16xf32>
    %104 = vector.extract_strided_slice %6 {offsets = [0, 48], sizes = [8, 16], strides = [1, 1]} : vector<8x128xf32> to vector<8x16xf32>
    %105 = vector.extract_strided_slice %6 {offsets = [0, 112], sizes = [8, 16], strides = [1, 1]} : vector<8x128xf32> to vector<8x16xf32>
    %cst_68 = arith.constant dense<0.000000e+00> : vector<8x8xf32>
    %106 = tpu.matmul %103, %104, %cst_68 {dimension_numbers = #tpu.dot_dimension_numbers<[1], [1], [0], [0], [0, 0, 1, 0], [], []>} : vector<8x16xf32>, vector<8x16xf32>, vector<8x8xf32> -> vector<8x8xf32>
    %c3 = arith.constant 3 : index
    %c0_69 = arith.constant 0 : index
    %c0_70 = arith.constant 0 : index
    %107 = vector.load %arg11[%c3, %c0_69, %c0_70] : memref<4x8x1xf32, #tpu.memory_space<vmem>>, vector<1x8x1xf32>
    %108 = vector.shape_cast %107 : vector<1x8x1xf32> to vector<8x1xf32>
    %cst_71 = arith.constant dense<0xFF800000> : vector<8xf32>
    %109 = vector.multi_reduction <maximumf>, %106, %cst_71 [1] : vector<8x8xf32> to vector<8xf32>
    %110 = vector.shape_cast %109 : vector<8xf32> to vector<8x1xf32>
    %111 = arith.maximumf %108, %110 : vector<8x1xf32>
    %112 = arith.subf %108, %111 : vector<8x1xf32>
    %113 = math.exp %112 : vector<8x1xf32>
    %114 = vector.broadcast %111 : vector<8x1xf32> to vector<8x8xf32>
    %115 = arith.subf %106, %114 : vector<8x8xf32>
    %116 = math.exp %115 : vector<8x8xf32>
    %c3_72 = arith.constant 3 : index
    %c0_73 = arith.constant 0 : index
    %c0_74 = arith.constant 0 : index
    %117 = vector.load %arg12[%c3_72, %c0_73, %c0_74] : memref<4x8x1xf32, #tpu.memory_space<vmem>>, vector<1x8x1xf32>
    %118 = vector.shape_cast %117 : vector<1x8x1xf32> to vector<8x1xf32>
    %119 = arith.mulf %113, %118 : vector<8x1xf32>
    %cst_75 = arith.constant dense<0.000000e+00> : vector<8xf32>
    %120 = vector.multi_reduction <add>, %116, %cst_75 [1] : vector<8x8xf32> to vector<8xf32>
    %121 = vector.shape_cast %120 : vector<8xf32> to vector<8x1xf32>
    %122 = arith.addf %119, %121 : vector<8x1xf32>
    %c3_76 = arith.constant 3 : index
    %c0_77 = arith.constant 0 : index
    %c0_78 = arith.constant 0 : index
    %123 = vector.load %arg12[%c3_76, %c0_77, %c0_78] : memref<4x8x1xf32, #tpu.memory_space<vmem>>, vector<1x8x1xf32>
    %124 = vector.shape_cast %123 : vector<1x8x1xf32> to vector<8x1xf32>
    %125 = vector.shape_cast %122 : vector<8x1xf32> to vector<1x8x1xf32>
    tpu.vector_store %arg12[%c3_76, %c0_77, %c0_78], %125 {strides = array<i32>} : memref<4x8x1xf32, #tpu.memory_space<vmem>>, vector<1x8x1xf32>,
    %cst_79 = arith.constant dense<0.000000e+00> : vector<8x16xf32>
    %126 = tpu.matmul %116, %105, %cst_79 {dimension_numbers = #tpu.dot_dimension_numbers<[1], [0], [0], [1], [0, 0, 1, 1], [], []>} : vector<8x8xf32>, vector<8x16xf32>, vector<8x16xf32> -> vector<8x16xf32>
    %c0_80 = arith.constant 0 : index
    %c48_81 = arith.constant 48 : index
    %127 = vector.load %arg13[%c0_80, %c48_81] : memref<8x64xf32, #tpu.memory_space<vmem>>, vector<8x16xf32>
    %128 = vector.broadcast %113 : vector<8x1xf32> to vector<8x16xf32>
    %129 = arith.mulf %128, %127 : vector<8x16xf32>
    %130 = arith.addf %129, %126 : vector<8x16xf32>
    %c0_82 = arith.constant 0 : index
    %c48_83 = arith.constant 48 : index
    %131 = vector.load %arg13[%c0_82, %c48_83] : memref<8x64xf32, #tpu.memory_space<vmem>>, vector<8x16xf32>
    tpu.vector_store %arg13[%c0_82, %c48_83], %130 {strides = array<i32>} : memref<8x64xf32, #tpu.memory_space<vmem>>, vector<8x16xf32>,
    %c3_84 = arith.constant 3 : index
    %c0_85 = arith.constant 0 : index
    %c0_86 = arith.constant 0 : index
    %132 = vector.load %arg11[%c3_84, %c0_85, %c0_86] : memref<4x8x1xf32, #tpu.memory_space<vmem>>, vector<1x8x1xf32>
    %133 = vector.shape_cast %132 : vector<1x8x1xf32> to vector<8x1xf32>
    %134 = vector.shape_cast %111 : vector<8x1xf32> to vector<1x8x1xf32>
    tpu.vector_store %arg11[%c3_84, %c0_85, %c0_86], %134 {strides = array<i32>} : memref<4x8x1xf32, #tpu.memory_space<vmem>>, vector<1x8x1xf32>,
    %c0_i32_87 = arith.constant 0 : i32
    %135 = arith.cmpi eq, %arg2, %c0_i32_87 : i32
    %136 = arith.extui %135 : i1 to i32
    %c0_i32_88 = arith.constant 0 : i32
    %137 = arith.cmpi ne, %136, %c0_i32_88 : i32
    scf.if %137 {
      %c0_89 = arith.constant 0 : index
      %c0_90 = arith.constant 0 : index
      %138 = vector.load %arg13[%c0_89, %c0_90] : memref<8x64xf32, #tpu.memory_space<vmem>>, vector<8x16xf32>
      %c0_91 = arith.constant 0 : index
      %c0_92 = arith.constant 0 : index
      %c0_93 = arith.constant 0 : index
      %139 = vector.load %arg12[%c0_91, %c0_92, %c0_93] : memref<4x8x1xf32, #tpu.memory_space<vmem>>, vector<1x8x1xf32>
      %140 = vector.shape_cast %139 : vector<1x8x1xf32> to vector<8x1xf32>
      %141 = vector.broadcast %140 : vector<8x1xf32> to vector<8x16xf32>
      %142 = arith.divf %138, %141 : vector<8x16xf32>
      %c0_94 = arith.constant 0 : index
      %c0_95 = arith.constant 0 : index
      %143 = vector.load %arg13[%c0_94, %c0_95] : memref<8x64xf32, #tpu.memory_space<vmem>>, vector<8x16xf32>
      tpu.vector_store %arg13[%c0_94, %c0_95], %142 {strides = array<i32>} : memref<8x64xf32, #tpu.memory_space<vmem>>, vector<8x16xf32>,
      %c0_96 = arith.constant 0 : index
      %c16_97 = arith.constant 16 : index
      %144 = vector.load %arg13[%c0_96, %c16_97] : memref<8x64xf32, #tpu.memory_space<vmem>>, vector<8x16xf32>
      %c1_98 = arith.constant 1 : index
      %c0_99 = arith.constant 0 : index
      %c0_100 = arith.constant 0 : index
      %145 = vector.load %arg12[%c1_98, %c0_99, %c0_100] : memref<4x8x1xf32, #tpu.memory_space<vmem>>, vector<1x8x1xf32>
      %146 = vector.shape_cast %145 : vector<1x8x1xf32> to vector<8x1xf32>
      %147 = vector.broadcast %146 : vector<8x1xf32> to vector<8x16xf32>
      %148 = arith.divf %144, %147 : vector<8x16xf32>
      %c0_101 = arith.constant 0 : index
      %c16_102 = arith.constant 16 : index
      %149 = vector.load %arg13[%c0_101, %c16_102] : memref<8x64xf32, #tpu.memory_space<vmem>>, vector<8x16xf32>
      tpu.vector_store %arg13[%c0_101, %c16_102], %148 {strides = array<i32>} : memref<8x64xf32, #tpu.memory_space<vmem>>, vector<8x16xf32>,
      %c0_103 = arith.constant 0 : index
      %c32_104 = arith.constant 32 : index
      %150 = vector.load %arg13[%c0_103, %c32_104] : memref<8x64xf32, #tpu.memory_space<vmem>>, vector<8x16xf32>
      %c2_105 = arith.constant 2 : index
      %c0_106 = arith.constant 0 : index
      %c0_107 = arith.constant 0 : index
      %151 = vector.load %arg12[%c2_105, %c0_106, %c0_107] : memref<4x8x1xf32, #tpu.memory_space<vmem>>, vector<1x8x1xf32>
      %152 = vector.shape_cast %151 : vector<1x8x1xf32> to vector<8x1xf32>
      %153 = vector.broadcast %152 : vector<8x1xf32> to vector<8x16xf32>
      %154 = arith.divf %150, %153 : vector<8x16xf32>
      %c0_108 = arith.constant 0 : index
      %c32_109 = arith.constant 32 : index
      %155 = vector.load %arg13[%c0_108, %c32_109] : memref<8x64xf32, #tpu.memory_space<vmem>>, vector<8x16xf32>
      tpu.vector_store %arg13[%c0_108, %c32_109], %154 {strides = array<i32>} : memref<8x64xf32, #tpu.memory_space<vmem>>, vector<8x16xf32>,
      %c0_110 = arith.constant 0 : index
      %c48_111 = arith.constant 48 : index
      %156 = vector.load %arg13[%c0_110, %c48_111] : memref<8x64xf32, #tpu.memory_space<vmem>>, vector<8x16xf32>
      %c3_112 = arith.constant 3 : index
      %c0_113 = arith.constant 0 : index
      %c0_114 = arith.constant 0 : index
      %157 = vector.load %arg12[%c3_112, %c0_113, %c0_114] : memref<4x8x1xf32, #tpu.memory_space<vmem>>, vector<1x8x1xf32>
      %158 = vector.shape_cast %157 : vector<1x8x1xf32> to vector<8x1xf32>
      %159 = vector.broadcast %158 : vector<8x1xf32> to vector<8x16xf32>
      %160 = arith.divf %156, %159 : vector<8x16xf32>
      %c0_115 = arith.constant 0 : index
      %c48_116 = arith.constant 48 : index
      %161 = vector.load %arg13[%c0_115, %c48_116] : memref<8x64xf32, #tpu.memory_space<vmem>>, vector<8x16xf32>
      tpu.vector_store %arg13[%c0_115, %c48_116], %160 {strides = array<i32>} : memref<8x64xf32, #tpu.memory_space<vmem>>, vector<8x16xf32>,
      %c0_117 = arith.constant 0 : index
      %c0_118 = arith.constant 0 : index
      %162 = vector.load %arg13[%c0_117, %c0_118] : memref<8x64xf32, #tpu.memory_space<vmem>>, vector<8x64xf32>
      %c0_119 = arith.constant 0 : index
      %c0_120 = arith.constant 0 : index
      %163 = vector.load %arg7[%c0_119, %c0_120] : memref<64x128xf32, #tpu.memory_space<vmem>>, vector<64x128xf32>
      %cst_121 = arith.constant dense<0.000000e+00> : vector<8x128xf32>
      %164 = tpu.matmul %162, %163, %cst_121 {dimension_numbers = #tpu.dot_dimension_numbers<[1], [0], [0], [1], [0, 0, 1, 1], [], []>} : vector<8x64xf32>, vector<64x128xf32>, vector<8x128xf32> -> vector<8x128xf32>
      %c0_122 = arith.constant 0 : index
      %c0_123 = arith.constant 0 : index
      %165 = vector.load %arg8[%c0_122, %c0_123] : memref<1x128xf32, #tpu.memory_space<vmem>>, vector<1x128xf32>
      %166 = vector.broadcast %165 : vector<1x128xf32> to vector<8x128xf32>
      %167 = arith.addf %164, %166 : vector<8x128xf32>
      %c0_124 = arith.constant 0 : index
      %c0_125 = arith.constant 0 : index
      %c0_126 = arith.constant 0 : index
      %168 = vector.load %arg9[%c0_124, %c0_125, %c0_126] : memref<1x8x128xf32, #tpu.memory_space<vmem>>, vector<1x8x128xf32>
      %169 = vector.shape_cast %168 : vector<1x8x128xf32> to vector<8x128xf32>
      %170 = vector.shape_cast %167 : vector<8x128xf32> to vector<1x8x128xf32>
      tpu.vector_store %arg9[%c0_124, %c0_125, %c0_126], %170 {strides = array<i32>} : memref<1x8x128xf32, #tpu.memory_space<vmem>>, vector<1x8x128xf32>,
    } else {
    }
    return
  }
  func.func @transform_0(%arg0: i32, %arg1: i32, %arg2: i32) -> (i32, i32, i32) {
    %c0_i32 = arith.constant 0 : i32
    %c0_i32_0 = arith.constant 0 : i32
    return %arg0, %arg1, %c0_i32 : i32, i32, i32
  }
  func.func @transform_1(%arg0: i32, %arg1: i32, %arg2: i32) -> (i32, i32, i32) {
    %c0_i32 = arith.constant 0 : i32
    %c0_i32_0 = arith.constant 0 : i32
    return %arg0, %arg2, %c0_i32 : i32, i32, i32
  }
  func.func @transform_2(%arg0: i32, %arg1: i32, %arg2: i32) -> (i32, i32) {
    %c0_i32 = arith.constant 0 : i32
    %c0_i32_0 = arith.constant 0 : i32
    %c0_i32_1 = arith.constant 0 : i32
    return %c0_i32, %c0_i32_0 : i32, i32
  }
  func.func @transform_3(%arg0: i32, %arg1: i32, %arg2: i32) -> (i32, i32) {
    %c0_i32 = arith.constant 0 : i32
    %c0_i32_0 = arith.constant 0 : i32
    %c0_i32_1 = arith.constant 0 : i32
    return %c0_i32, %c0_i32_0 : i32, i32
  }
  func.func @transform_4(%arg0: i32, %arg1: i32, %arg2: i32) -> (i32, i32) {
    %c0_i32 = arith.constant 0 : i32
    %c0_i32_0 = arith.constant 0 : i32
    %c0_i32_1 = arith.constant 0 : i32
    return %c0_i32, %c0_i32_0 : i32, i32
  }
  func.func @transform_5(%arg0: i32, %arg1: i32, %arg2: i32) -> (i32, i32) {
    %c0_i32 = arith.constant 0 : i32
    %c0_i32_0 = arith.constant 0 : i32
    %c0_i32_1 = arith.constant 0 : i32
    return %c0_i32, %c0_i32_0 : i32, i32
  }
  func.func @transform_6(%arg0: i32, %arg1: i32, %arg2: i32) -> (i32, i32, i32) {
    %c0_i32 = arith.constant 0 : i32
    %c0_i32_0 = arith.constant 0 : i32
    return %arg0, %arg1, %c0_i32 : i32, i32, i32
  }
}

</mosaic_0001>

<llo_original>
// kernel: tpu_custom_call.1
$region0: #{tpu_custom_call.1}
  #allocation0 [shape = 'u32[]', space=smem, size = 0x4, offset = 0x4, fixed_abs, tag = 'smem constant byte address 0x4 - core index']
  #allocation1 [shape = 'u32[144,128]{1,0:T(1,128)}', space=vmem, size = 0x12000, scoped, tag = 'internal scratch']
  #allocation2 [shape = 'f32[8,64]{1,0:T(8,128)}', space=vmem, size = 0x1000, scoped, tag = 'scratch operand']
  #allocation3 [shape = 'f32[4,8,1]{2,1,0:T(8,128)}', space=vmem, size = 0x4000, scoped, tag = 'scratch operand']
  #allocation4 [shape = 'f32[4,8,1]{2,1,0:T(8,128)}', space=vmem, size = 0x4000, scoped, tag = 'scratch operand']
  #allocation5 [shape = 'f32[8,64]{1,0:T(8,128)}', space=vmem, size = 0x1000, scoped, tag = 'scratch operand']
  %s0 = inlined_call_operand.hbm [shape: f32[2,8,32], index: 0, kind: input, shape index: {}]
  %s1 = inlined_call_operand.hbm [shape: f32[2,8,32], index: 1, kind: input, shape index: {}]
  %s2 = inlined_call_operand.hbm [shape: f32[32,64], index: 2, kind: input, shape index: {}]
  %s3 = inlined_call_operand.hbm [shape: f32[32,128], index: 3, kind: input, shape index: {}]
  %s4 = inlined_call_operand.hbm [shape: f32[64,128], index: 4, kind: input, shape index: {}]
  %s5 = inlined_call_operand.vmem [shape: f32[1,128], index: 5, kind: input, shape index: {}]
  %s6 = inlined_call_operand.hbm [shape: f32[2,8,128], index: 6, kind: output, shape index: {}]
  %s7 = sld [smem:[#allocation0]]
  $region85: #{tpu_custom_call.1} parent=0
    _
  %s9 = ssub.s32 1, %s7
  %s10 = scalar_select 0, %s9, %s7
  $region1: #{tpu_custom_call.1} parent=0
    #allocation6 [shape = 'u8[8192]{0}', space=vmem, size = 0x2000, scoped, tag = 'input window, operand 0']
    #allocation7 [shape = 's32[2]{0}', space=sflag, size = 0x8, scoped, tag = 'scoped memory for tpu_custom_call.1']
    #allocation8 [shape = 's32[2]{0}', space=sflag, size = 0x8, scoped, tag = 'scoped memory for tpu_custom_call.1']
    #allocation9 [shape = 'u8[8192]{0}', space=vmem, size = 0x2000, scoped, tag = 'input window, operand 1']
    #allocation10 [shape = 's32[2]{0}', space=sflag, size = 0x8, scoped, tag = 'scoped memory for tpu_custom_call.1']
    #allocation11 [shape = 'u8[16384]{0}', space=vmem, size = 0x4000, scoped, tag = 'input window, operand 2, single buffered']
    #allocation12 [shape = 'u8[16384]{0}', space=vmem, size = 0x4000, scoped, tag = 'input window, operand 3, single buffered']
    #allocation13 [shape = 's32[1]{0}', space=sflag, size = 0x4, scoped, tag = 'scoped memory for tpu_custom_call.1']
    #allocation14 [shape = 'u8[32768]{0}', space=vmem, size = 0x8000, scoped, tag = 'input window, operand 4, single buffered']
    #allocation15 [shape = 'u8[8192]{0}', space=vmem, size = 0x2000, scoped, tag = 'output window, operand 0']
    %11 = vsyncpa [#allocation7], 0
    %s12 = scalar_lea.sflag [#allocation7], 1
    %13 = vsyncpa %s12, 0
    %14 = vsyncpa [#allocation10], 0
    %s15 = scalar_lea.sflag [#allocation10], 1
    %16 = vsyncpa %s15, 0
    %17 = vsyncpa [#allocation13], 0
    %18 = vsyncpa [#allocation8], 0
    %s19 = scalar_lea.sflag [#allocation8], 1
    %20 = vsyncpa %s19, 0
    loop: start=0, step=1, limit=4
    $region2: #{tpu_custom_call.1} parent=1 // loop_pre_header
      _
    $region3: #{tpu_custom_call.1} parent=1 // loop_header
      %s22 = sphi 0, %s26
      %p23 = scmp.ge.s32.totalorder %s22, 4
      %s29 = sphi 0, %s48
      %s30 = sphi 0, %s44
      %s31 = sphi 0, %s40
      %s32 = sphi 0, %s29
      %s33 = sphi 0, %s30
      %s34 = sphi 0, %s31
      %s35 = sphi 0, %s32
      %s36 = sphi 0, %s33
      %s37 = sphi 0, %s34
      %s53 = sphi 0, %s55
      %s56 = sphi 0, %s53
      %s57 = sphi 0, %s56
      %s73 = sphi 0, %s57
      %s81 = sphi 0, %s83
      %s84 = sphi 0, %s81
      %s85 = sphi 0, %s84
      %s101 = sphi 0, %s85
      %s105 = sphi 0, %s105
      %s107 = sphi 0, %s105
      %s108 = sphi 0, %s107
      %s122 = sphi 0, %s108
      %s126 = sphi 0, %s126
      %s128 = sphi 0, %s126
      %s129 = sphi 0, %s128
      %s143 = sphi 0, %s129
      %s147 = sphi 0, %s147
      %s149 = sphi 0, %s147
      %s150 = sphi 0, %s149
      %s164 = sphi 0, %s150
      %s168 = sphi 0, %s168
      %s170 = sphi 0, %s168
      %s171 = sphi 0, %s170
      %s185 = sphi 0, %s171
      %s193 = sphi 0, %s195
      %s196 = sphi 0, %s193
      %s197 = sphi 0, %s196
      %s213 = sphi 0, %s197
    $region4: #{tpu_custom_call.1} parent=1 // loop_header_branch
      %25 = sbr.rel (%p23) target = $region8
    $region5: #{tpu_custom_call.1} parent=1 // loop_body
      %s27 = ssub.s32 %s22, 1
      %s28 = ssub.s32 %s22, 2
      %s38 = sadd.s32 1, %s31
      %p39 = scmp.ge.s32.totalorder %s38, 1
      %s40 = scalar_select %p39, 0, %s38
      %s41 = sadd.s32 1, %s30
      %s42 = scalar_select %p39, %s41, %s30
      %p43 = scmp.ge.s32.totalorder %s42, 1
      %s44 = scalar_select %p43, 0, %s42
      %s45 = sadd.s32 1, %s29
      %s46 = scalar_select %p43, %s45, %s29
      %p47 = scmp.ge.s32.totalorder %s46, 2
      %s48 = scalar_select %p47, 0, %s46
      %s49 = ssub.s32 %s29, %s48
      %s50 = ssub.s32 %s30, %s44
      %s51 = sor.u32 %s49, %s50
      %p52 = scmp.eq.s32.totalorder %s51, 0
      %s54 = sadd.s32 %s53, 1
      %s55 = scalar_select %p52, %s53, %s54
      %p58 = pneg %p52
      %p59 = scmp.eq.s32.totalorder %s22, 1
      %p60 = por %p58, %p59
      %p61 = scmp.ne.s32.totalorder %s53, %s56
      %p62 = scmp.eq.s32.totalorder %s22, 0
      %p63 = por %p61, %p62
      %p64 = scmp.ne.s32.totalorder %s53, %s56
      %p65 = scmp.eq.s32.totalorder %s27, 1
      %p66 = por %p64, %p65
      %p67 = scmp.ne.s32.totalorder %s56, %s57
      %p68 = scmp.eq.s32.totalorder %s27, 0
      %p69 = por %p67, %p68
      %p70 = scmp.ne.s32.totalorder %s56, %s57
      %p71 = scmp.eq.s32.totalorder %s28, 1
      %p72 = por %p70, %p71
      %p74 = scmp.ne.s32.totalorder %s57, %s73
      %p75 = scmp.eq.s32.totalorder %s28, 0
      %p76 = por %p74, %p75
      %s77 = ssub.s32 %s29, %s48
      %s78 = ssub.s32 %s31, %s40
      %s79 = sor.u32 %s77, %s78
      %p80 = scmp.eq.s32.totalorder %s79, 0
      %s82 = sadd.s32 %s81, 1
      %s83 = scalar_select %p80, %s81, %s82
      %p86 = pneg %p80
      %p87 = scmp.eq.s32.totalorder %s22, 1
      %p88 = por %p86, %p87
      %p89 = scmp.ne.s32.totalorder %s81, %s84
      %p90 = scmp.eq.s32.totalorder %s22, 0
      %p91 = por %p89, %p90
      %p92 = scmp.ne.s32.totalorder %s81, %s84
      %p93 = scmp.eq.s32.totalorder %s27, 1
      %p94 = por %p92, %p93
      %p95 = scmp.ne.s32.totalorder %s84, %s85
      %p96 = scmp.eq.s32.totalorder %s27, 0
      %p97 = por %p95, %p96
      %p98 = scmp.ne.s32.totalorder %s84, %s85
      %p99 = scmp.eq.s32.totalorder %s28, 1
      %p100 = por %p98, %p99
      %p102 = scmp.ne.s32.totalorder %s85, %s101
      %p103 = scmp.eq.s32.totalorder %s28, 0
      %p104 = por %p102, %p103
      %s106 = sadd.s32 %s105, 1
      %p109 = scmp.eq.s32.totalorder %s22, 1
      %p110 = scmp.ne.s32.totalorder %s105, %s107
      %p111 = scmp.eq.s32.totalorder %s22, 0
      %p112 = por %p110, %p111
      %p113 = scmp.ne.s32.totalorder %s105, %s107
      %p114 = scmp.eq.s32.totalorder %s27, 1
      %p115 = por %p113, %p114
      %p116 = scmp.ne.s32.totalorder %s107, %s108
      %p117 = scmp.eq.s32.totalorder %s27, 0
      %p118 = por %p116, %p117
      %p119 = scmp.ne.s32.totalorder %s107, %s108
      %p120 = scmp.eq.s32.totalorder %s28, 1
      %p121 = por %p119, %p120
      %p123 = scmp.ne.s32.totalorder %s108, %s122
      %p124 = scmp.eq.s32.totalorder %s28, 0
      %p125 = por %p123, %p124
      %s127 = sadd.s32 %s126, 1
      %p130 = scmp.eq.s32.totalorder %s22, 1
      %p131 = scmp.ne.s32.totalorder %s126, %s128
      %p132 = scmp.eq.s32.totalorder %s22, 0
      %p133 = por %p131, %p132
      %p134 = scmp.ne.s32.totalorder %s126, %s128
      %p135 = scmp.eq.s32.totalorder %s27, 1
      %p136 = por %p134, %p135
      %p137 = scmp.ne.s32.totalorder %s128, %s129
      %p138 = scmp.eq.s32.totalorder %s27, 0
      %p139 = por %p137, %p138
      %p140 = scmp.ne.s32.totalorder %s128, %s129
      %p141 = scmp.eq.s32.totalorder %s28, 1
      %p142 = por %p140, %p141
      %p144 = scmp.ne.s32.totalorder %s129, %s143
      %p145 = scmp.eq.s32.totalorder %s28, 0
      %p146 = por %p144, %p145
      %s148 = sadd.s32 %s147, 1
      %p151 = scmp.eq.s32.totalorder %s22, 1
      %p152 = scmp.ne.s32.totalorder %s147, %s149
      %p153 = scmp.eq.s32.totalorder %s22, 0
      %p154 = por %p152, %p153
      %p155 = scmp.ne.s32.totalorder %s147, %s149
      %p156 = scmp.eq.s32.totalorder %s27, 1
      %p157 = por %p155, %p156
      %p158 = scmp.ne.s32.totalorder %s149, %s150
      %p159 = scmp.eq.s32.totalorder %s27, 0
      %p160 = por %p158, %p159
      %p161 = scmp.ne.s32.totalorder %s149, %s150
      %p162 = scmp.eq.s32.totalorder %s28, 1
      %p163 = por %p161, %p162
      %p165 = scmp.ne.s32.totalorder %s150, %s164
      %p166 = scmp.eq.s32.totalorder %s28, 0
      %p167 = por %p165, %p166
      %s169 = sadd.s32 %s168, 1
      %p172 = scmp.eq.s32.totalorder %s22, 1
      %p173 = scmp.ne.s32.totalorder %s168, %s170
      %p174 = scmp.eq.s32.totalorder %s22, 0
      %p175 = por %p173, %p174
      %p176 = scmp.ne.s32.totalorder %s168, %s170
      %p177 = scmp.eq.s32.totalorder %s27, 1
      %p178 = por %p176, %p177
      %p179 = scmp.ne.s32.totalorder %s170, %s171
      %p180 = scmp.eq.s32.totalorder %s27, 0
      %p181 = por %p179, %p180
      %p182 = scmp.ne.s32.totalorder %s170, %s171
      %p183 = scmp.eq.s32.totalorder %s28, 1
      %p184 = por %p182, %p183
      %p186 = scmp.ne.s32.totalorder %s171, %s185
      %p187 = scmp.eq.s32.totalorder %s28, 0
      %p188 = por %p186, %p187
      %s189 = ssub.s32 %s29, %s48
      %s190 = ssub.s32 %s30, %s44
      %s191 = sor.u32 %s189, %s190
      %p192 = scmp.eq.s32.totalorder %s191, 0
      %s194 = sadd.s32 %s193, 1
      %s195 = scalar_select %p192, %s193, %s194
      %p198 = pneg %p192
      %p199 = scmp.eq.s32.totalorder %s22, 1
      %p200 = por %p198, %p199
      %p201 = scmp.ne.s32.totalorder %s193, %s196
      %p202 = scmp.eq.s32.totalorder %s22, 0
      %p203 = por %p201, %p202
      %p204 = scmp.ne.s32.totalorder %s193, %s196
      %p205 = scmp.eq.s32.totalorder %s27, 1
      %p206 = por %p204, %p205
      %p207 = scmp.ne.s32.totalorder %s196, %s197
      %p208 = scmp.eq.s32.totalorder %s27, 0
      %p209 = por %p207, %p208
      %p210 = scmp.ne.s32.totalorder %s196, %s197
      %p211 = scmp.eq.s32.totalorder %s28, 1
      %p212 = por %p210, %p211
      %p214 = scmp.ne.s32.totalorder %s197, %s213
      %p215 = scmp.eq.s32.totalorder %s28, 0
      %p216 = por %p214, %p215
      %p217 = scmp.le.s32.totalorder 1, %s22
      %p218 = scmp.lt.s32.totalorder %s22, 3
      %p219 = pnand %p217, %p218
      %p220 = pneg %p219
      // Predicated region
      $region9: #{tpu_custom_call.1} parent=5 // pred_check
        _
      $region10: #{tpu_custom_call.1} parent=5 // pred_check_branch
        %222 = sbr.rel (%p219) target = $region12
      $region11: #{tpu_custom_call.1} parent=5 // pred_region
        %s223 = ssub.s32 %s22, 1
        // Predicated region
        $region13: #{tpu_custom_call.1} parent=11 // pred_check
          %p224 = pneg %p118
        $region14: #{tpu_custom_call.1} parent=11 // pred_check_branch
          %226 = sbr.rel (%p224) target = $region16
        $region15: #{tpu_custom_call.1} parent=11 // pred_region
          %s228 = ssub.s32 512, 512
          %229 = vsyncadd [#allocation10], %s228
          %s230 = sshll.u32 [#allocation11], 4
          %s231 = int_to_ptr.vmem [resolvable:$true] %s230
          %236 = dma.hbm_to_vmem [thread:$0]  %s2, 512, %s231, [#allocation10], 128, 128, 8
        $region16: #{tpu_custom_call.1} parent=11 // pred_fallthru
          _
        // Predicated region
        $region17: #{tpu_custom_call.1} parent=11 // pred_check
          %p237 = pneg %p139
        $region18: #{tpu_custom_call.1} parent=11 // pred_check_branch
          %239 = sbr.rel (%p237) target = $region20
        $region19: #{tpu_custom_call.1} parent=11 // pred_region
          %s241 = ssub.s32 512, 512
          %242 = vsyncadd [#allocation13], %s241
          %s243 = sshll.u32 [#allocation12], 4
          %s244 = int_to_ptr.vmem [resolvable:$true] %s243
          %249 = dma.hbm_to_vmem [thread:$0]  %s3, 512, %s244, [#allocation13], 128, 128, 8
        $region20: #{tpu_custom_call.1} parent=11 // pred_fallthru
          _
        // Predicated region
        $region21: #{tpu_custom_call.1} parent=11 // pred_check
          %p250 = pneg %p160
        $region22: #{tpu_custom_call.1} parent=11 // pred_check_branch
          %252 = sbr.rel (%p250) target = $region24
        $region23: #{tpu_custom_call.1} parent=11 // pred_region
          %s254 = ssub.s32 1024, 1024
          %255 = vsyncadd [#allocation13], %s254
          %s256 = sshll.u32 [#allocation14], 4
          %s257 = int_to_ptr.vmem [resolvable:$true] %s256
          %262 = dma.hbm_to_vmem [thread:$0]  %s4, 1024, %s257, [#allocation13], 128, 128, 8
        $region24: #{tpu_custom_call.1} parent=11 // pred_fallthru
          _
        // Predicated region
        $region25: #{tpu_custom_call.1} parent=11 // pred_check
          %p263 = pneg %p181
        $region26: #{tpu_custom_call.1} parent=11 // pred_check_branch
          %265 = sbr.rel (%p263) target = $region28
        $region27: #{tpu_custom_call.1} parent=11 // pred_region
          _
        $region28: #{tpu_custom_call.1} parent=11 // pred_fallthru
          _
      $region12: #{tpu_custom_call.1} parent=5 // pred_fallthru
        _
      %p266 = scmp.lt.s32.totalorder %s22, 2
      // Predicated region
      $region29: #{tpu_custom_call.1} parent=5 // pred_check
        %p267 = pneg %p266
      $region30: #{tpu_custom_call.1} parent=5 // pred_check_branch
        %269 = sbr.rel (%p267) target = $region32
      $region31: #{tpu_custom_call.1} parent=5 // pred_region
        // Predicated region
        $region33: #{tpu_custom_call.1} parent=31 // pred_check
          %p270 = pneg %p63
        $region34: #{tpu_custom_call.1} parent=31 // pred_check_branch
          %272 = sbr.rel (%p270) target = $region36
        $region35: #{tpu_custom_call.1} parent=31 // pred_region
          %s273 = sand.u32 %s53, 1
          %s274 = scalar_lea.sflag [#allocation7], %s273
          %s275 = sand.u32 %s53, 1
          %s276 = smul.addr %s275, 8
          %s277 = scalar_lea.vmem [#allocation6], %s276
          %s279 = ssub.s32 128, 128
          %280 = vsyncadd %s274, %s279
          %s281 = sadd.s32 %s30, %s29
          %s282 = smul.addr %s281, 128
          %s283 = scalar_lea.hbm %s0, %s282
          %s285 = sshll.u32 %s277, 4
          %s286 = int_to_ptr.vmem [resolvable:$true] %s285
          %288 = dma.hbm_to_vmem [thread:$0]  %s283, 128, %s286, %s274
        $region36: #{tpu_custom_call.1} parent=31 // pred_fallthru
          _
        // Predicated region
        $region37: #{tpu_custom_call.1} parent=31 // pred_check
          %p289 = pneg %p91
        $region38: #{tpu_custom_call.1} parent=31 // pred_check_branch
          %291 = sbr.rel (%p289) target = $region40
        $region39: #{tpu_custom_call.1} parent=31 // pred_region
          %s292 = sand.u32 %s22, 1
          %s293 = scalar_lea.sflag [#allocation10], %s292
          %s294 = sand.u32 %s81, 1
          %s295 = smul.addr %s294, 8
          %s296 = scalar_lea.vmem [#allocation9], %s295
          %s298 = ssub.s32 128, 128
          %299 = vsyncadd %s293, %s298
          %s300 = sadd.s32 %s31, %s29
          %s301 = smul.addr %s300, 128
          %s302 = scalar_lea.hbm %s1, %s301
          %s304 = sshll.u32 %s296, 4
          %s305 = int_to_ptr.vmem [resolvable:$true] %s304
          %307 = dma.hbm_to_vmem [thread:$0]  %s302, 128, %s305, %s293
        $region40: #{tpu_custom_call.1} parent=31 // pred_fallthru
          _
      $region32: #{tpu_custom_call.1} parent=5 // pred_fallthru
        _
      %p308 = scmp.le.s32.totalorder 1, %s22
      %p309 = scmp.lt.s32.totalorder %s22, 3
      %p310 = pnand %p308, %p309
      %p311 = pneg %p310
      // Predicated region
      $region41: #{tpu_custom_call.1} parent=5 // pred_check
        _
      $region42: #{tpu_custom_call.1} parent=5 // pred_check_branch
        %313 = sbr.rel (%p310) target = $region44
      $region43: #{tpu_custom_call.1} parent=5 // pred_region
        %s314 = ssub.s32 %s22, 1
        %s315 = sand.u32 %s56, 1
        %s316 = scalar_lea.sflag [#allocation7], %s315
        %s317 = sand.u32 %s56, 1
        %s318 = smul.addr %s317, 8
        %s319 = scalar_lea.vmem [#allocation6], %s318
        // Predicated region
        $region45: #{tpu_custom_call.1} parent=43 // pred_check
          %p320 = pneg %p69
        $region46: #{tpu_custom_call.1} parent=43 // pred_check_branch
          %322 = sbr.rel (%p320) target = $region48
        $region47: #{tpu_custom_call.1} parent=43 // pred_region
          %323 = dma.done %s316, 128
        $region48: #{tpu_custom_call.1} parent=43 // pred_fallthru
          _
        %s324 = sand.u32 %s27, 1
        %s325 = scalar_lea.sflag [#allocation10], %s324
        %s326 = sand.u32 %s84, 1
        %s327 = smul.addr %s326, 8
        %s328 = scalar_lea.vmem [#allocation9], %s327
        // Predicated region
        $region49: #{tpu_custom_call.1} parent=43 // pred_check
          %p329 = pneg %p97
        $region50: #{tpu_custom_call.1} parent=43 // pred_check_branch
          %331 = sbr.rel (%p329) target = $region52
        $region51: #{tpu_custom_call.1} parent=43 // pred_region
          %332 = dma.done %s325, 128
        $region52: #{tpu_custom_call.1} parent=43 // pred_fallthru
          _
        // Predicated region
        $region53: #{tpu_custom_call.1} parent=43 // pred_check
          %p333 = pneg %p118
        $region54: #{tpu_custom_call.1} parent=43 // pred_check_branch
          %335 = sbr.rel (%p333) target = $region56
        $region55: #{tpu_custom_call.1} parent=43 // pred_region
          %336 = dma.done [#allocation10], 512
        $region56: #{tpu_custom_call.1} parent=43 // pred_fallthru
          _
        // Predicated region
        $region57: #{tpu_custom_call.1} parent=43 // pred_check
          %p337 = pneg %p139
        $region58: #{tpu_custom_call.1} parent=43 // pred_check_branch
          %339 = sbr.rel (%p337) target = $region60
        $region59: #{tpu_custom_call.1} parent=43 // pred_region
          %340 = dma.done [#allocation13], 512
        $region60: #{tpu_custom_call.1} parent=43 // pred_fallthru
          _
        // Predicated region
        $region61: #{tpu_custom_call.1} parent=43 // pred_check
          %p341 = pneg %p160
        $region62: #{tpu_custom_call.1} parent=43 // pred_check_branch
          %343 = sbr.rel (%p341) target = $region64
        $region63: #{tpu_custom_call.1} parent=43 // pred_region
          %344 = dma.done [#allocation13], 1024
        $region64: #{tpu_custom_call.1} parent=43 // pred_fallthru
          _
        %s345 = sand.u32 %s56, 1
        %s346 = scalar_lea.sflag [#allocation7], %s345
        %s347 = sand.u32 %s56, 1
        %s348 = smul.addr %s347, 8
        %s349 = scalar_lea.vmem [#allocation6], %s348
        %p350 = pneg %p69
        %p351 = pneg %p66
        %s352 = sand.u32 %s27, 1
        %s353 = scalar_lea.sflag [#allocation10], %s352
        %s354 = sand.u32 %s84, 1
        %s355 = smul.addr %s354, 8
        %s356 = scalar_lea.vmem [#allocation9], %s355
        %p357 = pneg %p97
        %p358 = pneg %p94
        %p359 = pneg %p118
        %p360 = pneg %p115
        %p361 = pneg %p139
        %p362 = pneg %p136
        %p363 = pneg %p160
        %p364 = pneg %p157
        %p365 = pneg %p181
        %p366 = pneg %p178
        %p367 = pneg %p209
        %p368 = pneg %p206
        %s369 = sand.u32 %s196, 1
        %s370 = scalar_lea.sflag [#allocation8], %s369
        %s371 = sand.u32 %s196, 1
        %s372 = smul.addr %s371, 8
        %s373 = scalar_lea.vmem [#allocation15], %s372
        %p374 = scmp.eq.s32.totalorder %s34, 0
        // Predicated region
        $region65: #{tpu_custom_call.1} parent=43 // pred_check
          %p375 = pneg %p374
        $region66: #{tpu_custom_call.1} parent=43 // pred_check_branch
          %377 = sbr.rel (%p375) target = $region68
        $region67: #{tpu_custom_call.1} parent=43 // pred_region
          %v378 = vld [vmem:[%s319] sm:$0xff]
          %v379 = vld [vmem:[#allocation11] sm:$0xff]
          %v380 = vld [vmem:[#allocation11 + $0x8] sm:$0xff]
          %v381 = vld [vmem:[#allocation11 + $0x10] sm:$0xff]
          %v382 = vld [vmem:[#allocation11 + $0x18] sm:$0xff]
          %vm383 = vcmask 261120
          %v385 = vsel %vm383, %v378, 0
          %387 = vmatprep.subr.mxu0 0.0
          %388 = vmatpush1.msra.mxu0 %v379
          %389 = vmatprep.subr.mxu0 0.0
          %390 = vmatpush1.msra.mxu0 %v380
          %391 = vmatprep.subr.mxu0 0.0
          %392 = vmatpush1.msra.mxu0 %v381
          %393 = vmatprep.subr.mxu0 0.0
          %394 = vmatpush1.msra.mxu0 %v382
          %395 = vmatprep.subr.mxu0 0.0
          %396 = vmatpush1.msra.mxu0 0.0
          %397 = vmatprep.subr.mxu0 0.0
          %398 = vmatpush1.msra.mxu0 0.0
          %399 = vmatprep.subr.mxu0 0.0
          %400 = vmatpush1.msra.mxu0 0.0
          %401 = vmatprep.subr.mxu0 0.0
          %402 = vmatpush1.msra.mxu0 0.0
          %403 = vmatprep.subr.mxu0 0.0
          %404 = vmatpush1.msra.mxu0 0.0
          %405 = vmatprep.subr.mxu0 0.0
          %406 = vmatpush1.msra.mxu0 0.0
          %407 = vmatprep.subr.mxu0 0.0
          %408 = vmatpush1.msra.mxu0 0.0
          %409 = vmatprep.subr.mxu0 0.0
          %410 = vmatpush1.msra.mxu0 0.0
          %411 = vmatprep.subr.mxu0 0.0
          %412 = vmatpush1.msra.mxu0 0.0
          %413 = vmatprep.subr.mxu0 0.0
          %414 = vmatpush1.msra.mxu0 0.0
          %415 = vmatprep.subr.mxu0 0.0
          %416 = vmatpush1.msra.mxu0 0.0
          %417 = vmatprep.subr.mxu0 0.0
          %418 = vmatpush1.msra.mxu0 0.0
          %419 = vmatprep.subr.mxu0 0.0
          %420 = vmatpush1.msra.mxu0 0.0
          %421 = vmatprep.subr.mxu0 0.0
          %422 = vmatpush1.msra.mxu0 0.0
          %423 = vmatprep.subr.mxu0 0.0
          %424 = vmatpush1.msra.mxu0 0.0
          %425 = vmatprep.subr.mxu0 0.0
          %426 = vmatpush1.msra.mxu0 0.0
          %427 = vmatprep.subr.mxu0 0.0
          %428 = vmatpush1.msra.mxu0 0.0
          %429 = vmatprep.subr.mxu0 0.0
          %430 = vmatpush1.msra.mxu0 0.0
          %431 = vmatprep.subr.mxu0 0.0
          %432 = vmatpush1.msra.mxu0 0.0
          %433 = vmatprep.subr.mxu0 0.0
          %434 = vmatpush1.msra.mxu0 0.0
          %435 = vmatprep.subr.mxu0 0.0
          %436 = vmatpush1.msra.mxu0 0.0
          %437 = vmatprep.subr.mxu0 0.0
          %438 = vmatpush1.msra.mxu0 0.0
          %439 = vmatprep.subr.mxu0 0.0
          %440 = vmatpush1.msra.mxu0 0.0
          %441 = vmatprep.subr.mxu0 0.0
          %442 = vmatpush1.msra.mxu0 0.0
          %443 = vmatprep.subr.mxu0 0.0
          %444 = vmatpush1.msra.mxu0 0.0
          %445 = vmatprep.subr.mxu0 0.0
          %446 = vmatpush1.msra.mxu0 0.0
          %447 = vmatprep.subr.mxu0 0.0
          %448 = vmatpush1.msra.mxu0 0.0
          %449 = vmatprep.subr.mxu0 0.0
          %450 = vmatpush1.msra.mxu0 0.0
          %451 = vmatprep.mubr.f32.mxu0 0.0
          %452 = vmatmul.mubr.f32.gmra.mrb[0].mxu0 %v385
          %v453 = vpop.f32.mrb[0].mxu0
          %v454 = vadd.f32 0.0, %v453
          %v455 = vpop.f32.mrb[0].mxu0
          %456 = vdwg.mxu0
          %vm457 = vcmask 523264
          %458 = vst.msk [vmem:[#allocation2] sm:$0xff] %vm457, %v454
          %vm459 = vcmask 7168
          %460 = vst.msk [vmem:[#allocation3] sm:$0xff] %vm459, -inf
          %461 = vst.msk [vmem:[#allocation3 + $0x8] sm:$0xff] %vm459, -inf
          %462 = vst.msk [vmem:[#allocation3 + $0x10] sm:$0xff] %vm459, -inf
          %463 = vst.msk [vmem:[#allocation3 + $0x18] sm:$0xff] %vm459, -inf
          %464 = vst.msk [vmem:[#allocation4] sm:$0xff] %vm459, 0.0
          %465 = vst.msk [vmem:[#allocation4 + $0x8] sm:$0xff] %vm459, 0.0
          %466 = vst.msk [vmem:[#allocation4 + $0x10] sm:$0xff] %vm459, 0.0
          %467 = vst.msk [vmem:[#allocation4 + $0x18] sm:$0xff] %vm459, 0.0
          %468 = vst.msk [vmem:[#allocation5] sm:$0xff] %vm457, 0.0
        $region68: #{tpu_custom_call.1} parent=43 // pred_fallthru
          _
        %v469 = vld [vmem:[%s328] sm:$0xff]
        %v470 = vld [vmem:[#allocation12] sm:$0xff]
        %v471 = vld [vmem:[#allocation12 + $0x8] sm:$0xff]
        %v472 = vld [vmem:[#allocation12 + $0x10] sm:$0xff]
        %v473 = vld [vmem:[#allocation12 + $0x18] sm:$0xff]
        %vm474 = vcmask 261120
        %v476 = vsel %vm474, %v469, 0
        %478 = vmatprep.subr.mxu0 0.0
        %479 = vmatpush1.msra.mxu0 %v470
        %480 = vmatprep.subr.mxu0 0.0
        %481 = vmatpush1.msra.mxu0 %v471
        %482 = vmatprep.subr.mxu0 0.0
        %483 = vmatpush1.msra.mxu0 %v472
        %484 = vmatprep.subr.mxu0 0.0
        %485 = vmatpush1.msra.mxu0 %v473
        %486 = vmatprep.subr.mxu0 0.0
        %487 = vmatpush1.msra.mxu0 0.0
        %488 = vmatprep.subr.mxu0 0.0
        %489 = vmatpush1.msra.mxu0 0.0
        %490 = vmatprep.subr.mxu0 0.0
        %491 = vmatpush1.msra.mxu0 0.0
        %492 = vmatprep.subr.mxu0 0.0
        %493 = vmatpush1.msra.mxu0 0.0
        %494 = vmatprep.subr.mxu0 0.0
        %495 = vmatpush1.msra.mxu0 0.0
        %496 = vmatprep.subr.mxu0 0.0
        %497 = vmatpush1.msra.mxu0 0.0
        %498 = vmatprep.subr.mxu0 0.0
        %499 = vmatpush1.msra.mxu0 0.0
        %500 = vmatprep.subr.mxu0 0.0
        %501 = vmatpush1.msra.mxu0 0.0
        %502 = vmatprep.subr.mxu0 0.0
        %503 = vmatpush1.msra.mxu0 0.0
        %504 = vmatprep.subr.mxu0 0.0
        %505 = vmatpush1.msra.mxu0 0.0
        %506 = vmatprep.subr.mxu0 0.0
        %507 = vmatpush1.msra.mxu0 0.0
        %508 = vmatprep.subr.mxu0 0.0
        %509 = vmatpush1.msra.mxu0 0.0
        %510 = vmatprep.subr.mxu0 0.0
        %511 = vmatpush1.msra.mxu0 0.0
        %512 = vmatprep.subr.mxu0 0.0
        %513 = vmatpush1.msra.mxu0 0.0
        %514 = vmatprep.subr.mxu0 0.0
        %515 = vmatpush1.msra.mxu0 0.0
        %516 = vmatprep.subr.mxu0 0.0
        %517 = vmatpush1.msra.mxu0 0.0
        %518 = vmatprep.subr.mxu0 0.0
        %519 = vmatpush1.msra.mxu0 0.0
        %520 = vmatprep.subr.mxu0 0.0
        %521 = vmatpush1.msra.mxu0 0.0
        %522 = vmatprep.subr.mxu0 0.0
        %523 = vmatpush1.msra.mxu0 0.0
        %524 = vmatprep.subr.mxu0 0.0
        %525 = vmatpush1.msra.mxu0 0.0
        %526 = vmatprep.subr.mxu0 0.0
        %527 = vmatpush1.msra.mxu0 0.0
        %528 = vmatprep.subr.mxu0 0.0
        %529 = vmatpush1.msra.mxu0 0.0
        %530 = vmatprep.subr.mxu0 0.0
        %531 = vmatpush1.msra.mxu0 0.0
        %532 = vmatprep.subr.mxu0 0.0
        %533 = vmatpush1.msra.mxu0 0.0
        %534 = vmatprep.subr.mxu0 0.0
        %535 = vmatpush1.msra.mxu0 0.0
        %536 = vmatprep.subr.mxu0 0.0
        %537 = vmatpush1.msra.mxu0 0.0
        %538 = vmatprep.subr.mxu0 0.0
        %539 = vmatpush1.msra.mxu0 0.0
        %540 = vmatprep.subr.mxu0 0.0
        %541 = vmatpush1.msra.mxu0 0.0
        %542 = vmatprep.mubr.f32.mxu0 0.0
        %543 = vmatmul.mubr.f32.gmra.mrb[0].mxu0 %v476
        %v544 = vpop.f32.mrb[0].mxu0
        %v545 = vadd.f32 0.0, %v544
        %v546 = vpop.f32.mrb[0].mxu0
        %547 = vdwg.mxu0
        %v548 = vld [vmem:[#allocation2] sm:$0xff]
        %vm549 = vcmask 130048
        %v551 = vsel %vm549, %v548, 0
        %v554 = vsel %vm549, %v545, 0
        %556 = vmatprep.subr.mxu0 0.0
        %557 = vmatpush1.xpose.msra.mxu0 %v554
        %558 = vmatprep.subr.mxu0 0.0
        %559 = vmatpush1.xpose.msra.mxu0 0.0
        %560 = vmatprep.subr.mxu0 0.0
        %561 = vmatpush1.xpose.msra.mxu0 0.0
        %562 = vmatprep.subr.mxu0 0.0
        %563 = vmatpush1.xpose.msra.mxu0 0.0
        %564 = vmatprep.subr.mxu0 0.0
        %565 = vmatpush1.xpose.msra.mxu0 0.0
        %566 = vmatprep.subr.mxu0 0.0
        %567 = vmatpush1.xpose.msra.mxu0 0.0
        %568 = vmatprep.subr.mxu0 0.0
        %569 = vmatpush1.xpose.msra.mxu0 0.0
        %570 = vmatprep.subr.mxu0 0.0
        %571 = vmatpush1.xpose.msra.mxu0 0.0
        %572 = vmatprep.subr.mxu0 0.0
        %573 = vmatpush1.xpose.msra.mxu0 0.0
        %574 = vmatprep.subr.mxu0 0.0
        %575 = vmatpush1.xpose.msra.mxu0 0.0
        %576 = vmatprep.subr.mxu0 0.0
        %577 = vmatpush1.xpose.msra.mxu0 0.0
        %578 = vmatprep.subr.mxu0 0.0
        %579 = vmatpush1.xpose.msra.mxu0 0.0
        %580 = vmatprep.subr.mxu0 0.0
        %581 = vmatpush1.xpose.msra.mxu0 0.0
        %582 = vmatprep.subr.mxu0 0.0
        %583 = vmatpush1.xpose.msra.mxu0 0.0
        %584 = vmatprep.subr.mxu0 0.0
        %585 = vmatpush1.xpose.msra.mxu0 0.0
        %586 = vmatprep.subr.mxu0 0.0
        %587 = vmatpush1.xpose.msra.mxu0 0.0
        %588 = vmatprep.subr.mxu0 0.0
        %589 = vmatpush1.xpose.msra.mxu0 0.0
        %590 = vmatprep.subr.mxu0 0.0
        %591 = vmatpush1.xpose.msra.mxu0 0.0
        %592 = vmatprep.subr.mxu0 0.0
        %593 = vmatpush1.xpose.msra.mxu0 0.0
        %594 = vmatprep.subr.mxu0 0.0
        %595 = vmatpush1.xpose.msra.mxu0 0.0
        %596 = vmatprep.subr.mxu0 0.0
        %597 = vmatpush1.xpose.msra.mxu0 0.0
        %598 = vmatprep.subr.mxu0 0.0
        %599 = vmatpush1.xpose.msra.mxu0 0.0
        %600 = vmatprep.subr.mxu0 0.0
        %601 = vmatpush1.xpose.msra.mxu0 0.0
        %602 = vmatprep.subr.mxu0 0.0
        %603 = vmatpush1.xpose.msra.mxu0 0.0
        %604 = vmatprep.subr.mxu0 0.0
        %605 = vmatpush1.xpose.msra.mxu0 0.0
        %606 = vmatprep.subr.mxu0 0.0
        %607 = vmatpush1.xpose.msra.mxu0 0.0
        %608 = vmatprep.subr.mxu0 0.0
        %609 = vmatpush1.xpose.msra.mxu0 0.0
        %610 = vmatprep.subr.mxu0 0.0
        %611 = vmatpush1.xpose.msra.mxu0 0.0
        %612 = vmatprep.subr.mxu0 0.0
        %613 = vmatpush1.xpose.msra.mxu0 0.0
        %614 = vmatprep.subr.mxu0 0.0
        %615 = vmatpush1.xpose.msra.mxu0 0.0
        %616 = vmatprep.subr.mxu0 0.0
        %617 = vmatpush1.xpose.msra.mxu0 0.0
        %618 = vmatprep.subr.mxu0 0.0
        %619 = vmatpush1.xpose.msra.mxu0 0.0
        %620 = vmatprep.mubr.f32.mxu0 0.0
        %621 = vmatmul.mubr.f32.gmra.mrb[0].mxu0 %v551
        %v622 = vpop.f32.mrb[0].mxu0
        %v623 = vadd.f32 0.0, %v622
        %v624 = vpop.f32.mrb[0].mxu0
        %625 = vdwg.mxu0
        %v626 = vld [vmem:[#allocation3] sm:$0xff]
        %vm627 = vcmask 64512
        %v628 = vsel %vm627, %v623, -inf
        %629 = vmax.xlane.f32.xlu0 %v628
        %v630 = vpop.xlane.xlu0 %629
        %v631 = vmax.f32 %v626, %v630
        %v632 = vsub.f32 %v626, %v631
        %v633 = vmul.f32 %v632, 1.442695
        %v634 = vpow.pop %v633
        %636 = vset.pattern.permute.xlu0 0
        %637 = vperm.xlu0 %636, %v631
        %v638 = vpop.permute.xlu0 %637
        %v640 = vsub.f32 %v623, %v638
        %v641 = vmul.f32 %v640, 1.442695
        %v642 = vpow.pop %v641
        %v643 = vld [vmem:[#allocation4] sm:$0xff]
        %v644 = vmul.f32 %v634, %v643
        %v645 = vsel %vm627, %v642, 0.0
        %646 = vadd.xlane.f32.xlu0 %v645
        %v647 = vpop.xlane.xlu0 %646
        %v648 = vadd.f32 %v644, %v647
        %vm649 = vcmask 7168
        %650 = vst.msk [vmem:[#allocation4] sm:$0xff] %vm649, %v648
        %651 = vrot.lane.b32.xlu0 %v545, 64
        %v652 = vpop.permute.xlu0 %651
        %v655 = vsel %vm627, %v642, 0
        %657 = vmatprep.subr.mxu0 0.0
        %658 = vmatpush1.msra.mxu0 %v652
        %659 = vmatprep.subr.mxu0 0.0
        %660 = vmatpush1.msra.mxu0 0.0
        %661 = vmatprep.subr.mxu0 0.0
        %662 = vmatpush1.msra.mxu0 0.0
        %663 = vmatprep.subr.mxu0 0.0
        %664 = vmatpush1.msra.mxu0 0.0
        %665 = vmatprep.subr.mxu0 0.0
        %666 = vmatpush1.msra.mxu0 0.0
        %667 = vmatprep.subr.mxu0 0.0
        %668 = vmatpush1.msra.mxu0 0.0
        %669 = vmatprep.subr.mxu0 0.0
        %670 = vmatpush1.msra.mxu0 0.0
        %671 = vmatprep.subr.mxu0 0.0
        %672 = vmatpush1.msra.mxu0 0.0
        %673 = vmatprep.subr.mxu0 0.0
        %674 = vmatpush1.msra.mxu0 0.0
        %675 = vmatprep.subr.mxu0 0.0
        %676 = vmatpush1.msra.mxu0 0.0
        %677 = vmatprep.subr.mxu0 0.0
        %678 = vmatpush1.msra.mxu0 0.0
        %679 = vmatprep.subr.mxu0 0.0
        %680 = vmatpush1.msra.mxu0 0.0
        %681 = vmatprep.subr.mxu0 0.0
        %682 = vmatpush1.msra.mxu0 0.0
        %683 = vmatprep.subr.mxu0 0.0
        %684 = vmatpush1.msra.mxu0 0.0
        %685 = vmatprep.subr.mxu0 0.0
        %686 = vmatpush1.msra.mxu0 0.0
        %687 = vmatprep.subr.mxu0 0.0
        %688 = vmatpush1.msra.mxu0 0.0
        %689 = vmatprep.subr.mxu0 0.0
        %690 = vmatpush1.msra.mxu0 0.0
        %691 = vmatprep.subr.mxu0 0.0
        %692 = vmatpush1.msra.mxu0 0.0
        %693 = vmatprep.subr.mxu0 0.0
        %694 = vmatpush1.msra.mxu0 0.0
        %695 = vmatprep.subr.mxu0 0.0
        %696 = vmatpush1.msra.mxu0 0.0
        %697 = vmatprep.subr.mxu0 0.0
        %698 = vmatpush1.msra.mxu0 0.0
        %699 = vmatprep.subr.mxu0 0.0
        %700 = vmatpush1.msra.mxu0 0.0
        %701 = vmatprep.subr.mxu0 0.0
        %702 = vmatpush1.msra.mxu0 0.0
        %703 = vmatprep.subr.mxu0 0.0
        %704 = vmatpush1.msra.mxu0 0.0
        %705 = vmatprep.subr.mxu0 0.0
        %706 = vmatpush1.msra.mxu0 0.0
        %707 = vmatprep.subr.mxu0 0.0
        %708 = vmatpush1.msra.mxu0 0.0
        %709 = vmatprep.subr.mxu0 0.0
        %710 = vmatpush1.msra.mxu0 0.0
        %711 = vmatprep.subr.mxu0 0.0
        %712 = vmatpush1.msra.mxu0 0.0
        %713 = vmatprep.subr.mxu0 0.0
        %714 = vmatpush1.msra.mxu0 0.0
        %715 = vmatprep.subr.mxu0 0.0
        %716 = vmatpush1.msra.mxu0 0.0
        %717 = vmatprep.subr.mxu0 0.0
        %718 = vmatpush1.msra.mxu0 0.0
        %719 = vmatprep.subr.mxu0 0.0
        %720 = vmatpush1.msra.mxu0 0.0
        %721 = vmatprep.mubr.f32.mxu0 0.0
        %722 = vmatmul.mubr.f32.gmra.mrb[0].mxu0 %v655
        %v723 = vpop.f32.mrb[0].mxu0
        %v724 = vadd.f32 0.0, %v723
        %v725 = vpop.f32.mrb[0].mxu0
        %726 = vdwg.mxu0
        %v727 = vld [vmem:[#allocation5] sm:$0xff]
        %729 = vset.pattern.permute.xlu0 0
        %730 = vperm.xlu0 %729, %v634
        %v731 = vpop.permute.xlu0 %730
        %v733 = vmul.f32 %v731, %v727
        %v734 = vadd.f32 %v733, %v724
        %735 = vst.msk [vmem:[#allocation5] sm:$0xff] %vm549, %v734
        %736 = vst.msk [vmem:[#allocation3] sm:$0xff] %vm649, %v631
        %v737 = vld [vmem:[#allocation2] sm:$0xff]
        %739 = vrot.lane.b32.xlu0 %v737, 112
        %v740 = vpop.permute.xlu0 %739
        %741 = vrot.lane.b32.xlu0 %v545, 112
        %v742 = vpop.permute.xlu0 %741
        %v743 = vsel %vm549, %v740, 0
        %v745 = vsel %vm549, %v742, 0
        %747 = vmatprep.subr.mxu0 0.0
        %748 = vmatpush1.xpose.msra.mxu0 %v745
        %749 = vmatprep.subr.mxu0 0.0
        %750 = vmatpush1.xpose.msra.mxu0 0.0
        %751 = vmatprep.subr.mxu0 0.0
        %752 = vmatpush1.xpose.msra.mxu0 0.0
        %753 = vmatprep.subr.mxu0 0.0
        %754 = vmatpush1.xpose.msra.mxu0 0.0
        %755 = vmatprep.subr.mxu0 0.0
        %756 = vmatpush1.xpose.msra.mxu0 0.0
        %757 = vmatprep.subr.mxu0 0.0
        %758 = vmatpush1.xpose.msra.mxu0 0.0
        %759 = vmatprep.subr.mxu0 0.0
        %760 = vmatpush1.xpose.msra.mxu0 0.0
        %761 = vmatprep.subr.mxu0 0.0
        %762 = vmatpush1.xpose.msra.mxu0 0.0
        %763 = vmatprep.subr.mxu0 0.0
        %764 = vmatpush1.xpose.msra.mxu0 0.0
        %765 = vmatprep.subr.mxu0 0.0
        %766 = vmatpush1.xpose.msra.mxu0 0.0
        %767 = vmatprep.subr.mxu0 0.0
        %768 = vmatpush1.xpose.msra.mxu0 0.0
        %769 = vmatprep.subr.mxu0 0.0
        %770 = vmatpush1.xpose.msra.mxu0 0.0
        %771 = vmatprep.subr.mxu0 0.0
        %772 = vmatpush1.xpose.msra.mxu0 0.0
        %773 = vmatprep.subr.mxu0 0.0
        %774 = vmatpush1.xpose.msra.mxu0 0.0
        %775 = vmatprep.subr.mxu0 0.0
        %776 = vmatpush1.xpose.msra.mxu0 0.0
        %777 = vmatprep.subr.mxu0 0.0
        %778 = vmatpush1.xpose.msra.mxu0 0.0
        %779 = vmatprep.subr.mxu0 0.0
        %780 = vmatpush1.xpose.msra.mxu0 0.0
        %781 = vmatprep.subr.mxu0 0.0
        %782 = vmatpush1.xpose.msra.mxu0 0.0
        %783 = vmatprep.subr.mxu0 0.0
        %784 = vmatpush1.xpose.msra.mxu0 0.0
        %785 = vmatprep.subr.mxu0 0.0
        %786 = vmatpush1.xpose.msra.mxu0 0.0
        %787 = vmatprep.subr.mxu0 0.0
        %788 = vmatpush1.xpose.msra.mxu0 0.0
        %789 = vmatprep.subr.mxu0 0.0
        %790 = vmatpush1.xpose.msra.mxu0 0.0
        %791 = vmatprep.subr.mxu0 0.0
        %792 = vmatpush1.xpose.msra.mxu0 0.0
        %793 = vmatprep.subr.mxu0 0.0
        %794 = vmatpush1.xpose.msra.mxu0 0.0
        %795 = vmatprep.subr.mxu0 0.0
        %796 = vmatpush1.xpose.msra.mxu0 0.0
        %797 = vmatprep.subr.mxu0 0.0
        %798 = vmatpush1.xpose.msra.mxu0 0.0
        %799 = vmatprep.subr.mxu0 0.0
        %800 = vmatpush1.xpose.msra.mxu0 0.0
        %801 = vmatprep.subr.mxu0 0.0
        %802 = vmatpush1.xpose.msra.mxu0 0.0
        %803 = vmatprep.subr.mxu0 0.0
        %804 = vmatpush1.xpose.msra.mxu0 0.0
        %805 = vmatprep.subr.mxu0 0.0
        %806 = vmatpush1.xpose.msra.mxu0 0.0
        %807 = vmatprep.subr.mxu0 0.0
        %808 = vmatpush1.xpose.msra.mxu0 0.0
        %809 = vmatprep.subr.mxu0 0.0
        %810 = vmatpush1.xpose.msra.mxu0 0.0
        %811 = vmatprep.mubr.f32.mxu0 0.0
        %812 = vmatmul.mubr.f32.gmra.mrb[0].mxu0 %v743
        %v813 = vpop.f32.mrb[0].mxu0
        %v814 = vadd.f32 0.0, %v813
        %v815 = vpop.f32.mrb[0].mxu0
        %816 = vdwg.mxu0
        %s817 = scalar_lea.vmem [#allocation3], 8
        %v818 = vld [vmem:[%s817] sm:$0xff]
        %v819 = vsel %vm627, %v814, -inf
        %820 = vmax.xlane.f32.xlu0 %v819
        %v821 = vpop.xlane.xlu0 %820
        %v822 = vmax.f32 %v818, %v821
        %v823 = vsub.f32 %v818, %v822
        %v824 = vmul.f32 %v823, 1.442695
        %v825 = vpow.pop %v824
        %827 = vset.pattern.permute.xlu0 0
        %828 = vperm.xlu0 %827, %v822
        %v829 = vpop.permute.xlu0 %828
        %v831 = vsub.f32 %v814, %v829
        %v832 = vmul.f32 %v831, 1.442695
        %v833 = vpow.pop %v832
        %s834 = scalar_lea.vmem [#allocation4], 8
        %v835 = vld [vmem:[%s834] sm:$0xff]
        %v836 = vmul.f32 %v825, %v835
        %v837 = vsel %vm627, %v833, 0.0
        %838 = vadd.xlane.f32.xlu0 %v837
        %v839 = vpop.xlane.xlu0 %838
        %v840 = vadd.f32 %v836, %v839
        %841 = vst.msk [vmem:[%s834] sm:$0xff] %vm649, %v840
        %842 = vrot.lane.b32.xlu0 %v545, 48
        %v843 = vpop.permute.xlu0 %842
        %v846 = vsel %vm627, %v833, 0
        %848 = vmatprep.subr.mxu0 0.0
        %849 = vmatpush1.msra.mxu0 %v843
        %850 = vmatprep.subr.mxu0 0.0
        %851 = vmatpush1.msra.mxu0 0.0
        %852 = vmatprep.subr.mxu0 0.0
        %853 = vmatpush1.msra.mxu0 0.0
        %854 = vmatprep.subr.mxu0 0.0
        %855 = vmatpush1.msra.mxu0 0.0
        %856 = vmatprep.subr.mxu0 0.0
        %857 = vmatpush1.msra.mxu0 0.0
        %858 = vmatprep.subr.mxu0 0.0
        %859 = vmatpush1.msra.mxu0 0.0
        %860 = vmatprep.subr.mxu0 0.0
        %861 = vmatpush1.msra.mxu0 0.0
        %862 = vmatprep.subr.mxu0 0.0
        %863 = vmatpush1.msra.mxu0 0.0
        %864 = vmatprep.subr.mxu0 0.0
        %865 = vmatpush1.msra.mxu0 0.0
        %866 = vmatprep.subr.mxu0 0.0
        %867 = vmatpush1.msra.mxu0 0.0
        %868 = vmatprep.subr.mxu0 0.0
        %869 = vmatpush1.msra.mxu0 0.0
        %870 = vmatprep.subr.mxu0 0.0
        %871 = vmatpush1.msra.mxu0 0.0
        %872 = vmatprep.subr.mxu0 0.0
        %873 = vmatpush1.msra.mxu0 0.0
        %874 = vmatprep.subr.mxu0 0.0
        %875 = vmatpush1.msra.mxu0 0.0
        %876 = vmatprep.subr.mxu0 0.0
        %877 = vmatpush1.msra.mxu0 0.0
        %878 = vmatprep.subr.mxu0 0.0
        %879 = vmatpush1.msra.mxu0 0.0
        %880 = vmatprep.subr.mxu0 0.0
        %881 = vmatpush1.msra.mxu0 0.0
        %882 = vmatprep.subr.mxu0 0.0
        %883 = vmatpush1.msra.mxu0 0.0
        %884 = vmatprep.subr.mxu0 0.0
        %885 = vmatpush1.msra.mxu0 0.0
        %886 = vmatprep.subr.mxu0 0.0
        %887 = vmatpush1.msra.mxu0 0.0
        %888 = vmatprep.subr.mxu0 0.0
        %889 = vmatpush1.msra.mxu0 0.0
        %890 = vmatprep.subr.mxu0 0.0
        %891 = vmatpush1.msra.mxu0 0.0
        %892 = vmatprep.subr.mxu0 0.0
        %893 = vmatpush1.msra.mxu0 0.0
        %894 = vmatprep.subr.mxu0 0.0
        %895 = vmatpush1.msra.mxu0 0.0
        %896 = vmatprep.subr.mxu0 0.0
        %897 = vmatpush1.msra.mxu0 0.0
        %898 = vmatprep.subr.mxu0 0.0
        %899 = vmatpush1.msra.mxu0 0.0
        %900 = vmatprep.subr.mxu0 0.0
        %901 = vmatpush1.msra.mxu0 0.0
        %902 = vmatprep.subr.mxu0 0.0
        %903 = vmatpush1.msra.mxu0 0.0
        %904 = vmatprep.subr.mxu0 0.0
        %905 = vmatpush1.msra.mxu0 0.0
        %906 = vmatprep.subr.mxu0 0.0
        %907 = vmatpush1.msra.mxu0 0.0
        %908 = vmatprep.subr.mxu0 0.0
        %909 = vmatpush1.msra.mxu0 0.0
        %910 = vmatprep.subr.mxu0 0.0
        %911 = vmatpush1.msra.mxu0 0.0
        %912 = vmatprep.mubr.f32.mxu0 0.0
        %913 = vmatmul.mubr.f32.gmra.mrb[0].mxu0 %v846
        %v914 = vpop.f32.mrb[0].mxu0
        %v915 = vadd.f32 0.0, %v914
        %v916 = vpop.f32.mrb[0].mxu0
        %917 = vdwg.mxu0
        %v918 = vld [vmem:[#allocation5] sm:$0xff]
        %920 = vset.pattern.permute.xlu0 0
        %921 = vperm.xlu0 %920, %v825
        %v922 = vpop.permute.xlu0 %921
        %v924 = vmul.f32 %v922, %v918
        %926 = vrot.lane.b32.xlu0 %v915, 16
        %v927 = vpop.permute.xlu0 %926
        %v929 = vadd.f32 %v924, %v927
        %vm930 = vcmask 261248
        %931 = vst.msk [vmem:[#allocation5] sm:$0xff] %vm930, %v929
        %932 = vst.msk [vmem:[%s817] sm:$0xff] %vm649, %v822
        %v933 = vld [vmem:[#allocation2] sm:$0xff]
        %935 = vrot.lane.b32.xlu0 %v933, 96
        %v936 = vpop.permute.xlu0 %935
        %937 = vrot.lane.b32.xlu0 %v545, 96
        %v938 = vpop.permute.xlu0 %937
        %v939 = vsel %vm549, %v936, 0
        %v941 = vsel %vm549, %v938, 0
        %943 = vmatprep.subr.mxu0 0.0
        %944 = vmatpush1.xpose.msra.mxu0 %v941
        %945 = vmatprep.subr.mxu0 0.0
        %946 = vmatpush1.xpose.msra.mxu0 0.0
        %947 = vmatprep.subr.mxu0 0.0
        %948 = vmatpush1.xpose.msra.mxu0 0.0
        %949 = vmatprep.subr.mxu0 0.0
        %950 = vmatpush1.xpose.msra.mxu0 0.0
        %951 = vmatprep.subr.mxu0 0.0
        %952 = vmatpush1.xpose.msra.mxu0 0.0
        %953 = vmatprep.subr.mxu0 0.0
        %954 = vmatpush1.xpose.msra.mxu0 0.0
        %955 = vmatprep.subr.mxu0 0.0
        %956 = vmatpush1.xpose.msra.mxu0 0.0
        %957 = vmatprep.subr.mxu0 0.0
        %958 = vmatpush1.xpose.msra.mxu0 0.0
        %959 = vmatprep.subr.mxu0 0.0
        %960 = vmatpush1.xpose.msra.mxu0 0.0
        %961 = vmatprep.subr.mxu0 0.0
        %962 = vmatpush1.xpose.msra.mxu0 0.0
        %963 = vmatprep.subr.mxu0 0.0
        %964 = vmatpush1.xpose.msra.mxu0 0.0
        %965 = vmatprep.subr.mxu0 0.0
        %966 = vmatpush1.xpose.msra.mxu0 0.0
        %967 = vmatprep.subr.mxu0 0.0
        %968 = vmatpush1.xpose.msra.mxu0 0.0
        %969 = vmatprep.subr.mxu0 0.0
        %970 = vmatpush1.xpose.msra.mxu0 0.0
        %971 = vmatprep.subr.mxu0 0.0
        %972 = vmatpush1.xpose.msra.mxu0 0.0
        %973 = vmatprep.subr.mxu0 0.0
        %974 = vmatpush1.xpose.msra.mxu0 0.0
        %975 = vmatprep.subr.mxu0 0.0
        %976 = vmatpush1.xpose.msra.mxu0 0.0
        %977 = vmatprep.subr.mxu0 0.0
        %978 = vmatpush1.xpose.msra.mxu0 0.0
        %979 = vmatprep.subr.mxu0 0.0
        %980 = vmatpush1.xpose.msra.mxu0 0.0
        %981 = vmatprep.subr.mxu0 0.0
        %982 = vmatpush1.xpose.msra.mxu0 0.0
        %983 = vmatprep.subr.mxu0 0.0
        %984 = vmatpush1.xpose.msra.mxu0 0.0
        %985 = vmatprep.subr.mxu0 0.0
        %986 = vmatpush1.xpose.msra.mxu0 0.0
        %987 = vmatprep.subr.mxu0 0.0
        %988 = vmatpush1.xpose.msra.mxu0 0.0
        %989 = vmatprep.subr.mxu0 0.0
        %990 = vmatpush1.xpose.msra.mxu0 0.0
        %991 = vmatprep.subr.mxu0 0.0
        %992 = vmatpush1.xpose.msra.mxu0 0.0
        %993 = vmatprep.subr.mxu0 0.0
        %994 = vmatpush1.xpose.msra.mxu0 0.0
        %995 = vmatprep.subr.mxu0 0.0
        %996 = vmatpush1.xpose.msra.mxu0 0.0
        %997 = vmatprep.subr.mxu0 0.0
        %998 = vmatpush1.xpose.msra.mxu0 0.0
        %999 = vmatprep.subr.mxu0 0.0
        %1000 = vmatpush1.xpose.msra.mxu0 0.0
        %1001 = vmatprep.subr.mxu0 0.0
        %1002 = vmatpush1.xpose.msra.mxu0 0.0
        %1003 = vmatprep.subr.mxu0 0.0
        %1004 = vmatpush1.xpose.msra.mxu0 0.0
        %1005 = vmatprep.subr.mxu0 0.0
        %1006 = vmatpush1.xpose.msra.mxu0 0.0
        %1007 = vmatprep.mubr.f32.mxu0 0.0
        %1008 = vmatmul.mubr.f32.gmra.mrb[0].mxu0 %v939
        %v1009 = vpop.f32.mrb[0].mxu0
        %v1010 = vadd.f32 0.0, %v1009
        %v1011 = vpop.f32.mrb[0].mxu0
        %1012 = vdwg.mxu0
        %s1013 = scalar_lea.vmem [#allocation3], 16
        %v1014 = vld [vmem:[%s1013] sm:$0xff]
        %v1015 = vsel %vm627, %v1010, -inf
        %1016 = vmax.xlane.f32.xlu0 %v1015
        %v1017 = vpop.xlane.xlu0 %1016
        %v1018 = vmax.f32 %v1014, %v1017
        %v1019 = vsub.f32 %v1014, %v1018
        %v1020 = vmul.f32 %v1019, 1.442695
        %v1021 = vpow.pop %v1020
        %1023 = vset.pattern.permute.xlu0 0
        %1024 = vperm.xlu0 %1023, %v1018
        %v1025 = vpop.permute.xlu0 %1024
        %v1027 = vsub.f32 %v1010, %v1025
        %v1028 = vmul.f32 %v1027, 1.442695
        %v1029 = vpow.pop %v1028
        %s1030 = scalar_lea.vmem [#allocation4], 16
        %v1031 = vld [vmem:[%s1030] sm:$0xff]
        %v1032 = vmul.f32 %v1021, %v1031
        %v1033 = vsel %vm627, %v1029, 0.0
        %1034 = vadd.xlane.f32.xlu0 %v1033
        %v1035 = vpop.xlane.xlu0 %1034
        %v1036 = vadd.f32 %v1032, %v1035
        %1037 = vst.msk [vmem:[%s1030] sm:$0xff] %vm649, %v1036
        %1038 = vrot.lane.b32.xlu0 %v545, 32
        %v1039 = vpop.permute.xlu0 %1038
        %v1042 = vsel %vm627, %v1029, 0
        %1044 = vmatprep.subr.mxu0 0.0
        %1045 = vmatpush1.msra.mxu0 %v1039
        %1046 = vmatprep.subr.mxu0 0.0
        %1047 = vmatpush1.msra.mxu0 0.0
        %1048 = vmatprep.subr.mxu0 0.0
        %1049 = vmatpush1.msra.mxu0 0.0
        %1050 = vmatprep.subr.mxu0 0.0
        %1051 = vmatpush1.msra.mxu0 0.0
        %1052 = vmatprep.subr.mxu0 0.0
        %1053 = vmatpush1.msra.mxu0 0.0
        %1054 = vmatprep.subr.mxu0 0.0
        %1055 = vmatpush1.msra.mxu0 0.0
        %1056 = vmatprep.subr.mxu0 0.0
        %1057 = vmatpush1.msra.mxu0 0.0
        %1058 = vmatprep.subr.mxu0 0.0
        %1059 = vmatpush1.msra.mxu0 0.0
        %1060 = vmatprep.subr.mxu0 0.0
        %1061 = vmatpush1.msra.mxu0 0.0
        %1062 = vmatprep.subr.mxu0 0.0
        %1063 = vmatpush1.msra.mxu0 0.0
        %1064 = vmatprep.subr.mxu0 0.0
        %1065 = vmatpush1.msra.mxu0 0.0
        %1066 = vmatprep.subr.mxu0 0.0
        %1067 = vmatpush1.msra.mxu0 0.0
        %1068 = vmatprep.subr.mxu0 0.0
        %1069 = vmatpush1.msra.mxu0 0.0
        %1070 = vmatprep.subr.mxu0 0.0
        %1071 = vmatpush1.msra.mxu0 0.0
        %1072 = vmatprep.subr.mxu0 0.0
        %1073 = vmatpush1.msra.mxu0 0.0
        %1074 = vmatprep.subr.mxu0 0.0
        %1075 = vmatpush1.msra.mxu0 0.0
        %1076 = vmatprep.subr.mxu0 0.0
        %1077 = vmatpush1.msra.mxu0 0.0
        %1078 = vmatprep.subr.mxu0 0.0
        %1079 = vmatpush1.msra.mxu0 0.0
        %1080 = vmatprep.subr.mxu0 0.0
        %1081 = vmatpush1.msra.mxu0 0.0
        %1082 = vmatprep.subr.mxu0 0.0
        %1083 = vmatpush1.msra.mxu0 0.0
        %1084 = vmatprep.subr.mxu0 0.0
        %1085 = vmatpush1.msra.mxu0 0.0
        %1086 = vmatprep.subr.mxu0 0.0
        %1087 = vmatpush1.msra.mxu0 0.0
        %1088 = vmatprep.subr.mxu0 0.0
        %1089 = vmatpush1.msra.mxu0 0.0
        %1090 = vmatprep.subr.mxu0 0.0
        %1091 = vmatpush1.msra.mxu0 0.0
        %1092 = vmatprep.subr.mxu0 0.0
        %1093 = vmatpush1.msra.mxu0 0.0
        %1094 = vmatprep.subr.mxu0 0.0
        %1095 = vmatpush1.msra.mxu0 0.0
        %1096 = vmatprep.subr.mxu0 0.0
        %1097 = vmatpush1.msra.mxu0 0.0
        %1098 = vmatprep.subr.mxu0 0.0
        %1099 = vmatpush1.msra.mxu0 0.0
        %1100 = vmatprep.subr.mxu0 0.0
        %1101 = vmatpush1.msra.mxu0 0.0
        %1102 = vmatprep.subr.mxu0 0.0
        %1103 = vmatpush1.msra.mxu0 0.0
        %1104 = vmatprep.subr.mxu0 0.0
        %1105 = vmatpush1.msra.mxu0 0.0
        %1106 = vmatprep.subr.mxu0 0.0
        %1107 = vmatpush1.msra.mxu0 0.0
        %1108 = vmatprep.mubr.f32.mxu0 0.0
        %1109 = vmatmul.mubr.f32.gmra.mrb[0].mxu0 %v1042
        %v1110 = vpop.f32.mrb[0].mxu0
        %v1111 = vadd.f32 0.0, %v1110
        %v1112 = vpop.f32.mrb[0].mxu0
        %1113 = vdwg.mxu0
        %v1114 = vld [vmem:[#allocation5] sm:$0xff]
        %1116 = vset.pattern.permute.xlu0 0
        %1117 = vperm.xlu0 %1116, %v1021
        %v1118 = vpop.permute.xlu0 %1117
        %v1120 = vmul.f32 %v1118, %v1114
        %1122 = vrot.lane.b32.xlu0 %v1111, 32
        %v1123 = vpop.permute.xlu0 %1122
        %v1125 = vadd.f32 %v1120, %v1123
        %vm1126 = vcmask 392448
        %1127 = vst.msk [vmem:[#allocation5] sm:$0xff] %vm1126, %v1125
        %1128 = vst.msk [vmem:[%s1013] sm:$0xff] %vm649, %v1018
        %v1129 = vld [vmem:[#allocation2] sm:$0xff]
        %1131 = vrot.lane.b32.xlu0 %v1129, 80
        %v1132 = vpop.permute.xlu0 %1131
        %1133 = vrot.lane.b32.xlu0 %v545, 80
        %v1134 = vpop.permute.xlu0 %1133
        %v1135 = vsel %vm549, %v1132, 0
        %v1137 = vsel %vm549, %v1134, 0
        %1139 = vmatprep.subr.mxu0 0.0
        %1140 = vmatpush1.xpose.msra.mxu0 %v1137
        %1141 = vmatprep.subr.mxu0 0.0
        %1142 = vmatpush1.xpose.msra.mxu0 0.0
        %1143 = vmatprep.subr.mxu0 0.0
        %1144 = vmatpush1.xpose.msra.mxu0 0.0
        %1145 = vmatprep.subr.mxu0 0.0
        %1146 = vmatpush1.xpose.msra.mxu0 0.0
        %1147 = vmatprep.subr.mxu0 0.0
        %1148 = vmatpush1.xpose.msra.mxu0 0.0
        %1149 = vmatprep.subr.mxu0 0.0
        %1150 = vmatpush1.xpose.msra.mxu0 0.0
        %1151 = vmatprep.subr.mxu0 0.0
        %1152 = vmatpush1.xpose.msra.mxu0 0.0
        %1153 = vmatprep.subr.mxu0 0.0
        %1154 = vmatpush1.xpose.msra.mxu0 0.0
        %1155 = vmatprep.subr.mxu0 0.0
        %1156 = vmatpush1.xpose.msra.mxu0 0.0
        %1157 = vmatprep.subr.mxu0 0.0
        %1158 = vmatpush1.xpose.msra.mxu0 0.0
        %1159 = vmatprep.subr.mxu0 0.0
        %1160 = vmatpush1.xpose.msra.mxu0 0.0
        %1161 = vmatprep.subr.mxu0 0.0
        %1162 = vmatpush1.xpose.msra.mxu0 0.0
        %1163 = vmatprep.subr.mxu0 0.0
        %1164 = vmatpush1.xpose.msra.mxu0 0.0
        %1165 = vmatprep.subr.mxu0 0.0
        %1166 = vmatpush1.xpose.msra.mxu0 0.0
        %1167 = vmatprep.subr.mxu0 0.0
        %1168 = vmatpush1.xpose.msra.mxu0 0.0
        %1169 = vmatprep.subr.mxu0 0.0
        %1170 = vmatpush1.xpose.msra.mxu0 0.0
        %1171 = vmatprep.subr.mxu0 0.0
        %1172 = vmatpush1.xpose.msra.mxu0 0.0
        %1173 = vmatprep.subr.mxu0 0.0
        %1174 = vmatpush1.xpose.msra.mxu0 0.0
        %1175 = vmatprep.subr.mxu0 0.0
        %1176 = vmatpush1.xpose.msra.mxu0 0.0
        %1177 = vmatprep.subr.mxu0 0.0
        %1178 = vmatpush1.xpose.msra.mxu0 0.0
        %1179 = vmatprep.subr.mxu0 0.0
        %1180 = vmatpush1.xpose.msra.mxu0 0.0
        %1181 = vmatprep.subr.mxu0 0.0
        %1182 = vmatpush1.xpose.msra.mxu0 0.0
        %1183 = vmatprep.subr.mxu0 0.0
        %1184 = vmatpush1.xpose.msra.mxu0 0.0
        %1185 = vmatprep.subr.mxu0 0.0
        %1186 = vmatpush1.xpose.msra.mxu0 0.0
        %1187 = vmatprep.subr.mxu0 0.0
        %1188 = vmatpush1.xpose.msra.mxu0 0.0
        %1189 = vmatprep.subr.mxu0 0.0
        %1190 = vmatpush1.xpose.msra.mxu0 0.0
        %1191 = vmatprep.subr.mxu0 0.0
        %1192 = vmatpush1.xpose.msra.mxu0 0.0
        %1193 = vmatprep.subr.mxu0 0.0
        %1194 = vmatpush1.xpose.msra.mxu0 0.0
        %1195 = vmatprep.subr.mxu0 0.0
        %1196 = vmatpush1.xpose.msra.mxu0 0.0
        %1197 = vmatprep.subr.mxu0 0.0
        %1198 = vmatpush1.xpose.msra.mxu0 0.0
        %1199 = vmatprep.subr.mxu0 0.0
        %1200 = vmatpush1.xpose.msra.mxu0 0.0
        %1201 = vmatprep.subr.mxu0 0.0
        %1202 = vmatpush1.xpose.msra.mxu0 0.0
        %1203 = vmatprep.mubr.f32.mxu0 0.0
        %1204 = vmatmul.mubr.f32.gmra.mrb[0].mxu0 %v1135
        %v1205 = vpop.f32.mrb[0].mxu0
        %v1206 = vadd.f32 0.0, %v1205
        %v1207 = vpop.f32.mrb[0].mxu0
        %1208 = vdwg.mxu0
        %s1209 = scalar_lea.vmem [#allocation3], 24
        %v1210 = vld [vmem:[%s1209] sm:$0xff]
        %v1211 = vsel %vm627, %v1206, -inf
        %1212 = vmax.xlane.f32.xlu0 %v1211
        %v1213 = vpop.xlane.xlu0 %1212
        %v1214 = vmax.f32 %v1210, %v1213
        %v1215 = vsub.f32 %v1210, %v1214
        %v1216 = vmul.f32 %v1215, 1.442695
        %v1217 = vpow.pop %v1216
        %1219 = vset.pattern.permute.xlu0 0
        %1220 = vperm.xlu0 %1219, %v1214
        %v1221 = vpop.permute.xlu0 %1220
        %v1223 = vsub.f32 %v1206, %v1221
        %v1224 = vmul.f32 %v1223, 1.442695
        %v1225 = vpow.pop %v1224
        %s1226 = scalar_lea.vmem [#allocation4], 24
        %v1227 = vld [vmem:[%s1226] sm:$0xff]
        %v1228 = vmul.f32 %v1217, %v1227
        %v1229 = vsel %vm627, %v1225, 0.0
        %1230 = vadd.xlane.f32.xlu0 %v1229
        %v1231 = vpop.xlane.xlu0 %1230
        %v1232 = vadd.f32 %v1228, %v1231
        %1233 = vst.msk [vmem:[%s1226] sm:$0xff] %vm649, %v1232
        %1234 = vrot.lane.b32.xlu0 %v545, 16
        %v1235 = vpop.permute.xlu0 %1234
        %v1238 = vsel %vm627, %v1225, 0
        %1240 = vmatprep.subr.mxu0 0.0
        %1241 = vmatpush1.msra.mxu0 %v1235
        %1242 = vmatprep.subr.mxu0 0.0
        %1243 = vmatpush1.msra.mxu0 0.0
        %1244 = vmatprep.subr.mxu0 0.0
        %1245 = vmatpush1.msra.mxu0 0.0
        %1246 = vmatprep.subr.mxu0 0.0
        %1247 = vmatpush1.msra.mxu0 0.0
        %1248 = vmatprep.subr.mxu0 0.0
        %1249 = vmatpush1.msra.mxu0 0.0
        %1250 = vmatprep.subr.mxu0 0.0
        %1251 = vmatpush1.msra.mxu0 0.0
        %1252 = vmatprep.subr.mxu0 0.0
        %1253 = vmatpush1.msra.mxu0 0.0
        %1254 = vmatprep.subr.mxu0 0.0
        %1255 = vmatpush1.msra.mxu0 0.0
        %1256 = vmatprep.subr.mxu0 0.0
        %1257 = vmatpush1.msra.mxu0 0.0
        %1258 = vmatprep.subr.mxu0 0.0
        %1259 = vmatpush1.msra.mxu0 0.0
        %1260 = vmatprep.subr.mxu0 0.0
        %1261 = vmatpush1.msra.mxu0 0.0
        %1262 = vmatprep.subr.mxu0 0.0
        %1263 = vmatpush1.msra.mxu0 0.0
        %1264 = vmatprep.subr.mxu0 0.0
        %1265 = vmatpush1.msra.mxu0 0.0
        %1266 = vmatprep.subr.mxu0 0.0
        %1267 = vmatpush1.msra.mxu0 0.0
        %1268 = vmatprep.subr.mxu0 0.0
        %1269 = vmatpush1.msra.mxu0 0.0
        %1270 = vmatprep.subr.mxu0 0.0
        %1271 = vmatpush1.msra.mxu0 0.0
        %1272 = vmatprep.subr.mxu0 0.0
        %1273 = vmatpush1.msra.mxu0 0.0
        %1274 = vmatprep.subr.mxu0 0.0
        %1275 = vmatpush1.msra.mxu0 0.0
        %1276 = vmatprep.subr.mxu0 0.0
        %1277 = vmatpush1.msra.mxu0 0.0
        %1278 = vmatprep.subr.mxu0 0.0
        %1279 = vmatpush1.msra.mxu0 0.0
        %1280 = vmatprep.subr.mxu0 0.0
        %1281 = vmatpush1.msra.mxu0 0.0
        %1282 = vmatprep.subr.mxu0 0.0
        %1283 = vmatpush1.msra.mxu0 0.0
        %1284 = vmatprep.subr.mxu0 0.0
        %1285 = vmatpush1.msra.mxu0 0.0
        %1286 = vmatprep.subr.mxu0 0.0
        %1287 = vmatpush1.msra.mxu0 0.0
        %1288 = vmatprep.subr.mxu0 0.0
        %1289 = vmatpush1.msra.mxu0 0.0
        %1290 = vmatprep.subr.mxu0 0.0
        %1291 = vmatpush1.msra.mxu0 0.0
        %1292 = vmatprep.subr.mxu0 0.0
        %1293 = vmatpush1.msra.mxu0 0.0
        %1294 = vmatprep.subr.mxu0 0.0
        %1295 = vmatpush1.msra.mxu0 0.0
        %1296 = vmatprep.subr.mxu0 0.0
        %1297 = vmatpush1.msra.mxu0 0.0
        %1298 = vmatprep.subr.mxu0 0.0
        %1299 = vmatpush1.msra.mxu0 0.0
        %1300 = vmatprep.subr.mxu0 0.0
        %1301 = vmatpush1.msra.mxu0 0.0
        %1302 = vmatprep.subr.mxu0 0.0
        %1303 = vmatpush1.msra.mxu0 0.0
        %1304 = vmatprep.mubr.f32.mxu0 0.0
        %1305 = vmatmul.mubr.f32.gmra.mrb[0].mxu0 %v1238
        %v1306 = vpop.f32.mrb[0].mxu0
        %v1307 = vadd.f32 0.0, %v1306
        %v1308 = vpop.f32.mrb[0].mxu0
        %1309 = vdwg.mxu0
        %v1310 = vld [vmem:[#allocation5] sm:$0xff]
        %1312 = vset.pattern.permute.xlu0 0
        %1313 = vperm.xlu0 %1312, %v1217
        %v1314 = vpop.permute.xlu0 %1313
        %v1316 = vmul.f32 %v1314, %v1310
        %1318 = vrot.lane.b32.xlu0 %v1307, 48
        %v1319 = vpop.permute.xlu0 %1318
        %v1321 = vadd.f32 %v1316, %v1319
        %vm1322 = vcmask 523648
        %1323 = vst.msk [vmem:[#allocation5] sm:$0xff] %vm1322, %v1321
        %1324 = vst.msk [vmem:[%s1209] sm:$0xff] %vm649, %v1214
        // Predicated region
        $region69: #{tpu_custom_call.1} parent=43 // pred_check
          %p1325 = pneg %p374
        $region70: #{tpu_custom_call.1} parent=43 // pred_check_branch
          %1327 = sbr.rel (%p1325) target = $region72
        $region71: #{tpu_custom_call.1} parent=43 // pred_region
          %v1328 = vld [vmem:[#allocation5] sm:$0xff]
          %v1329 = vld [vmem:[#allocation4] sm:$0xff]
          %1331 = vset.pattern.permute.xlu0 0
          %1332 = vperm.xlu0 %1331, %v1329
          %v1333 = vpop.permute.xlu0 %1332
          %v1335 = vrcp.pop %v1333
          %v1336 = vmul.f32 %v1328, %v1335
          %1337 = vst.msk [vmem:[#allocation5] sm:$0xff] %vm549, %v1336
          %v1338 = vld [vmem:[#allocation5] sm:$0xff]
          %v1339 = vld [vmem:[%s834] sm:$0xff]
          %1341 = vset.pattern.permute.xlu0 0
          %1342 = vperm.xlu0 %1341, %v1339
          %v1343 = vpop.permute.xlu0 %1342
          %v1345 = vrcp.pop %v1343
          %v1346 = vmul.f32 %v1338, %v1345
          %1347 = vst.msk [vmem:[#allocation5] sm:$0xff] %vm930, %v1346
          %v1348 = vld [vmem:[#allocation5] sm:$0xff]
          %v1349 = vld [vmem:[%s1030] sm:$0xff]
          %1351 = vset.pattern.permute.xlu0 0
          %1352 = vperm.xlu0 %1351, %v1349
          %v1353 = vpop.permute.xlu0 %1352
          %v1355 = vrcp.pop %v1353
          %v1356 = vmul.f32 %v1348, %v1355
          %1357 = vst.msk [vmem:[#allocation5] sm:$0xff] %vm1126, %v1356
          %v1358 = vld [vmem:[#allocation5] sm:$0xff]
          %v1359 = vld [vmem:[%s1226] sm:$0xff]
          %1361 = vset.pattern.permute.xlu0 0
          %1362 = vperm.xlu0 %1361, %v1359
          %v1363 = vpop.permute.xlu0 %1362
          %v1365 = vrcp.pop %v1363
          %v1366 = vmul.f32 %v1358, %v1365
          %1367 = vst.msk [vmem:[#allocation5] sm:$0xff] %vm1322, %v1366
          %v1368 = vld [vmem:[#allocation5] sm:$0xff]
          %v1369 = vld [vmem:[#allocation14] sm:$0xff]
          %v1370 = vld [vmem:[#allocation14 + $0x8] sm:$0xff]
          %v1371 = vld [vmem:[#allocation14 + $0x10] sm:$0xff]
          %v1372 = vld [vmem:[#allocation14 + $0x18] sm:$0xff]
          %v1373 = vld [vmem:[#allocation14 + $0x20] sm:$0xff]
          %v1374 = vld [vmem:[#allocation14 + $0x28] sm:$0xff]
          %v1375 = vld [vmem:[#allocation14 + $0x30] sm:$0xff]
          %v1376 = vld [vmem:[#allocation14 + $0x38] sm:$0xff]
          %v1377 = vld [vmem:[%s5] sm:$0x1]
          %v1379 = vlaneseq
          %v1380 = vshrl.u32 %v1379, 7
          %v1381 = vsub.s32 0, %v1380
          %v1382 = vrot.slane %v1377, %v1381
          %vm1384 = vcmask 523264
          %v1386 = vsel %vm1384, %v1368, 0
          %1388 = vmatprep.subr.mxu0 0.0
          %1389 = vmatpush1.msra.mxu0 %v1369
          %1390 = vmatprep.subr.mxu0 0.0
          %1391 = vmatpush1.msra.mxu0 %v1370
          %1392 = vmatprep.subr.mxu0 0.0
          %1393 = vmatpush1.msra.mxu0 %v1371
          %1394 = vmatprep.subr.mxu0 0.0
          %1395 = vmatpush1.msra.mxu0 %v1372
          %1396 = vmatprep.subr.mxu0 0.0
          %1397 = vmatpush1.msra.mxu0 %v1373
          %1398 = vmatprep.subr.mxu0 0.0
          %1399 = vmatpush1.msra.mxu0 %v1374
          %1400 = vmatprep.subr.mxu0 0.0
          %1401 = vmatpush1.msra.mxu0 %v1375
          %1402 = vmatprep.subr.mxu0 0.0
          %1403 = vmatpush1.msra.mxu0 %v1376
          %1404 = vmatprep.subr.mxu0 0.0
          %1405 = vmatpush1.msra.mxu0 0.0
          %1406 = vmatprep.subr.mxu0 0.0
          %1407 = vmatpush1.msra.mxu0 0.0
          %1408 = vmatprep.subr.mxu0 0.0
          %1409 = vmatpush1.msra.mxu0 0.0
          %1410 = vmatprep.subr.mxu0 0.0
          %1411 = vmatpush1.msra.mxu0 0.0
          %1412 = vmatprep.subr.mxu0 0.0
          %1413 = vmatpush1.msra.mxu0 0.0
          %1414 = vmatprep.subr.mxu0 0.0
          %1415 = vmatpush1.msra.mxu0 0.0
          %1416 = vmatprep.subr.mxu0 0.0
          %1417 = vmatpush1.msra.mxu0 0.0
          %1418 = vmatprep.subr.mxu0 0.0
          %1419 = vmatpush1.msra.mxu0 0.0
          %1420 = vmatprep.subr.mxu0 0.0
          %1421 = vmatpush1.msra.mxu0 0.0
          %1422 = vmatprep.subr.mxu0 0.0
          %1423 = vmatpush1.msra.mxu0 0.0
          %1424 = vmatprep.subr.mxu0 0.0
          %1425 = vmatpush1.msra.mxu0 0.0
          %1426 = vmatprep.subr.mxu0 0.0
          %1427 = vmatpush1.msra.mxu0 0.0
          %1428 = vmatprep.subr.mxu0 0.0
          %1429 = vmatpush1.msra.mxu0 0.0
          %1430 = vmatprep.subr.mxu0 0.0
          %1431 = vmatpush1.msra.mxu0 0.0
          %1432 = vmatprep.subr.mxu0 0.0
          %1433 = vmatpush1.msra.mxu0 0.0
          %1434 = vmatprep.subr.mxu0 0.0
          %1435 = vmatpush1.msra.mxu0 0.0
          %1436 = vmatprep.subr.mxu0 0.0
          %1437 = vmatpush1.msra.mxu0 0.0
          %1438 = vmatprep.subr.mxu0 0.0
          %1439 = vmatpush1.msra.mxu0 0.0
          %1440 = vmatprep.subr.mxu0 0.0
          %1441 = vmatpush1.msra.mxu0 0.0
          %1442 = vmatprep.subr.mxu0 0.0
          %1443 = vmatpush1.msra.mxu0 0.0
          %1444 = vmatprep.subr.mxu0 0.0
          %1445 = vmatpush1.msra.mxu0 0.0
          %1446 = vmatprep.subr.mxu0 0.0
          %1447 = vmatpush1.msra.mxu0 0.0
          %1448 = vmatprep.subr.mxu0 0.0
          %1449 = vmatpush1.msra.mxu0 0.0
          %1450 = vmatprep.subr.mxu0 0.0
          %1451 = vmatpush1.msra.mxu0 0.0
          %1452 = vmatprep.mubr.f32.mxu0 0.0
          %1453 = vmatmul.mubr.f32.gmra.mrb[0].mxu0 %v1386
          %v1454 = vpop.f32.mrb[0].mxu0
          %v1455 = vadd.f32 %v1382, %v1454
          %v1456 = vpop.f32.mrb[0].mxu0
          %1457 = vdwg.mxu0
          %1458 = vst [vmem:[%s373] sm:$0xff] %v1455
        $region72: #{tpu_custom_call.1} parent=43 // pred_fallthru
          _
        %s1459 = sand.u32 %s196, 1
        %s1460 = scalar_lea.sflag [#allocation8], %s1459
        %s1461 = sand.u32 %s196, 1
        %s1462 = smul.addr %s1461, 8
        %s1463 = scalar_lea.vmem [#allocation15], %s1462
        // Predicated region
        $region73: #{tpu_custom_call.1} parent=43 // pred_check
          %p1464 = pneg %p206
        $region74: #{tpu_custom_call.1} parent=43 // pred_check_branch
          %1466 = sbr.rel (%p1464) target = $region76
        $region75: #{tpu_custom_call.1} parent=43 // pred_region
          %s1468 = ssub.s32 128, 128
          %1469 = vsyncadd %s1460, %s1468
          %s1470 = sadd.s32 %s33, %s32
          %s1471 = smul.addr %s1470, 128
          %s1472 = scalar_lea.hbm %s6, %s1471
          %s1474 = sshll.u32 %s1463, 4
          %s1475 = int_to_ptr.vmem [resolvable:$true] %s1474
          %1477 = dma.vmem_to_hbm [thread:$0]  %s1475, 128, %s1472, %s1460
        $region76: #{tpu_custom_call.1} parent=43 // pred_fallthru
          _
      $region44: #{tpu_custom_call.1} parent=5 // pred_fallthru
        _
      %p1478 = scmp.le.s32.totalorder 2, %s22
      // Predicated region
      $region77: #{tpu_custom_call.1} parent=5 // pred_check
        %p1479 = pneg %p1478
      $region78: #{tpu_custom_call.1} parent=5 // pred_check_branch
        %1481 = sbr.rel (%p1479) target = $region80
      $region79: #{tpu_custom_call.1} parent=5 // pred_region
        %s1482 = ssub.s32 %s22, 2
        // Predicated region
        $region81: #{tpu_custom_call.1} parent=79 // pred_check
          %p1483 = pneg %p212
        $region82: #{tpu_custom_call.1} parent=79 // pred_check_branch
          %1485 = sbr.rel (%p1483) target = $region84
        $region83: #{tpu_custom_call.1} parent=79 // pred_region
          %s1486 = sand.u32 %s197, 1
          %s1487 = scalar_lea.sflag [#allocation8], %s1486
          %s1488 = sand.u32 %s197, 1
          %s1489 = smul.addr %s1488, 8
          %s1490 = scalar_lea.vmem [#allocation15], %s1489
          %1491 = dma.done %s1487, 128
        $region84: #{tpu_custom_call.1} parent=79 // pred_fallthru
          _
      $region80: #{tpu_custom_call.1} parent=5 // pred_fallthru
        _
    $region6: #{tpu_custom_call.1} parent=1 // loop_footer
      %s26 = sadd.s32 1, %s22
    $region7: #{tpu_custom_call.1} parent=1 // loop_footer_branch
      %21 = sbr.rel target = $region3
    $region8: #{tpu_custom_call.1} parent=1 // loop_exit
      _
    %1492 = vsyncpa [#allocation7], 1
    %s1493 = scalar_lea.sflag [#allocation7], 1
    %1494 = vsyncpa %s1493, 1
    %1495 = vsyncpa [#allocation10], 1
    %s1496 = scalar_lea.sflag [#allocation10], 1
    %1497 = vsyncpa %s1496, 1
    %1498 = vsyncpa [#allocation13], 1
    %1499 = vsyncpa [#allocation8], 1
    %s1500 = scalar_lea.sflag [#allocation8], 1
    %1501 = vsyncpa %s1500, 1

// kernel: tpu_custom_call.1
$region0: #{tpu_custom_call.1}
  #allocation0 [shape = 'u32[]', space=smem, size = 0x4, offset = 0x4, fixed_abs, tag = 'smem constant byte address 0x4 - core index']
  #allocation1 [shape = 'u32[144,128]{1,0:T(1,128)}', space=vmem, size = 0x12000, scoped, tag = 'internal scratch']
  #allocation2 [shape = 'f32[8,64]{1,0:T(8,128)}', space=vmem, size = 0x1000, scoped, tag = 'scratch operand']
  #allocation3 [shape = 'f32[4,8,1]{2,1,0:T(8,128)}', space=vmem, size = 0x4000, scoped, tag = 'scratch operand']
  #allocation4 [shape = 'f32[4,8,1]{2,1,0:T(8,128)}', space=vmem, size = 0x4000, scoped, tag = 'scratch operand']
  #allocation5 [shape = 'f32[8,64]{1,0:T(8,128)}', space=vmem, size = 0x1000, scoped, tag = 'scratch operand']
  %s0 = inlined_call_operand.hbm [shape: f32[2,8,32], index: 0, kind: input, shape index: {}]
  %s1 = inlined_call_operand.hbm [shape: f32[2,8,32], index: 1, kind: input, shape index: {}]
  %s2 = inlined_call_operand.hbm [shape: f32[32,64], index: 2, kind: input, shape index: {}]
  %s3 = inlined_call_operand.hbm [shape: f32[32,128], index: 3, kind: input, shape index: {}]
  %s4 = inlined_call_operand.hbm [shape: f32[64,128], index: 4, kind: input, shape index: {}]
  %s5 = inlined_call_operand.vmem [shape: f32[1,128], index: 5, kind: input, shape index: {}]
  %s6 = inlined_call_operand.hbm [shape: f32[2,8,128], index: 6, kind: output, shape index: {}]
  %s7 = sld [smem:[#allocation0]]
  $region85: #{tpu_custom_call.1} parent=0
    _
  %s9 = ssub.s32 1, %s7
  %s10 = scalar_select 0, %s9, %s7
  $region1: #{tpu_custom_call.1} parent=0
    #allocation6 [shape = 'u8[8192]{0}', space=vmem, size = 0x2000, scoped, tag = 'input window, operand 0']
    #allocation7 [shape = 's32[2]{0}', space=sflag, size = 0x8, scoped, tag = 'scoped memory for tpu_custom_call.1']
    #allocation8 [shape = 's32[2]{0}', space=sflag, size = 0x8, scoped, tag = 'scoped memory for tpu_custom_call.1']
    #allocation9 [shape = 'u8[8192]{0}', space=vmem, size = 0x2000, scoped, tag = 'input window, operand 1']
    #allocation10 [shape = 's32[2]{0}', space=sflag, size = 0x8, scoped, tag = 'scoped memory for tpu_custom_call.1']
    #allocation11 [shape = 'u8[16384]{0}', space=vmem, size = 0x4000, scoped, tag = 'input window, operand 2, single buffered']
    #allocation12 [shape = 'u8[16384]{0}', space=vmem, size = 0x4000, scoped, tag = 'input window, operand 3, single buffered']
    #allocation13 [shape = 's32[1]{0}', space=sflag, size = 0x4, scoped, tag = 'scoped memory for tpu_custom_call.1']
    #allocation14 [shape = 'u8[32768]{0}', space=vmem, size = 0x8000, scoped, tag = 'input window, operand 4, single buffered']
    #allocation15 [shape = 'u8[8192]{0}', space=vmem, size = 0x2000, scoped, tag = 'output window, operand 0']
    %11 = vsyncpa [#allocation7], 0
    %s12 = scalar_lea.sflag [#allocation7], 1
    %13 = vsyncpa %s12, 0
    %14 = vsyncpa [#allocation10], 0
    %s15 = scalar_lea.sflag [#allocation10], 1
    %16 = vsyncpa %s15, 0
    %17 = vsyncpa [#allocation13], 0
    %18 = vsyncpa [#allocation8], 0
    %s19 = scalar_lea.sflag [#allocation8], 1
    %20 = vsyncpa %s19, 0
    loop: start=0, step=1, limit=4
    $region2: #{tpu_custom_call.1} parent=1 // loop_pre_header
      _
    $region3: #{tpu_custom_call.1} parent=1 // loop_header
      %s22 = sphi 0, %s26
      %p23 = scmp.ge.s32.totalorder %s22, 4
      %s29 = sphi 0, %s48
      %s30 = sphi 0, %s44
      %s31 = sphi 0, %s40
      %s32 = sphi 0, %s29
      %s33 = sphi 0, %s30
      %s34 = sphi 0, %s31
      %s35 = sphi 0, %s32
      %s36 = sphi 0, %s33
      %s37 = sphi 0, %s34
      %s53 = sphi 0, %s55
      %s56 = sphi 0, %s53
      %s57 = sphi 0, %s56
      %s73 = sphi 0, %s57
      %s81 = sphi 0, %s83
      %s84 = sphi 0, %s81
      %s85 = sphi 0, %s84
      %s101 = sphi 0, %s85
      %s105 = sphi 0, %s105
      %s107 = sphi 0, %s105
      %s108 = sphi 0, %s107
      %s122 = sphi 0, %s108
      %s126 = sphi 0, %s126
      %s128 = sphi 0, %s126
      %s129 = sphi 0, %s128
      %s143 = sphi 0, %s129
      %s147 = sphi 0, %s147
      %s149 = sphi 0, %s147
      %s150 = sphi 0, %s149
      %s164 = sphi 0, %s150
      %s168 = sphi 0, %s168
      %s170 = sphi 0, %s168
      %s171 = sphi 0, %s170
      %s185 = sphi 0, %s171
      %s193 = sphi 0, %s195
      %s196 = sphi 0, %s193
      %s197 = sphi 0, %s196
      %s213 = sphi 0, %s197
    $region4: #{tpu_custom_call.1} parent=1 // loop_header_branch
      %25 = sbr.rel (%p23) target = $region8
    $region5: #{tpu_custom_call.1} parent=1 // loop_body
      %s27 = ssub.s32 %s22, 1
      %s28 = ssub.s32 %s22, 2
      %s38 = sadd.s32 1, %s31
      %p39 = scmp.ge.s32.totalorder %s38, 1
      %s40 = scalar_select %p39, 0, %s38
      %s41 = sadd.s32 1, %s30
      %s42 = scalar_select %p39, %s41, %s30
      %p43 = scmp.ge.s32.totalorder %s42, 1
      %s44 = scalar_select %p43, 0, %s42
      %s45 = sadd.s32 1, %s29
      %s46 = scalar_select %p43, %s45, %s29
      %p47 = scmp.ge.s32.totalorder %s46, 2
      %s48 = scalar_select %p47, 0, %s46
      %s49 = ssub.s32 %s29, %s48
      %s50 = ssub.s32 %s30, %s44
      %s51 = sor.u32 %s49, %s50
      %p52 = scmp.eq.s32.totalorder %s51, 0
      %s54 = sadd.s32 %s53, 1
      %s55 = scalar_select %p52, %s53, %s54
      %p58 = pneg %p52
      %p59 = scmp.eq.s32.totalorder %s22, 1
      %p60 = por %p58, %p59
      %p61 = scmp.ne.s32.totalorder %s53, %s56
      %p62 = scmp.eq.s32.totalorder %s22, 0
      %p63 = por %p61, %p62
      %p64 = scmp.ne.s32.totalorder %s53, %s56
      %p65 = scmp.eq.s32.totalorder %s27, 1
      %p66 = por %p64, %p65
      %p67 = scmp.ne.s32.totalorder %s56, %s57
      %p68 = scmp.eq.s32.totalorder %s27, 0
      %p69 = por %p67, %p68
      %p70 = scmp.ne.s32.totalorder %s56, %s57
      %p71 = scmp.eq.s32.totalorder %s28, 1
      %p72 = por %p70, %p71
      %p74 = scmp.ne.s32.totalorder %s57, %s73
      %p75 = scmp.eq.s32.totalorder %s28, 0
      %p76 = por %p74, %p75
      %s77 = ssub.s32 %s29, %s48
      %s78 = ssub.s32 %s31, %s40
      %s79 = sor.u32 %s77, %s78
      %p80 = scmp.eq.s32.totalorder %s79, 0
      %s82 = sadd.s32 %s81, 1
      %s83 = scalar_select %p80, %s81, %s82
      %p86 = pneg %p80
      %p87 = scmp.eq.s32.totalorder %s22, 1
      %p88 = por %p86, %p87
      %p89 = scmp.ne.s32.totalorder %s81, %s84
      %p90 = scmp.eq.s32.totalorder %s22, 0
      %p91 = por %p89, %p90
      %p92 = scmp.ne.s32.totalorder %s81, %s84
      %p93 = scmp.eq.s32.totalorder %s27, 1
      %p94 = por %p92, %p93
      %p95 = scmp.ne.s32.totalorder %s84, %s85
      %p96 = scmp.eq.s32.totalorder %s27, 0
      %p97 = por %p95, %p96
      %p98 = scmp.ne.s32.totalorder %s84, %s85
      %p99 = scmp.eq.s32.totalorder %s28, 1
      %p100 = por %p98, %p99
      %p102 = scmp.ne.s32.totalorder %s85, %s101
      %p103 = scmp.eq.s32.totalorder %s28, 0
      %p104 = por %p102, %p103
      %s106 = sadd.s32 %s105, 1
      %p109 = scmp.eq.s32.totalorder %s22, 1
      %p110 = scmp.ne.s32.totalorder %s105, %s107
      %p111 = scmp.eq.s32.totalorder %s22, 0
      %p112 = por %p110, %p111
      %p113 = scmp.ne.s32.totalorder %s105, %s107
      %p114 = scmp.eq.s32.totalorder %s27, 1
      %p115 = por %p113, %p114
      %p116 = scmp.ne.s32.totalorder %s107, %s108
      %p117 = scmp.eq.s32.totalorder %s27, 0
      %p118 = por %p116, %p117
      %p119 = scmp.ne.s32.totalorder %s107, %s108
      %p120 = scmp.eq.s32.totalorder %s28, 1
      %p121 = por %p119, %p120
      %p123 = scmp.ne.s32.totalorder %s108, %s122
      %p124 = scmp.eq.s32.totalorder %s28, 0
      %p125 = por %p123, %p124
      %s127 = sadd.s32 %s126, 1
      %p130 = scmp.eq.s32.totalorder %s22, 1
      %p131 = scmp.ne.s32.totalorder %s126, %s128
      %p132 = scmp.eq.s32.totalorder %s22, 0
      %p133 = por %p131, %p132
      %p134 = scmp.ne.s32.totalorder %s126, %s128
      %p135 = scmp.eq.s32.totalorder %s27, 1
      %p136 = por %p134, %p135
      %p137 = scmp.ne.s32.totalorder %s128, %s129
      %p138 = scmp.eq.s32.totalorder %s27, 0
      %p139 = por %p137, %p138
      %p140 = scmp.ne.s32.totalorder %s128, %s129
      %p141 = scmp.eq.s32.totalorder %s28, 1
      %p142 = por %p140, %p141
      %p144 = scmp.ne.s32.totalorder %s129, %s143
      %p145 = scmp.eq.s32.totalorder %s28, 0
      %p146 = por %p144, %p145
      %s148 = sadd.s32 %s147, 1
      %p151 = scmp.eq.s32.totalorder %s22, 1
      %p152 = scmp.ne.s32.totalorder %s147, %s149
      %p153 = scmp.eq.s32.totalorder %s22, 0
      %p154 = por %p152, %p153
      %p155 = scmp.ne.s32.totalorder %s147, %s149
      %p156 = scmp.eq.s32.totalorder %s27, 1
      %p157 = por %p155, %p156
      %p158 = scmp.ne.s32.totalorder %s149, %s150
      %p159 = scmp.eq.s32.totalorder %s27, 0
      %p160 = por %p158, %p159
      %p161 = scmp.ne.s32.totalorder %s149, %s150
      %p162 = scmp.eq.s32.totalorder %s28, 1
      %p163 = por %p161, %p162
      %p165 = scmp.ne.s32.totalorder %s150, %s164
      %p166 = scmp.eq.s32.totalorder %s28, 0
      %p167 = por %p165, %p166
      %s169 = sadd.s32 %s168, 1
      %p172 = scmp.eq.s32.totalorder %s22, 1
      %p173 = scmp.ne.s32.totalorder %s168, %s170
      %p174 = scmp.eq.s32.totalorder %s22, 0
      %p175 = por %p173, %p174
      %p176 = scmp.ne.s32.totalorder %s168, %s170
      %p177 = scmp.eq.s32.totalorder %s27, 1
      %p178 = por %p176, %p177
      %p179 = scmp.ne.s32.totalorder %s170, %s171
      %p180 = scmp.eq.s32.totalorder %s27, 0
      %p181 = por %p179, %p180
      %p182 = scmp.ne.s32.totalorder %s170, %s171
      %p183 = scmp.eq.s32.totalorder %s28, 1
      %p184 = por %p182, %p183
      %p186 = scmp.ne.s32.totalorder %s171, %s185
      %p187 = scmp.eq.s32.totalorder %s28, 0
      %p188 = por %p186, %p187
      %s189 = ssub.s32 %s29, %s48
      %s190 = ssub.s32 %s30, %s44
      %s191 = sor.u32 %s189, %s190
      %p192 = scmp.eq.s32.totalorder %s191, 0
      %s194 = sadd.s32 %s193, 1
      %s195 = scalar_select %p192, %s193, %s194
      %p198 = pneg %p192
      %p199 = scmp.eq.s32.totalorder %s22, 1
      %p200 = por %p198, %p199
      %p201 = scmp.ne.s32.totalorder %s193, %s196
      %p202 = scmp.eq.s32.totalorder %s22, 0
      %p203 = por %p201, %p202
      %p204 = scmp.ne.s32.totalorder %s193, %s196
      %p205 = scmp.eq.s32.totalorder %s27, 1
      %p206 = por %p204, %p205
      %p207 = scmp.ne.s32.totalorder %s196, %s197
      %p208 = scmp.eq.s32.totalorder %s27, 0
      %p209 = por %p207, %p208
      %p210 = scmp.ne.s32.totalorder %s196, %s197
      %p211 = scmp.eq.s32.totalorder %s28, 1
      %p212 = por %p210, %p211
      %p214 = scmp.ne.s32.totalorder %s197, %s213
      %p215 = scmp.eq.s32.totalorder %s28, 0
      %p216 = por %p214, %p215
      %p217 = scmp.le.s32.totalorder 1, %s22
      %p218 = scmp.lt.s32.totalorder %s22, 3
      %p219 = pnand %p217, %p218
      %p220 = pneg %p219
      // Predicated region
      $region9: #{tpu_custom_call.1} parent=5 // pred_check
        _
      $region10: #{tpu_custom_call.1} parent=5 // pred_check_branch
        %222 = sbr.rel (%p219) target = $region12
      $region11: #{tpu_custom_call.1} parent=5 // pred_region
        %s223 = ssub.s32 %s22, 1
        // Predicated region
        $region13: #{tpu_custom_call.1} parent=11 // pred_check
          %p224 = pneg %p118
        $region14: #{tpu_custom_call.1} parent=11 // pred_check_branch
          %226 = sbr.rel (%p224) target = $region16
        $region15: #{tpu_custom_call.1} parent=11 // pred_region
          %s228 = ssub.s32 512, 512
          %229 = vsyncadd [#allocation10], %s228
          %s230 = sshll.u32 [#allocation11], 4
          %s231 = int_to_ptr.vmem [resolvable:$true] %s230
          %236 = dma.hbm_to_vmem [thread:$0]  %s2, 512, %s231, [#allocation10], 128, 128, 8
        $region16: #{tpu_custom_call.1} parent=11 // pred_fallthru
          _
        // Predicated region
        $region17: #{tpu_custom_call.1} parent=11 // pred_check
          %p237 = pneg %p139
        $region18: #{tpu_custom_call.1} parent=11 // pred_check_branch
          %239 = sbr.rel (%p237) target = $region20
        $region19: #{tpu_custom_call.1} parent=11 // pred_region
          %s241 = ssub.s32 512, 512
          %242 = vsyncadd [#allocation13], %s241
          %s243 = sshll.u32 [#allocation12], 4
          %s244 = int_to_ptr.vmem [resolvable:$true] %s243
          %249 = dma.hbm_to_vmem [thread:$0]  %s3, 512, %s244, [#allocation13], 128, 128, 8
        $region20: #{tpu_custom_call.1} parent=11 // pred_fallthru
          _
        // Predicated region
        $region21: #{tpu_custom_call.1} parent=11 // pred_check
          %p250 = pneg %p160
        $region22: #{tpu_custom_call.1} parent=11 // pred_check_branch
          %252 = sbr.rel (%p250) target = $region24
        $region23: #{tpu_custom_call.1} parent=11 // pred_region
          %s254 = ssub.s32 1024, 1024
          %255 = vsyncadd [#allocation13], %s254
          %s256 = sshll.u32 [#allocation14], 4
          %s257 = int_to_ptr.vmem [resolvable:$true] %s256
          %262 = dma.hbm_to_vmem [thread:$0]  %s4, 1024, %s257, [#allocation13], 128, 128, 8
        $region24: #{tpu_custom_call.1} parent=11 // pred_fallthru
          _
        // Predicated region
        $region25: #{tpu_custom_call.1} parent=11 // pred_check
          %p263 = pneg %p181
        $region26: #{tpu_custom_call.1} parent=11 // pred_check_branch
          %265 = sbr.rel (%p263) target = $region28
        $region27: #{tpu_custom_call.1} parent=11 // pred_region
          _
        $region28: #{tpu_custom_call.1} parent=11 // pred_fallthru
          _
      $region12: #{tpu_custom_call.1} parent=5 // pred_fallthru
        _
      %p266 = scmp.lt.s32.totalorder %s22, 2
      // Predicated region
      $region29: #{tpu_custom_call.1} parent=5 // pred_check
        %p267 = pneg %p266
      $region30: #{tpu_custom_call.1} parent=5 // pred_check_branch
        %269 = sbr.rel (%p267) target = $region32
      $region31: #{tpu_custom_call.1} parent=5 // pred_region
        // Predicated region
        $region33: #{tpu_custom_call.1} parent=31 // pred_check
          %p270 = pneg %p63
        $region34: #{tpu_custom_call.1} parent=31 // pred_check_branch
          %272 = sbr.rel (%p270) target = $region36
        $region35: #{tpu_custom_call.1} parent=31 // pred_region
          %s273 = sand.u32 %s53, 1
          %s274 = scalar_lea.sflag [#allocation7], %s273
          %s275 = sand.u32 %s53, 1
          %s276 = smul.addr %s275, 8
          %s277 = scalar_lea.vmem [#allocation6], %s276
          %s279 = ssub.s32 128, 128
          %280 = vsyncadd %s274, %s279
          %s281 = sadd.s32 %s30, %s29
          %s282 = smul.addr %s281, 128
          %s283 = scalar_lea.hbm %s0, %s282
          %s285 = sshll.u32 %s277, 4
          %s286 = int_to_ptr.vmem [resolvable:$true] %s285
          %288 = dma.hbm_to_vmem [thread:$0]  %s283, 128, %s286, %s274
        $region36: #{tpu_custom_call.1} parent=31 // pred_fallthru
          _
        // Predicated region
        $region37: #{tpu_custom_call.1} parent=31 // pred_check
          %p289 = pneg %p91
        $region38: #{tpu_custom_call.1} parent=31 // pred_check_branch
          %291 = sbr.rel (%p289) target = $region40
        $region39: #{tpu_custom_call.1} parent=31 // pred_region
          %s292 = sand.u32 %s22, 1
          %s293 = scalar_lea.sflag [#allocation10], %s292
          %s294 = sand.u32 %s81, 1
          %s295 = smul.addr %s294, 8
          %s296 = scalar_lea.vmem [#allocation9], %s295
          %s298 = ssub.s32 128, 128
          %299 = vsyncadd %s293, %s298
          %s300 = sadd.s32 %s31, %s29
          %s301 = smul.addr %s300, 128
          %s302 = scalar_lea.hbm %s1, %s301
          %s304 = sshll.u32 %s296, 4
          %s305 = int_to_ptr.vmem [resolvable:$true] %s304
          %307 = dma.hbm_to_vmem [thread:$0]  %s302, 128, %s305, %s293
        $region40: #{tpu_custom_call.1} parent=31 // pred_fallthru
          _
      $region32: #{tpu_custom_call.1} parent=5 // pred_fallthru
        _
      %p308 = scmp.le.s32.totalorder 1, %s22
      %p309 = scmp.lt.s32.totalorder %s22, 3
      %p310 = pnand %p308, %p309
      %p311 = pneg %p310
      // Predicated region
      $region41: #{tpu_custom_call.1} parent=5 // pred_check
        _
      $region42: #{tpu_custom_call.1} parent=5 // pred_check_branch
        %313 = sbr.rel (%p310) target = $region44
      $region43: #{tpu_custom_call.1} parent=5 // pred_region
        %s314 = ssub.s32 %s22, 1
        %s315 = sand.u32 %s56, 1
        %s316 = scalar_lea.sflag [#allocation7], %s315
        %s317 = sand.u32 %s56, 1
        %s318 = smul.addr %s317, 8
        %s319 = scalar_lea.vmem [#allocation6], %s318
        // Predicated region
        $region45: #{tpu_custom_call.1} parent=43 // pred_check
          %p320 = pneg %p69
        $region46: #{tpu_custom_call.1} parent=43 // pred_check_branch
          %322 = sbr.rel (%p320) target = $region48
        $region47: #{tpu_custom_call.1} parent=43 // pred_region
          %323 = dma.done %s316, 128
        $region48: #{tpu_custom_call.1} parent=43 // pred_fallthru
          _
        %s324 = sand.u32 %s27, 1
        %s325 = scalar_lea.sflag [#allocation10], %s324
        %s326 = sand.u32 %s84, 1
        %s327 = smul.addr %s326, 8
        %s328 = scalar_lea.vmem [#allocation9], %s327
        // Predicated region
        $region49: #{tpu_custom_call.1} parent=43 // pred_check
          %p329 = pneg %p97
        $region50: #{tpu_custom_call.1} parent=43 // pred_check_branch
          %331 = sbr.rel (%p329) target = $region52
        $region51: #{tpu_custom_call.1} parent=43 // pred_region
          %332 = dma.done %s325, 128
        $region52: #{tpu_custom_call.1} parent=43 // pred_fallthru
          _
        // Predicated region
        $region53: #{tpu_custom_call.1} parent=43 // pred_check
          %p333 = pneg %p118
        $region54: #{tpu_custom_call.1} parent=43 // pred_check_branch
          %335 = sbr.rel (%p333) target = $region56
        $region55: #{tpu_custom_call.1} parent=43 // pred_region
          %336 = dma.done [#allocation10], 512
        $region56: #{tpu_custom_call.1} parent=43 // pred_fallthru
          _
        // Predicated region
        $region57: #{tpu_custom_call.1} parent=43 // pred_check
          %p337 = pneg %p139
        $region58: #{tpu_custom_call.1} parent=43 // pred_check_branch
          %339 = sbr.rel (%p337) target = $region60
        $region59: #{tpu_custom_call.1} parent=43 // pred_region
          %340 = dma.done [#allocation13], 512
        $region60: #{tpu_custom_call.1} parent=43 // pred_fallthru
          _
        // Predicated region
        $region61: #{tpu_custom_call.1} parent=43 // pred_check
          %p341 = pneg %p160
        $region62: #{tpu_custom_call.1} parent=43 // pred_check_branch
          %343 = sbr.rel (%p341) target = $region64
        $region63: #{tpu_custom_call.1} parent=43 // pred_region
          %344 = dma.done [#allocation13], 1024
        $region64: #{tpu_custom_call.1} parent=43 // pred_fallthru
          _
        %s345 = sand.u32 %s56, 1
        %s346 = scalar_lea.sflag [#allocation7], %s345
        %s347 = sand.u32 %s56, 1
        %s348 = smul.addr %s347, 8
        %s349 = scalar_lea.vmem [#allocation6], %s348
        %p350 = pneg %p69
        %p351 = pneg %p66
        %s352 = sand.u32 %s27, 1
        %s353 = scalar_lea.sflag [#allocation10], %s352
        %s354 = sand.u32 %s84, 1
        %s355 = smul.addr %s354, 8
        %s356 = scalar_lea.vmem [#allocation9], %s355
        %p357 = pneg %p97
        %p358 = pneg %p94
        %p359 = pneg %p118
        %p360 = pneg %p115
        %p361 = pneg %p139
        %p362 = pneg %p136
        %p363 = pneg %p160
        %p364 = pneg %p157
        %p365 = pneg %p181
        %p366 = pneg %p178
        %p367 = pneg %p209
        %p368 = pneg %p206
        %s369 = sand.u32 %s196, 1
        %s370 = scalar_lea.sflag [#allocation8], %s369
        %s371 = sand.u32 %s196, 1
        %s372 = smul.addr %s371, 8
        %s373 = scalar_lea.vmem [#allocation15], %s372
        %p374 = scmp.eq.s32.totalorder %s34, 0
        // Predicated region
        $region65: #{tpu_custom_call.1} parent=43 // pred_check
          %p375 = pneg %p374
        $region66: #{tpu_custom_call.1} parent=43 // pred_check_branch
          %377 = sbr.rel (%p375) target = $region68
        $region67: #{tpu_custom_call.1} parent=43 // pred_region
          %v378 = vld [vmem:[%s319] sm:$0xff]
          %v379 = vld [vmem:[#allocation11] sm:$0xff]
          %v380 = vld [vmem:[#allocation11 + $0x8] sm:$0xff]
          %v381 = vld [vmem:[#allocation11 + $0x10] sm:$0xff]
          %v382 = vld [vmem:[#allocation11 + $0x18] sm:$0xff]
          %vm383 = vcmask 261120
          %v385 = vsel %vm383, %v378, 0
          %387 = vmatprep.subr.mxu0 0.0
          %388 = vmatpush1.msra.mxu0 %v379
          %389 = vmatprep.subr.mxu0 0.0
          %390 = vmatpush1.msra.mxu0 %v380
          %391 = vmatprep.subr.mxu0 0.0
          %392 = vmatpush1.msra.mxu0 %v381
          %393 = vmatprep.subr.mxu0 0.0
          %394 = vmatpush1.msra.mxu0 %v382
          %395 = vmatprep.subr.mxu0 0.0
          %396 = vmatpush1.msra.mxu0 0.0
          %397 = vmatprep.subr.mxu0 0.0
          %398 = vmatpush1.msra.mxu0 0.0
          %399 = vmatprep.subr.mxu0 0.0
          %400 = vmatpush1.msra.mxu0 0.0
          %401 = vmatprep.subr.mxu0 0.0
          %402 = vmatpush1.msra.mxu0 0.0
          %403 = vmatprep.subr.mxu0 0.0
          %404 = vmatpush1.msra.mxu0 0.0
          %405 = vmatprep.subr.mxu0 0.0
          %406 = vmatpush1.msra.mxu0 0.0
          %407 = vmatprep.subr.mxu0 0.0
          %408 = vmatpush1.msra.mxu0 0.0
          %409 = vmatprep.subr.mxu0 0.0
          %410 = vmatpush1.msra.mxu0 0.0
          %411 = vmatprep.subr.mxu0 0.0
          %412 = vmatpush1.msra.mxu0 0.0
          %413 = vmatprep.subr.mxu0 0.0
          %414 = vmatpush1.msra.mxu0 0.0
          %415 = vmatprep.subr.mxu0 0.0
          %416 = vmatpush1.msra.mxu0 0.0
          %417 = vmatprep.subr.mxu0 0.0
          %418 = vmatpush1.msra.mxu0 0.0
          %419 = vmatprep.subr.mxu0 0.0
          %420 = vmatpush1.msra.mxu0 0.0
          %421 = vmatprep.subr.mxu0 0.0
          %422 = vmatpush1.msra.mxu0 0.0
          %423 = vmatprep.subr.mxu0 0.0
          %424 = vmatpush1.msra.mxu0 0.0
          %425 = vmatprep.subr.mxu0 0.0
          %426 = vmatpush1.msra.mxu0 0.0
          %427 = vmatprep.subr.mxu0 0.0
          %428 = vmatpush1.msra.mxu0 0.0
          %429 = vmatprep.subr.mxu0 0.0
          %430 = vmatpush1.msra.mxu0 0.0
          %431 = vmatprep.subr.mxu0 0.0
          %432 = vmatpush1.msra.mxu0 0.0
          %433 = vmatprep.subr.mxu0 0.0
          %434 = vmatpush1.msra.mxu0 0.0
          %435 = vmatprep.subr.mxu0 0.0
          %436 = vmatpush1.msra.mxu0 0.0
          %437 = vmatprep.subr.mxu0 0.0
          %438 = vmatpush1.msra.mxu0 0.0
          %439 = vmatprep.subr.mxu0 0.0
          %440 = vmatpush1.msra.mxu0 0.0
          %441 = vmatprep.subr.mxu0 0.0
          %442 = vmatpush1.msra.mxu0 0.0
          %443 = vmatprep.subr.mxu0 0.0
          %444 = vmatpush1.msra.mxu0 0.0
          %445 = vmatprep.subr.mxu0 0.0
          %446 = vmatpush1.msra.mxu0 0.0
          %447 = vmatprep.subr.mxu0 0.0
          %448 = vmatpush1.msra.mxu0 0.0
          %449 = vmatprep.subr.mxu0 0.0
          %450 = vmatpush1.msra.mxu0 0.0
          %451 = vmatprep.mubr.f32.mxu0 0.0
          %452 = vmatmul.mubr.f32.gmra.mrb[0].mxu0 %v385
          %v453 = vpop.f32.mrb[0].mxu0
          %v454 = vadd.f32 0.0, %v453
          %v455 = vpop.f32.mrb[0].mxu0
          %456 = vdwg.mxu0
          %vm457 = vcmask 523264
          %458 = vst.msk [vmem:[#allocation2] sm:$0xff] %vm457, %v454
          %vm459 = vcmask 7168
          %460 = vst.msk [vmem:[#allocation3] sm:$0xff] %vm459, -inf
          %461 = vst.msk [vmem:[#allocation3 + $0x8] sm:$0xff] %vm459, -inf
          %462 = vst.msk [vmem:[#allocation3 + $0x10] sm:$0xff] %vm459, -inf
          %463 = vst.msk [vmem:[#allocation3 + $0x18] sm:$0xff] %vm459, -inf
          %464 = vst.msk [vmem:[#allocation4] sm:$0xff] %vm459, 0.0
          %465 = vst.msk [vmem:[#allocation4 + $0x8] sm:$0xff] %vm459, 0.0
          %466 = vst.msk [vmem:[#allocation4 + $0x10] sm:$0xff] %vm459, 0.0
          %467 = vst.msk [vmem:[#allocation4 + $0x18] sm:$0xff] %vm459, 0.0
          %468 = vst.msk [vmem:[#allocation5] sm:$0xff] %vm457, 0.0
        $region68: #{tpu_custom_call.1} parent=43 // pred_fallthru
          _
        %v469 = vld [vmem:[%s328] sm:$0xff]
        %v470 = vld [vmem:[#allocation12] sm:$0xff]
        %v471 = vld [vmem:[#allocation12 + $0x8] sm:$0xff]
        %v472 = vld [vmem:[#allocation12 + $0x10] sm:$0xff]
        %v473 = vld [vmem:[#allocation12 + $0x18] sm:$0xff]
        %vm474 = vcmask 261120
        %v476 = vsel %vm474, %v469, 0
        %478 = vmatprep.subr.mxu0 0.0
        %479 = vmatpush1.msra.mxu0 %v470
        %480 = vmatprep.subr.mxu0 0.0
        %481 = vmatpush1.msra.mxu0 %v471
        %482 = vmatprep.subr.mxu0 0.0
        %483 = vmatpush1.msra.mxu0 %v472
        %484 = vmatprep.subr.mxu0 0.0
        %485 = vmatpush1.msra.mxu0 %v473
        %486 = vmatprep.subr.mxu0 0.0
        %487 = vmatpush1.msra.mxu0 0.0
        %488 = vmatprep.subr.mxu0 0.0
        %489 = vmatpush1.msra.mxu0 0.0
        %490 = vmatprep.subr.mxu0 0.0
        %491 = vmatpush1.msra.mxu0 0.0
        %492 = vmatprep.subr.mxu0 0.0
        %493 = vmatpush1.msra.mxu0 0.0
        %494 = vmatprep.subr.mxu0 0.0
        %495 = vmatpush1.msra.mxu0 0.0
        %496 = vmatprep.subr.mxu0 0.0
        %497 = vmatpush1.msra.mxu0 0.0
        %498 = vmatprep.subr.mxu0 0.0
        %499 = vmatpush1.msra.mxu0 0.0
        %500 = vmatprep.subr.mxu0 0.0
        %501 = vmatpush1.msra.mxu0 0.0
        %502 = vmatprep.subr.mxu0 0.0
        %503 = vmatpush1.msra.mxu0 0.0
        %504 = vmatprep.subr.mxu0 0.0
        %505 = vmatpush1.msra.mxu0 0.0
        %506 = vmatprep.subr.mxu0 0.0
        %507 = vmatpush1.msra.mxu0 0.0
        %508 = vmatprep.subr.mxu0 0.0
        %509 = vmatpush1.msra.mxu0 0.0
        %510 = vmatprep.subr.mxu0 0.0
        %511 = vmatpush1.msra.mxu0 0.0
        %512 = vmatprep.subr.mxu0 0.0
        %513 = vmatpush1.msra.mxu0 0.0
        %514 = vmatprep.subr.mxu0 0.0
        %515 = vmatpush1.msra.mxu0 0.0
        %516 = vmatprep.subr.mxu0 0.0
        %517 = vmatpush1.msra.mxu0 0.0
        %518 = vmatprep.subr.mxu0 0.0
        %519 = vmatpush1.msra.mxu0 0.0
        %520 = vmatprep.subr.mxu0 0.0
        %521 = vmatpush1.msra.mxu0 0.0
        %522 = vmatprep.subr.mxu0 0.0
        %523 = vmatpush1.msra.mxu0 0.0
        %524 = vmatprep.subr.mxu0 0.0
        %525 = vmatpush1.msra.mxu0 0.0
        %526 = vmatprep.subr.mxu0 0.0
        %527 = vmatpush1.msra.mxu0 0.0
        %528 = vmatprep.subr.mxu0 0.0
        %529 = vmatpush1.msra.mxu0 0.0
        %530 = vmatprep.subr.mxu0 0.0
        %531 = vmatpush1.msra.mxu0 0.0
        %532 = vmatprep.subr.mxu0 0.0
        %533 = vmatpush1.msra.mxu0 0.0
        %534 = vmatprep.subr.mxu0 0.0
        %535 = vmatpush1.msra.mxu0 0.0
        %536 = vmatprep.subr.mxu0 0.0
        %537 = vmatpush1.msra.mxu0 0.0
        %538 = vmatprep.subr.mxu0 0.0
        %539 = vmatpush1.msra.mxu0 0.0
        %540 = vmatprep.subr.mxu0 0.0
        %541 = vmatpush1.msra.mxu0 0.0
        %542 = vmatprep.mubr.f32.mxu0 0.0
        %543 = vmatmul.mubr.f32.gmra.mrb[0].mxu0 %v476
        %v544 = vpop.f32.mrb[0].mxu0
        %v545 = vadd.f32 0.0, %v544
        %v546 = vpop.f32.mrb[0].mxu0
        %547 = vdwg.mxu0
        %v548 = vld [vmem:[#allocation2] sm:$0xff]
        %vm549 = vcmask 130048
        %v551 = vsel %vm549, %v548, 0
        %v554 = vsel %vm549, %v545, 0
        %556 = vmatprep.subr.mxu0 0.0
        %557 = vmatpush1.xpose.msra.mxu0 %v554
        %558 = vmatprep.subr.mxu0 0.0
        %559 = vmatpush1.xpose.msra.mxu0 0.0
        %560 = vmatprep.subr.mxu0 0.0
        %561 = vmatpush1.xpose.msra.mxu0 0.0
        %562 = vmatprep.subr.mxu0 0.0
        %563 = vmatpush1.xpose.msra.mxu0 0.0
        %564 = vmatprep.subr.mxu0 0.0
        %565 = vmatpush1.xpose.msra.mxu0 0.0
        %566 = vmatprep.subr.mxu0 0.0
        %567 = vmatpush1.xpose.msra.mxu0 0.0
        %568 = vmatprep.subr.mxu0 0.0
        %569 = vmatpush1.xpose.msra.mxu0 0.0
        %570 = vmatprep.subr.mxu0 0.0
        %571 = vmatpush1.xpose.msra.mxu0 0.0
        %572 = vmatprep.subr.mxu0 0.0
        %573 = vmatpush1.xpose.msra.mxu0 0.0
        %574 = vmatprep.subr.mxu0 0.0
        %575 = vmatpush1.xpose.msra.mxu0 0.0
        %576 = vmatprep.subr.mxu0 0.0
        %577 = vmatpush1.xpose.msra.mxu0 0.0
        %578 = vmatprep.subr.mxu0 0.0
        %579 = vmatpush1.xpose.msra.mxu0 0.0
        %580 = vmatprep.subr.mxu0 0.0
        %581 = vmatpush1.xpose.msra.mxu0 0.0
        %582 = vmatprep.subr.mxu0 0.0
        %583 = vmatpush1.xpose.msra.mxu0 0.0
        %584 = vmatprep.subr.mxu0 0.0
        %585 = vmatpush1.xpose.msra.mxu0 0.0
        %586 = vmatprep.subr.mxu0 0.0
        %587 = vmatpush1.xpose.msra.mxu0 0.0
        %588 = vmatprep.subr.mxu0 0.0
        %589 = vmatpush1.xpose.msra.mxu0 0.0
        %590 = vmatprep.subr.mxu0 0.0
        %591 = vmatpush1.xpose.msra.mxu0 0.0
        %592 = vmatprep.subr.mxu0 0.0
        %593 = vmatpush1.xpose.msra.mxu0 0.0
        %594 = vmatprep.subr.mxu0 0.0
        %595 = vmatpush1.xpose.msra.mxu0 0.0
        %596 = vmatprep.subr.mxu0 0.0
        %597 = vmatpush1.xpose.msra.mxu0 0.0
        %598 = vmatprep.subr.mxu0 0.0
        %599 = vmatpush1.xpose.msra.mxu0 0.0
        %600 = vmatprep.subr.mxu0 0.0
        %601 = vmatpush1.xpose.msra.mxu0 0.0
        %602 = vmatprep.subr.mxu0 0.0
        %603 = vmatpush1.xpose.msra.mxu0 0.0
        %604 = vmatprep.subr.mxu0 0.0
        %605 = vmatpush1.xpose.msra.mxu0 0.0
        %606 = vmatprep.subr.mxu0 0.0
        %607 = vmatpush1.xpose.msra.mxu0 0.0
        %608 = vmatprep.subr.mxu0 0.0
        %609 = vmatpush1.xpose.msra.mxu0 0.0
        %610 = vmatprep.subr.mxu0 0.0
        %611 = vmatpush1.xpose.msra.mxu0 0.0
        %612 = vmatprep.subr.mxu0 0.0
        %613 = vmatpush1.xpose.msra.mxu0 0.0
        %614 = vmatprep.subr.mxu0 0.0
        %615 = vmatpush1.xpose.msra.mxu0 0.0
        %616 = vmatprep.subr.mxu0 0.0
        %617 = vmatpush1.xpose.msra.mxu0 0.0
        %618 = vmatprep.subr.mxu0 0.0
        %619 = vmatpush1.xpose.msra.mxu0 0.0
        %620 = vmatprep.mubr.f32.mxu0 0.0
        %621 = vmatmul.mubr.f32.gmra.mrb[0].mxu0 %v551
        %v622 = vpop.f32.mrb[0].mxu0
        %v623 = vadd.f32 0.0, %v622
        %v624 = vpop.f32.mrb[0].mxu0
        %625 = vdwg.mxu0
        %v626 = vld [vmem:[#allocation3] sm:$0xff]
        %vm627 = vcmask 64512
        %v628 = vsel %vm627, %v623, -inf
        %629 = vmax.xlane.f32.xlu0 %v628
        %v630 = vpop.xlane.xlu0 %629
        %v631 = vmax.f32 %v626, %v630
        %v632 = vsub.f32 %v626, %v631
        %v633 = vmul.f32 %v632, 1.442695
        %v634 = vpow.pop %v633
        %636 = vset.pattern.permute.xlu0 0
        %637 = vperm.xlu0 %636, %v631
        %v638 = vpop.permute.xlu0 %637
        %v640 = vsub.f32 %v623, %v638
        %v641 = vmul.f32 %v640, 1.442695
        %v642 = vpow.pop %v641
        %v643 = vld [vmem:[#allocation4] sm:$0xff]
        %v644 = vmul.f32 %v634, %v643
        %v645 = vsel %vm627, %v642, 0.0
        %646 = vadd.xlane.f32.xlu0 %v645
        %v647 = vpop.xlane.xlu0 %646
        %v648 = vadd.f32 %v644, %v647
        %vm649 = vcmask 7168
        %650 = vst.msk [vmem:[#allocation4] sm:$0xff] %vm649, %v648
        %651 = vrot.lane.b32.xlu0 %v545, 64
        %v652 = vpop.permute.xlu0 %651
        %v655 = vsel %vm627, %v642, 0
        %657 = vmatprep.subr.mxu0 0.0
        %658 = vmatpush1.msra.mxu0 %v652
        %659 = vmatprep.subr.mxu0 0.0
        %660 = vmatpush1.msra.mxu0 0.0
        %661 = vmatprep.subr.mxu0 0.0
        %662 = vmatpush1.msra.mxu0 0.0
        %663 = vmatprep.subr.mxu0 0.0
        %664 = vmatpush1.msra.mxu0 0.0
        %665 = vmatprep.subr.mxu0 0.0
        %666 = vmatpush1.msra.mxu0 0.0
        %667 = vmatprep.subr.mxu0 0.0
        %668 = vmatpush1.msra.mxu0 0.0
        %669 = vmatprep.subr.mxu0 0.0
        %670 = vmatpush1.msra.mxu0 0.0
        %671 = vmatprep.subr.mxu0 0.0
        %672 = vmatpush1.msra.mxu0 0.0
        %673 = vmatprep.subr.mxu0 0.0
        %674 = vmatpush1.msra.mxu0 0.0
        %675 = vmatprep.subr.mxu0 0.0
        %676 = vmatpush1.msra.mxu0 0.0
        %677 = vmatprep.subr.mxu0 0.0
        %678 = vmatpush1.msra.mxu0 0.0
        %679 = vmatprep.subr.mxu0 0.0
        %680 = vmatpush1.msra.mxu0 0.0
        %681 = vmatprep.subr.mxu0 0.0
        %682 = vmatpush1.msra.mxu0 0.0
        %683 = vmatprep.subr.mxu0 0.0
        %684 = vmatpush1.msra.mxu0 0.0
        %685 = vmatprep.subr.mxu0 0.0
        %686 = vmatpush1.msra.mxu0 0.0
        %687 = vmatprep.subr.mxu0 0.0
        %688 = vmatpush1.msra.mxu0 0.0
        %689 = vmatprep.subr.mxu0 0.0
        %690 = vmatpush1.msra.mxu0 0.0
        %691 = vmatprep.subr.mxu0 0.0
        %692 = vmatpush1.msra.mxu0 0.0
        %693 = vmatprep.subr.mxu0 0.0
        %694 = vmatpush1.msra.mxu0 0.0
        %695 = vmatprep.subr.mxu0 0.0
        %696 = vmatpush1.msra.mxu0 0.0
        %697 = vmatprep.subr.mxu0 0.0
        %698 = vmatpush1.msra.mxu0 0.0
        %699 = vmatprep.subr.mxu0 0.0
        %700 = vmatpush1.msra.mxu0 0.0
        %701 = vmatprep.subr.mxu0 0.0
        %702 = vmatpush1.msra.mxu0 0.0
        %703 = vmatprep.subr.mxu0 0.0
        %704 = vmatpush1.msra.mxu0 0.0
        %705 = vmatprep.subr.mxu0 0.0
        %706 = vmatpush1.msra.mxu0 0.0
        %707 = vmatprep.subr.mxu0 0.0
        %708 = vmatpush1.msra.mxu0 0.0
        %709 = vmatprep.subr.mxu0 0.0
        %710 = vmatpush1.msra.mxu0 0.0
        %711 = vmatprep.subr.mxu0 0.0
        %712 = vmatpush1.msra.mxu0 0.0
        %713 = vmatprep.subr.mxu0 0.0
        %714 = vmatpush1.msra.mxu0 0.0
        %715 = vmatprep.subr.mxu0 0.0
        %716 = vmatpush1.msra.mxu0 0.0
        %717 = vmatprep.subr.mxu0 0.0
        %718 = vmatpush1.msra.mxu0 0.0
        %719 = vmatprep.subr.mxu0 0.0
        %720 = vmatpush1.msra.mxu0 0.0
        %721 = vmatprep.mubr.f32.mxu0 0.0
        %722 = vmatmul.mubr.f32.gmra.mrb[0].mxu0 %v655
        %v723 = vpop.f32.mrb[0].mxu0
        %v724 = vadd.f32 0.0, %v723
        %v725 = vpop.f32.mrb[0].mxu0
        %726 = vdwg.mxu0
        %v727 = vld [vmem:[#allocation5] sm:$0xff]
        %729 = vset.pattern.permute.xlu0 0
        %730 = vperm.xlu0 %729, %v634
        %v731 = vpop.permute.xlu0 %730
        %v733 = vmul.f32 %v731, %v727
        %v734 = vadd.f32 %v733, %v724
        %735 = vst.msk [vmem:[#allocation5] sm:$0xff] %vm549, %v734
        %736 = vst.msk [vmem:[#allocation3] sm:$0xff] %vm649, %v631
        %v737 = vld [vmem:[#allocation2] sm:$0xff]
        %739 = vrot.lane.b32.xlu0 %v737, 112
        %v740 = vpop.permute.xlu0 %739
        %741 = vrot.lane.b32.xlu0 %v545, 112
        %v742 = vpop.permute.xlu0 %741
        %v743 = vsel %vm549, %v740, 0
        %v745 = vsel %vm549, %v742, 0
        %747 = vmatprep.subr.mxu0 0.0
        %748 = vmatpush1.xpose.msra.mxu0 %v745
        %749 = vmatprep.subr.mxu0 0.0
        %750 = vmatpush1.xpose.msra.mxu0 0.0
        %751 = vmatprep.subr.mxu0 0.0
        %752 = vmatpush1.xpose.msra.mxu0 0.0
        %753 = vmatprep.subr.mxu0 0.0
        %754 = vmatpush1.xpose.msra.mxu0 0.0
        %755 = vmatprep.subr.mxu0 0.0
        %756 = vmatpush1.xpose.msra.mxu0 0.0
        %757 = vmatprep.subr.mxu0 0.0
        %758 = vmatpush1.xpose.msra.mxu0 0.0
        %759 = vmatprep.subr.mxu0 0.0
        %760 = vmatpush1.xpose.msra.mxu0 0.0
        %761 = vmatprep.subr.mxu0 0.0
        %762 = vmatpush1.xpose.msra.mxu0 0.0
        %763 = vmatprep.subr.mxu0 0.0
        %764 = vmatpush1.xpose.msra.mxu0 0.0
        %765 = vmatprep.subr.mxu0 0.0
        %766 = vmatpush1.xpose.msra.mxu0 0.0
        %767 = vmatprep.subr.mxu0 0.0
        %768 = vmatpush1.xpose.msra.mxu0 0.0
        %769 = vmatprep.subr.mxu0 0.0
        %770 = vmatpush1.xpose.msra.mxu0 0.0
        %771 = vmatprep.subr.mxu0 0.0
        %772 = vmatpush1.xpose.msra.mxu0 0.0
        %773 = vmatprep.subr.mxu0 0.0
        %774 = vmatpush1.xpose.msra.mxu0 0.0
        %775 = vmatprep.subr.mxu0 0.0
        %776 = vmatpush1.xpose.msra.mxu0 0.0
        %777 = vmatprep.subr.mxu0 0.0
        %778 = vmatpush1.xpose.msra.mxu0 0.0
        %779 = vmatprep.subr.mxu0 0.0
        %780 = vmatpush1.xpose.msra.mxu0 0.0
        %781 = vmatprep.subr.mxu0 0.0
        %782 = vmatpush1.xpose.msra.mxu0 0.0
        %783 = vmatprep.subr.mxu0 0.0
        %784 = vmatpush1.xpose.msra.mxu0 0.0
        %785 = vmatprep.subr.mxu0 0.0
        %786 = vmatpush1.xpose.msra.mxu0 0.0
        %787 = vmatprep.subr.mxu0 0.0
        %788 = vmatpush1.xpose.msra.mxu0 0.0
        %789 = vmatprep.subr.mxu0 0.0
        %790 = vmatpush1.xpose.msra.mxu0 0.0
        %791 = vmatprep.subr.mxu0 0.0
        %792 = vmatpush1.xpose.msra.mxu0 0.0
        %793 = vmatprep.subr.mxu0 0.0
        %794 = vmatpush1.xpose.msra.mxu0 0.0
        %795 = vmatprep.subr.mxu0 0.0
        %796 = vmatpush1.xpose.msra.mxu0 0.0
        %797 = vmatprep.subr.mxu0 0.0
        %798 = vmatpush1.xpose.msra.mxu0 0.0
        %799 = vmatprep.subr.mxu0 0.0
        %800 = vmatpush1.xpose.msra.mxu0 0.0
        %801 = vmatprep.subr.mxu0 0.0
        %802 = vmatpush1.xpose.msra.mxu0 0.0
        %803 = vmatprep.subr.mxu0 0.0
        %804 = vmatpush1.xpose.msra.mxu0 0.0
        %805 = vmatprep.subr.mxu0 0.0
        %806 = vmatpush1.xpose.msra.mxu0 0.0
        %807 = vmatprep.subr.mxu0 0.0
        %808 = vmatpush1.xpose.msra.mxu0 0.0
        %809 = vmatprep.subr.mxu0 0.0
        %810 = vmatpush1.xpose.msra.mxu0 0.0
        %811 = vmatprep.mubr.f32.mxu0 0.0
        %812 = vmatmul.mubr.f32.gmra.mrb[0].mxu0 %v743
        %v813 = vpop.f32.mrb[0].mxu0
        %v814 = vadd.f32 0.0, %v813
        %v815 = vpop.f32.mrb[0].mxu0
        %816 = vdwg.mxu0
        %s817 = scalar_lea.vmem [#allocation3], 8
        %v818 = vld [vmem:[%s817] sm:$0xff]
        %v819 = vsel %vm627, %v814, -inf
        %820 = vmax.xlane.f32.xlu0 %v819
        %v821 = vpop.xlane.xlu0 %820
        %v822 = vmax.f32 %v818, %v821
        %v823 = vsub.f32 %v818, %v822
        %v824 = vmul.f32 %v823, 1.442695
        %v825 = vpow.pop %v824
        %827 = vset.pattern.permute.xlu0 0
        %828 = vperm.xlu0 %827, %v822
        %v829 = vpop.permute.xlu0 %828
        %v831 = vsub.f32 %v814, %v829
        %v832 = vmul.f32 %v831, 1.442695
        %v833 = vpow.pop %v832
        %s834 = scalar_lea.vmem [#allocation4], 8
        %v835 = vld [vmem:[%s834] sm:$0xff]
        %v836 = vmul.f32 %v825, %v835
        %v837 = vsel %vm627, %v833, 0.0
        %838 = vadd.xlane.f32.xlu0 %v837
        %v839 = vpop.xlane.xlu0 %838
        %v840 = vadd.f32 %v836, %v839
        %841 = vst.msk [vmem:[%s834] sm:$0xff] %vm649, %v840
        %842 = vrot.lane.b32.xlu0 %v545, 48
        %v843 = vpop.permute.xlu0 %842
        %v846 = vsel %vm627, %v833, 0
        %848 = vmatprep.subr.mxu0 0.0
        %849 = vmatpush1.msra.mxu0 %v843
        %850 = vmatprep.subr.mxu0 0.0
        %851 = vmatpush1.msra.mxu0 0.0
        %852 = vmatprep.subr.mxu0 0.0
        %853 = vmatpush1.msra.mxu0 0.0
        %854 = vmatprep.subr.mxu0 0.0
        %855 = vmatpush1.msra.mxu0 0.0
        %856 = vmatprep.subr.mxu0 0.0
        %857 = vmatpush1.msra.mxu0 0.0
        %858 = vmatprep.subr.mxu0 0.0
        %859 = vmatpush1.msra.mxu0 0.0
        %860 = vmatprep.subr.mxu0 0.0
        %861 = vmatpush1.msra.mxu0 0.0
        %862 = vmatprep.subr.mxu0 0.0
        %863 = vmatpush1.msra.mxu0 0.0
        %864 = vmatprep.subr.mxu0 0.0
        %865 = vmatpush1.msra.mxu0 0.0
        %866 = vmatprep.subr.mxu0 0.0
        %867 = vmatpush1.msra.mxu0 0.0
        %868 = vmatprep.subr.mxu0 0.0
        %869 = vmatpush1.msra.mxu0 0.0
        %870 = vmatprep.subr.mxu0 0.0
        %871 = vmatpush1.msra.mxu0 0.0
        %872 = vmatprep.subr.mxu0 0.0
        %873 = vmatpush1.msra.mxu0 0.0
        %874 = vmatprep.subr.mxu0 0.0
        %875 = vmatpush1.msra.mxu0 0.0
        %876 = vmatprep.subr.mxu0 0.0
        %877 = vmatpush1.msra.mxu0 0.0
        %878 = vmatprep.subr.mxu0 0.0
        %879 = vmatpush1.msra.mxu0 0.0
        %880 = vmatprep.subr.mxu0 0.0
        %881 = vmatpush1.msra.mxu0 0.0
        %882 = vmatprep.subr.mxu0 0.0
        %883 = vmatpush1.msra.mxu0 0.0
        %884 = vmatprep.subr.mxu0 0.0
        %885 = vmatpush1.msra.mxu0 0.0
        %886 = vmatprep.subr.mxu0 0.0
        %887 = vmatpush1.msra.mxu0 0.0
        %888 = vmatprep.subr.mxu0 0.0
        %889 = vmatpush1.msra.mxu0 0.0
        %890 = vmatprep.subr.mxu0 0.0
        %891 = vmatpush1.msra.mxu0 0.0
        %892 = vmatprep.subr.mxu0 0.0
        %893 = vmatpush1.msra.mxu0 0.0
        %894 = vmatprep.subr.mxu0 0.0
        %895 = vmatpush1.msra.mxu0 0.0
        %896 = vmatprep.subr.mxu0 0.0
        %897 = vmatpush1.msra.mxu0 0.0
        %898 = vmatprep.subr.mxu0 0.0
        %899 = vmatpush1.msra.mxu0 0.0
        %900 = vmatprep.subr.mxu0 0.0
        %901 = vmatpush1.msra.mxu0 0.0
        %902 = vmatprep.subr.mxu0 0.0
        %903 = vmatpush1.msra.mxu0 0.0
        %904 = vmatprep.subr.mxu0 0.0
        %905 = vmatpush1.msra.mxu0 0.0
        %906 = vmatprep.subr.mxu0 0.0
        %907 = vmatpush1.msra.mxu0 0.0
        %908 = vmatprep.subr.mxu0 0.0
        %909 = vmatpush1.msra.mxu0 0.0
        %910 = vmatprep.subr.mxu0 0.0
        %911 = vmatpush1.msra.mxu0 0.0
        %912 = vmatprep.mubr.f32.mxu0 0.0
        %913 = vmatmul.mubr.f32.gmra.mrb[0].mxu0 %v846
        %v914 = vpop.f32.mrb[0].mxu0
        %v915 = vadd.f32 0.0, %v914
        %v916 = vpop.f32.mrb[0].mxu0
        %917 = vdwg.mxu0
        %v918 = vld [vmem:[#allocation5] sm:$0xff]
        %920 = vset.pattern.permute.xlu0 0
        %921 = vperm.xlu0 %920, %v825
        %v922 = vpop.permute.xlu0 %921
        %v924 = vmul.f32 %v922, %v918
        %926 = vrot.lane.b32.xlu0 %v915, 16
        %v927 = vpop.permute.xlu0 %926
        %v929 = vadd.f32 %v924, %v927
        %vm930 = vcmask 261248
        %931 = vst.msk [vmem:[#allocation5] sm:$0xff] %vm930, %v929
        %932 = vst.msk [vmem:[%s817] sm:$0xff] %vm649, %v822
        %v933 = vld [vmem:[#allocation2] sm:$0xff]
        %935 = vrot.lane.b32.xlu0 %v933, 96
        %v936 = vpop.permute.xlu0 %935
        %937 = vrot.lane.b32.xlu0 %v545, 96
        %v938 = vpop.permute.xlu0 %937
        %v939 = vsel %vm549, %v936, 0
        %v941 = vsel %vm549, %v938, 0
        %943 = vmatprep.subr.mxu0 0.0
        %944 = vmatpush1.xpose.msra.mxu0 %v941
        %945 = vmatprep.subr.mxu0 0.0
        %946 = vmatpush1.xpose.msra.mxu0 0.0
        %947 = vmatprep.subr.mxu0 0.0
        %948 = vmatpush1.xpose.msra.mxu0 0.0
        %949 = vmatprep.subr.mxu0 0.0
        %950 = vmatpush1.xpose.msra.mxu0 0.0
        %951 = vmatprep.subr.mxu0 0.0
        %952 = vmatpush1.xpose.msra.mxu0 0.0
        %953 = vmatprep.subr.mxu0 0.0
        %954 = vmatpush1.xpose.msra.mxu0 0.0
        %955 = vmatprep.subr.mxu0 0.0
        %956 = vmatpush1.xpose.msra.mxu0 0.0
        %957 = vmatprep.subr.mxu0 0.0
        %958 = vmatpush1.xpose.msra.mxu0 0.0
        %959 = vmatprep.subr.mxu0 0.0
        %960 = vmatpush1.xpose.msra.mxu0 0.0
        %961 = vmatprep.subr.mxu0 0.0
        %962 = vmatpush1.xpose.msra.mxu0 0.0
        %963 = vmatprep.subr.mxu0 0.0
        %964 = vmatpush1.xpose.msra.mxu0 0.0
        %965 = vmatprep.subr.mxu0 0.0
        %966 = vmatpush1.xpose.msra.mxu0 0.0
        %967 = vmatprep.subr.mxu0 0.0
        %968 = vmatpush1.xpose.msra.mxu0 0.0
        %969 = vmatprep.subr.mxu0 0.0
        %970 = vmatpush1.xpose.msra.mxu0 0.0
        %971 = vmatprep.subr.mxu0 0.0
        %972 = vmatpush1.xpose.msra.mxu0 0.0
        %973 = vmatprep.subr.mxu0 0.0
        %974 = vmatpush1.xpose.msra.mxu0 0.0
        %975 = vmatprep.subr.mxu0 0.0
        %976 = vmatpush1.xpose.msra.mxu0 0.0
        %977 = vmatprep.subr.mxu0 0.0
        %978 = vmatpush1.xpose.msra.mxu0 0.0
        %979 = vmatprep.subr.mxu0 0.0
        %980 = vmatpush1.xpose.msra.mxu0 0.0
        %981 = vmatprep.subr.mxu0 0.0
        %982 = vmatpush1.xpose.msra.mxu0 0.0
        %983 = vmatprep.subr.mxu0 0.0
        %984 = vmatpush1.xpose.msra.mxu0 0.0
        %985 = vmatprep.subr.mxu0 0.0
        %986 = vmatpush1.xpose.msra.mxu0 0.0
        %987 = vmatprep.subr.mxu0 0.0
        %988 = vmatpush1.xpose.msra.mxu0 0.0
        %989 = vmatprep.subr.mxu0 0.0
        %990 = vmatpush1.xpose.msra.mxu0 0.0
        %991 = vmatprep.subr.mxu0 0.0
        %992 = vmatpush1.xpose.msra.mxu0 0.0
        %993 = vmatprep.subr.mxu0 0.0
        %994 = vmatpush1.xpose.msra.mxu0 0.0
        %995 = vmatprep.subr.mxu0 0.0
        %996 = vmatpush1.xpose.msra.mxu0 0.0
        %997 = vmatprep.subr.mxu0 0.0
        %998 = vmatpush1.xpose.msra.mxu0 0.0
        %999 = vmatprep.subr.mxu0 0.0
        %1000 = vmatpush1.xpose.msra.mxu0 0.0
        %1001 = vmatprep.subr.mxu0 0.0
        %1002 = vmatpush1.xpose.msra.mxu0 0.0
        %1003 = vmatprep.subr.mxu0 0.0
        %1004 = vmatpush1.xpose.msra.mxu0 0.0
        %1005 = vmatprep.subr.mxu0 0.0
        %1006 = vmatpush1.xpose.msra.mxu0 0.0
        %1007 = vmatprep.mubr.f32.mxu0 0.0
        %1008 = vmatmul.mubr.f32.gmra.mrb[0].mxu0 %v939
        %v1009 = vpop.f32.mrb[0].mxu0
        %v1010 = vadd.f32 0.0, %v1009
        %v1011 = vpop.f32.mrb[0].mxu0
        %1012 = vdwg.mxu0
        %s1013 = scalar_lea.vmem [#allocation3], 16
        %v1014 = vld [vmem:[%s1013] sm:$0xff]
        %v1015 = vsel %vm627, %v1010, -inf
        %1016 = vmax.xlane.f32.xlu0 %v1015
        %v1017 = vpop.xlane.xlu0 %1016
        %v1018 = vmax.f32 %v1014, %v1017
        %v1019 = vsub.f32 %v1014, %v1018
        %v1020 = vmul.f32 %v1019, 1.442695
        %v1021 = vpow.pop %v1020
        %1023 = vset.pattern.permute.xlu0 0
        %1024 = vperm.xlu0 %1023, %v1018
        %v1025 = vpop.permute.xlu0 %1024
        %v1027 = vsub.f32 %v1010, %v1025
        %v1028 = vmul.f32 %v1027, 1.442695
        %v1029 = vpow.pop %v1028
        %s1030 = scalar_lea.vmem [#allocation4], 16
        %v1031 = vld [vmem:[%s1030] sm:$0xff]
        %v1032 = vmul.f32 %v1021, %v1031
        %v1033 = vsel %vm627, %v1029, 0.0
        %1034 = vadd.xlane.f32.xlu0 %v1033
        %v1035 = vpop.xlane.xlu0 %1034
        %v1036 = vadd.f32 %v1032, %v1035
        %1037 = vst.msk [vmem:[%s1030] sm:$0xff] %vm649, %v1036
        %1038 = vrot.lane.b32.xlu0 %v545, 32
        %v1039 = vpop.permute.xlu0 %1038
        %v1042 = vsel %vm627, %v1029, 0
        %1044 = vmatprep.subr.mxu0 0.0
        %1045 = vmatpush1.msra.mxu0 %v1039
        %1046 = vmatprep.subr.mxu0 0.0
        %1047 = vmatpush1.msra.mxu0 0.0
        %1048 = vmatprep.subr.mxu0 0.0
        %1049 = vmatpush1.msra.mxu0 0.0
        %1050 = vmatprep.subr.mxu0 0.0
        %1051 = vmatpush1.msra.mxu0 0.0
        %1052 = vmatprep.subr.mxu0 0.0
        %1053 = vmatpush1.msra.mxu0 0.0
        %1054 = vmatprep.subr.mxu0 0.0
        %1055 = vmatpush1.msra.mxu0 0.0
        %1056 = vmatprep.subr.mxu0 0.0
        %1057 = vmatpush1.msra.mxu0 0.0
        %1058 = vmatprep.subr.mxu0 0.0
        %1059 = vmatpush1.msra.mxu0 0.0
        %1060 = vmatprep.subr.mxu0 0.0
        %1061 = vmatpush1.msra.mxu0 0.0
        %1062 = vmatprep.subr.mxu0 0.0
        %1063 = vmatpush1.msra.mxu0 0.0
        %1064 = vmatprep.subr.mxu0 0.0
        %1065 = vmatpush1.msra.mxu0 0.0
        %1066 = vmatprep.subr.mxu0 0.0
        %1067 = vmatpush1.msra.mxu0 0.0
        %1068 = vmatprep.subr.mxu0 0.0
        %1069 = vmatpush1.msra.mxu0 0.0
        %1070 = vmatprep.subr.mxu0 0.0
        %1071 = vmatpush1.msra.mxu0 0.0
        %1072 = vmatprep.subr.mxu0 0.0
        %1073 = vmatpush1.msra.mxu0 0.0
        %1074 = vmatprep.subr.mxu0 0.0
        %1075 = vmatpush1.msra.mxu0 0.0
        %1076 = vmatprep.subr.mxu0 0.0
        %1077 = vmatpush1.msra.mxu0 0.0
        %1078 = vmatprep.subr.mxu0 0.0
        %1079 = vmatpush1.msra.mxu0 0.0
        %1080 = vmatprep.subr.mxu0 0.0
        %1081 = vmatpush1.msra.mxu0 0.0
        %1082 = vmatprep.subr.mxu0 0.0
        %1083 = vmatpush1.msra.mxu0 0.0
        %1084 = vmatprep.subr.mxu0 0.0
        %1085 = vmatpush1.msra.mxu0 0.0
        %1086 = vmatprep.subr.mxu0 0.0
        %1087 = vmatpush1.msra.mxu0 0.0
        %1088 = vmatprep.subr.mxu0 0.0
        %1089 = vmatpush1.msra.mxu0 0.0
        %1090 = vmatprep.subr.mxu0 0.0
        %1091 = vmatpush1.msra.mxu0 0.0
        %1092 = vmatprep.subr.mxu0 0.0
        %1093 = vmatpush1.msra.mxu0 0.0
        %1094 = vmatprep.subr.mxu0 0.0
        %1095 = vmatpush1.msra.mxu0 0.0
        %1096 = vmatprep.subr.mxu0 0.0
        %1097 = vmatpush1.msra.mxu0 0.0
        %1098 = vmatprep.subr.mxu0 0.0
        %1099 = vmatpush1.msra.mxu0 0.0
        %1100 = vmatprep.subr.mxu0 0.0
        %1101 = vmatpush1.msra.mxu0 0.0
        %1102 = vmatprep.subr.mxu0 0.0
        %1103 = vmatpush1.msra.mxu0 0.0
        %1104 = vmatprep.subr.mxu0 0.0
        %1105 = vmatpush1.msra.mxu0 0.0
        %1106 = vmatprep.subr.mxu0 0.0
        %1107 = vmatpush1.msra.mxu0 0.0
        %1108 = vmatprep.mubr.f32.mxu0 0.0
        %1109 = vmatmul.mubr.f32.gmra.mrb[0].mxu0 %v1042
        %v1110 = vpop.f32.mrb[0].mxu0
        %v1111 = vadd.f32 0.0, %v1110
        %v1112 = vpop.f32.mrb[0].mxu0
        %1113 = vdwg.mxu0
        %v1114 = vld [vmem:[#allocation5] sm:$0xff]
        %1116 = vset.pattern.permute.xlu0 0
        %1117 = vperm.xlu0 %1116, %v1021
        %v1118 = vpop.permute.xlu0 %1117
        %v1120 = vmul.f32 %v1118, %v1114
        %1122 = vrot.lane.b32.xlu0 %v1111, 32
        %v1123 = vpop.permute.xlu0 %1122
        %v1125 = vadd.f32 %v1120, %v1123
        %vm1126 = vcmask 392448
        %1127 = vst.msk [vmem:[#allocation5] sm:$0xff] %vm1126, %v1125
        %1128 = vst.msk [vmem:[%s1013] sm:$0xff] %vm649, %v1018
        %v1129 = vld [vmem:[#allocation2] sm:$0xff]
        %1131 = vrot.lane.b32.xlu0 %v1129, 80
        %v1132 = vpop.permute.xlu0 %1131
        %1133 = vrot.lane.b32.xlu0 %v545, 80
        %v1134 = vpop.permute.xlu0 %1133
        %v1135 = vsel %vm549, %v1132, 0
        %v1137 = vsel %vm549, %v1134, 0
        %1139 = vmatprep.subr.mxu0 0.0
        %1140 = vmatpush1.xpose.msra.mxu0 %v1137
        %1141 = vmatprep.subr.mxu0 0.0
        %1142 = vmatpush1.xpose.msra.mxu0 0.0
        %1143 = vmatprep.subr.mxu0 0.0
        %1144 = vmatpush1.xpose.msra.mxu0 0.0
        %1145 = vmatprep.subr.mxu0 0.0
        %1146 = vmatpush1.xpose.msra.mxu0 0.0
        %1147 = vmatprep.subr.mxu0 0.0
        %1148 = vmatpush1.xpose.msra.mxu0 0.0
        %1149 = vmatprep.subr.mxu0 0.0
        %1150 = vmatpush1.xpose.msra.mxu0 0.0
        %1151 = vmatprep.subr.mxu0 0.0
        %1152 = vmatpush1.xpose.msra.mxu0 0.0
        %1153 = vmatprep.subr.mxu0 0.0
        %1154 = vmatpush1.xpose.msra.mxu0 0.0
        %1155 = vmatprep.subr.mxu0 0.0
        %1156 = vmatpush1.xpose.msra.mxu0 0.0
        %1157 = vmatprep.subr.mxu0 0.0
        %1158 = vmatpush1.xpose.msra.mxu0 0.0
        %1159 = vmatprep.subr.mxu0 0.0
        %1160 = vmatpush1.xpose.msra.mxu0 0.0
        %1161 = vmatprep.subr.mxu0 0.0
        %1162 = vmatpush1.xpose.msra.mxu0 0.0
        %1163 = vmatprep.subr.mxu0 0.0
        %1164 = vmatpush1.xpose.msra.mxu0 0.0
        %1165 = vmatprep.subr.mxu0 0.0
        %1166 = vmatpush1.xpose.msra.mxu0 0.0
        %1167 = vmatprep.subr.mxu0 0.0
        %1168 = vmatpush1.xpose.msra.mxu0 0.0
        %1169 = vmatprep.subr.mxu0 0.0
        %1170 = vmatpush1.xpose.msra.mxu0 0.0
        %1171 = vmatprep.subr.mxu0 0.0
        %1172 = vmatpush1.xpose.msra.mxu0 0.0
        %1173 = vmatprep.subr.mxu0 0.0
        %1174 = vmatpush1.xpose.msra.mxu0 0.0
        %1175 = vmatprep.subr.mxu0 0.0
        %1176 = vmatpush1.xpose.msra.mxu0 0.0
        %1177 = vmatprep.subr.mxu0 0.0
        %1178 = vmatpush1.xpose.msra.mxu0 0.0
        %1179 = vmatprep.subr.mxu0 0.0
        %1180 = vmatpush1.xpose.msra.mxu0 0.0
        %1181 = vmatprep.subr.mxu0 0.0
        %1182 = vmatpush1.xpose.msra.mxu0 0.0
        %1183 = vmatprep.subr.mxu0 0.0
        %1184 = vmatpush1.xpose.msra.mxu0 0.0
        %1185 = vmatprep.subr.mxu0 0.0
        %1186 = vmatpush1.xpose.msra.mxu0 0.0
        %1187 = vmatprep.subr.mxu0 0.0
        %1188 = vmatpush1.xpose.msra.mxu0 0.0
        %1189 = vmatprep.subr.mxu0 0.0
        %1190 = vmatpush1.xpose.msra.mxu0 0.0
        %1191 = vmatprep.subr.mxu0 0.0
        %1192 = vmatpush1.xpose.msra.mxu0 0.0
        %1193 = vmatprep.subr.mxu0 0.0
        %1194 = vmatpush1.xpose.msra.mxu0 0.0
        %1195 = vmatprep.subr.mxu0 0.0
        %1196 = vmatpush1.xpose.msra.mxu0 0.0
        %1197 = vmatprep.subr.mxu0 0.0
        %1198 = vmatpush1.xpose.msra.mxu0 0.0
        %1199 = vmatprep.subr.mxu0 0.0
        %1200 = vmatpush1.xpose.msra.mxu0 0.0
        %1201 = vmatprep.subr.mxu0 0.0
        %1202 = vmatpush1.xpose.msra.mxu0 0.0
        %1203 = vmatprep.mubr.f32.mxu0 0.0
        %1204 = vmatmul.mubr.f32.gmra.mrb[0].mxu0 %v1135
        %v1205 = vpop.f32.mrb[0].mxu0
        %v1206 = vadd.f32 0.0, %v1205
        %v1207 = vpop.f32.mrb[0].mxu0
        %1208 = vdwg.mxu0
        %s1209 = scalar_lea.vmem [#allocation3], 24
        %v1210 = vld [vmem:[%s1209] sm:$0xff]
        %v1211 = vsel %vm627, %v1206, -inf
        %1212 = vmax.xlane.f32.xlu0 %v1211
        %v1213 = vpop.xlane.xlu0 %1212
        %v1214 = vmax.f32 %v1210, %v1213
        %v1215 = vsub.f32 %v1210, %v1214
        %v1216 = vmul.f32 %v1215, 1.442695
        %v1217 = vpow.pop %v1216
        %1219 = vset.pattern.permute.xlu0 0
        %1220 = vperm.xlu0 %1219, %v1214
        %v1221 = vpop.permute.xlu0 %1220
        %v1223 = vsub.f32 %v1206, %v1221
        %v1224 = vmul.f32 %v1223, 1.442695
        %v1225 = vpow.pop %v1224
        %s1226 = scalar_lea.vmem [#allocation4], 24
        %v1227 = vld [vmem:[%s1226] sm:$0xff]
        %v1228 = vmul.f32 %v1217, %v1227
        %v1229 = vsel %vm627, %v1225, 0.0
        %1230 = vadd.xlane.f32.xlu0 %v1229
        %v1231 = vpop.xlane.xlu0 %1230
        %v1232 = vadd.f32 %v1228, %v1231
        %1233 = vst.msk [vmem:[%s1226] sm:$0xff] %vm649, %v1232
        %1234 = vrot.lane.b32.xlu0 %v545, 16
        %v1235 = vpop.permute.xlu0 %1234
        %v1238 = vsel %vm627, %v1225, 0
        %1240 = vmatprep.subr.mxu0 0.0
        %1241 = vmatpush1.msra.mxu0 %v1235
        %1242 = vmatprep.subr.mxu0 0.0
        %1243 = vmatpush1.msra.mxu0 0.0
        %1244 = vmatprep.subr.mxu0 0.0
        %1245 = vmatpush1.msra.mxu0 0.0
        %1246 = vmatprep.subr.mxu0 0.0
        %1247 = vmatpush1.msra.mxu0 0.0
        %1248 = vmatprep.subr.mxu0 0.0
        %1249 = vmatpush1.msra.mxu0 0.0
        %1250 = vmatprep.subr.mxu0 0.0
        %1251 = vmatpush1.msra.mxu0 0.0
        %1252 = vmatprep.subr.mxu0 0.0
        %1253 = vmatpush1.msra.mxu0 0.0
        %1254 = vmatprep.subr.mxu0 0.0
        %1255 = vmatpush1.msra.mxu0 0.0
        %1256 = vmatprep.subr.mxu0 0.0
        %1257 = vmatpush1.msra.mxu0 0.0
        %1258 = vmatprep.subr.mxu0 0.0
        %1259 = vmatpush1.msra.mxu0 0.0
        %1260 = vmatprep.subr.mxu0 0.0
        %1261 = vmatpush1.msra.mxu0 0.0
        %1262 = vmatprep.subr.mxu0 0.0
        %1263 = vmatpush1.msra.mxu0 0.0
        %1264 = vmatprep.subr.mxu0 0.0
        %1265 = vmatpush1.msra.mxu0 0.0
        %1266 = vmatprep.subr.mxu0 0.0
        %1267 = vmatpush1.msra.mxu0 0.0
        %1268 = vmatprep.subr.mxu0 0.0
        %1269 = vmatpush1.msra.mxu0 0.0
        %1270 = vmatprep.subr.mxu0 0.0
        %1271 = vmatpush1.msra.mxu0 0.0
        %1272 = vmatprep.subr.mxu0 0.0
        %1273 = vmatpush1.msra.mxu0 0.0
        %1274 = vmatprep.subr.mxu0 0.0
        %1275 = vmatpush1.msra.mxu0 0.0
        %1276 = vmatprep.subr.mxu0 0.0
        %1277 = vmatpush1.msra.mxu0 0.0
        %1278 = vmatprep.subr.mxu0 0.0
        %1279 = vmatpush1.msra.mxu0 0.0
        %1280 = vmatprep.subr.mxu0 0.0
        %1281 = vmatpush1.msra.mxu0 0.0
        %1282 = vmatprep.subr.mxu0 0.0
        %1283 = vmatpush1.msra.mxu0 0.0
        %1284 = vmatprep.subr.mxu0 0.0
        %1285 = vmatpush1.msra.mxu0 0.0
        %1286 = vmatprep.subr.mxu0 0.0
        %1287 = vmatpush1.msra.mxu0 0.0
        %1288 = vmatprep.subr.mxu0 0.0
        %1289 = vmatpush1.msra.mxu0 0.0
        %1290 = vmatprep.subr.mxu0 0.0
        %1291 = vmatpush1.msra.mxu0 0.0
        %1292 = vmatprep.subr.mxu0 0.0
        %1293 = vmatpush1.msra.mxu0 0.0
        %1294 = vmatprep.subr.mxu0 0.0
        %1295 = vmatpush1.msra.mxu0 0.0
        %1296 = vmatprep.subr.mxu0 0.0
        %1297 = vmatpush1.msra.mxu0 0.0
        %1298 = vmatprep.subr.mxu0 0.0
        %1299 = vmatpush1.msra.mxu0 0.0
        %1300 = vmatprep.subr.mxu0 0.0
        %1301 = vmatpush1.msra.mxu0 0.0
        %1302 = vmatprep.subr.mxu0 0.0
        %1303 = vmatpush1.msra.mxu0 0.0
        %1304 = vmatprep.mubr.f32.mxu0 0.0
        %1305 = vmatmul.mubr.f32.gmra.mrb[0].mxu0 %v1238
        %v1306 = vpop.f32.mrb[0].mxu0
        %v1307 = vadd.f32 0.0, %v1306
        %v1308 = vpop.f32.mrb[0].mxu0
        %1309 = vdwg.mxu0
        %v1310 = vld [vmem:[#allocation5] sm:$0xff]
        %1312 = vset.pattern.permute.xlu0 0
        %1313 = vperm.xlu0 %1312, %v1217
        %v1314 = vpop.permute.xlu0 %1313
        %v1316 = vmul.f32 %v1314, %v1310
        %1318 = vrot.lane.b32.xlu0 %v1307, 48
        %v1319 = vpop.permute.xlu0 %1318
        %v1321 = vadd.f32 %v1316, %v1319
        %vm1322 = vcmask 523648
        %1323 = vst.msk [vmem:[#allocation5] sm:$0xff] %vm1322, %v1321
        %1324 = vst.msk [vmem:[%s1209] sm:$0xff] %vm649, %v1214
        // Predicated region
        $region69: #{tpu_custom_call.1} parent=43 // pred_check
          %p1325 = pneg %p374
        $region70: #{tpu_custom_call.1} parent=43 // pred_check_branch
          %1327 = sbr.rel (%p1325) target = $region72
        $region71: #{tpu_custom_call.1} parent=43 // pred_region
          %v1328 = vld [vmem:[#allocation5] sm:$0xff]
          %v1329 = vld [vmem:[#allocation4] sm:$0xff]
          %1331 = vset.pattern.permute.xlu0 0
          %1332 = vperm.xlu0 %1331, %v1329
          %v1333 = vpop.permute.xlu0 %1332
          %v1335 = vrcp.pop %v1333
          %v1336 = vmul.f32 %v1328, %v1335
          %1337 = vst.msk [vmem:[#allocation5] sm:$0xff] %vm549, %v1336
          %v1338 = vld [vmem:[#allocation5] sm:$0xff]
          %v1339 = vld [vmem:[%s834] sm:$0xff]
          %1341 = vset.pattern.permute.xlu0 0
          %1342 = vperm.xlu0 %1341, %v1339
          %v1343 = vpop.permute.xlu0 %1342
          %v1345 = vrcp.pop %v1343
          %v1346 = vmul.f32 %v1338, %v1345
          %1347 = vst.msk [vmem:[#allocation5] sm:$0xff] %vm930, %v1346
          %v1348 = vld [vmem:[#allocation5] sm:$0xff]
          %v1349 = vld [vmem:[%s1030] sm:$0xff]
          %1351 = vset.pattern.permute.xlu0 0
          %1352 = vperm.xlu0 %1351, %v1349
          %v1353 = vpop.permute.xlu0 %1352
          %v1355 = vrcp.pop %v1353
          %v1356 = vmul.f32 %v1348, %v1355
          %1357 = vst.msk [vmem:[#allocation5] sm:$0xff] %vm1126, %v1356
          %v1358 = vld [vmem:[#allocation5] sm:$0xff]
          %v1359 = vld [vmem:[%s1226] sm:$0xff]
          %1361 = vset.pattern.permute.xlu0 0
          %1362 = vperm.xlu0 %1361, %v1359
          %v1363 = vpop.permute.xlu0 %1362
          %v1365 = vrcp.pop %v1363
          %v1366 = vmul.f32 %v1358, %v1365
          %1367 = vst.msk [vmem:[#allocation5] sm:$0xff] %vm1322, %v1366
          %v1368 = vld [vmem:[#allocation5] sm:$0xff]
          %v1369 = vld [vmem:[#allocation14] sm:$0xff]
          %v1370 = vld [vmem:[#allocation14 + $0x8] sm:$0xff]
          %v1371 = vld [vmem:[#allocation14 + $0x10] sm:$0xff]
          %v1372 = vld [vmem:[#allocation14 + $0x18] sm:$0xff]
          %v1373 = vld [vmem:[#allocation14 + $0x20] sm:$0xff]
          %v1374 = vld [vmem:[#allocation14 + $0x28] sm:$0xff]
          %v1375 = vld [vmem:[#allocation14 + $0x30] sm:$0xff]
          %v1376 = vld [vmem:[#allocation14 + $0x38] sm:$0xff]
          %v1377 = vld [vmem:[%s5] sm:$0x1]
          %v1379 = vlaneseq
          %v1380 = vshrl.u32 %v1379, 7
          %v1381 = vsub.s32 0, %v1380
          %v1382 = vrot.slane %v1377, %v1381
          %vm1384 = vcmask 523264
          %v1386 = vsel %vm1384, %v1368, 0
          %1388 = vmatprep.subr.mxu0 0.0
          %1389 = vmatpush1.msra.mxu0 %v1369
          %1390 = vmatprep.subr.mxu0 0.0
          %1391 = vmatpush1.msra.mxu0 %v1370
          %1392 = vmatprep.subr.mxu0 0.0
          %1393 = vmatpush1.msra.mxu0 %v1371
          %1394 = vmatprep.subr.mxu0 0.0
          %1395 = vmatpush1.msra.mxu0 %v1372
          %1396 = vmatprep.subr.mxu0 0.0
          %1397 = vmatpush1.msra.mxu0 %v1373
          %1398 = vmatprep.subr.mxu0 0.0
          %1399 = vmatpush1.msra.mxu0 %v1374
          %1400 = vmatprep.subr.mxu0 0.0
          %1401 = vmatpush1.msra.mxu0 %v1375
          %1402 = vmatprep.subr.mxu0 0.0
          %1403 = vmatpush1.msra.mxu0 %v1376
          %1404 = vmatprep.subr.mxu0 0.0
          %1405 = vmatpush1.msra.mxu0 0.0
          %1406 = vmatprep.subr.mxu0 0.0
          %1407 = vmatpush1.msra.mxu0 0.0
          %1408 = vmatprep.subr.mxu0 0.0
          %1409 = vmatpush1.msra.mxu0 0.0
          %1410 = vmatprep.subr.mxu0 0.0
          %1411 = vmatpush1.msra.mxu0 0.0
          %1412 = vmatprep.subr.mxu0 0.0
          %1413 = vmatpush1.msra.mxu0 0.0
          %1414 = vmatprep.subr.mxu0 0.0
          %1415 = vmatpush1.msra.mxu0 0.0
          %1416 = vmatprep.subr.mxu0 0.0
          %1417 = vmatpush1.msra.mxu0 0.0
          %1418 = vmatprep.subr.mxu0 0.0
          %1419 = vmatpush1.msra.mxu0 0.0
          %1420 = vmatprep.subr.mxu0 0.0
          %1421 = vmatpush1.msra.mxu0 0.0
          %1422 = vmatprep.subr.mxu0 0.0
          %1423 = vmatpush1.msra.mxu0 0.0
          %1424 = vmatprep.subr.mxu0 0.0
          %1425 = vmatpush1.msra.mxu0 0.0
          %1426 = vmatprep.subr.mxu0 0.0
          %1427 = vmatpush1.msra.mxu0 0.0
          %1428 = vmatprep.subr.mxu0 0.0
          %1429 = vmatpush1.msra.mxu0 0.0
          %1430 = vmatprep.subr.mxu0 0.0
          %1431 = vmatpush1.msra.mxu0 0.0
          %1432 = vmatprep.subr.mxu0 0.0
          %1433 = vmatpush1.msra.mxu0 0.0
          %1434 = vmatprep.subr.mxu0 0.0
          %1435 = vmatpush1.msra.mxu0 0.0
          %1436 = vmatprep.subr.mxu0 0.0
          %1437 = vmatpush1.msra.mxu0 0.0
          %1438 = vmatprep.subr.mxu0 0.0
          %1439 = vmatpush1.msra.mxu0 0.0
          %1440 = vmatprep.subr.mxu0 0.0
          %1441 = vmatpush1.msra.mxu0 0.0
          %1442 = vmatprep.subr.mxu0 0.0
          %1443 = vmatpush1.msra.mxu0 0.0
          %1444 = vmatprep.subr.mxu0 0.0
          %1445 = vmatpush1.msra.mxu0 0.0
          %1446 = vmatprep.subr.mxu0 0.0
          %1447 = vmatpush1.msra.mxu0 0.0
          %1448 = vmatprep.subr.mxu0 0.0
          %1449 = vmatpush1.msra.mxu0 0.0
          %1450 = vmatprep.subr.mxu0 0.0
          %1451 = vmatpush1.msra.mxu0 0.0
          %1452 = vmatprep.mubr.f32.mxu0 0.0
          %1453 = vmatmul.mubr.f32.gmra.mrb[0].mxu0 %v1386
          %v1454 = vpop.f32.mrb[0].mxu0
          %v1455 = vadd.f32 %v1382, %v1454
          %v1456 = vpop.f32.mrb[0].mxu0
          %1457 = vdwg.mxu0
          %1458 = vst [vmem:[%s373] sm:$0xff] %v1455
        $region72: #{tpu_custom_call.1} parent=43 // pred_fallthru
          _
        %s1459 = sand.u32 %s196, 1
        %s1460 = scalar_lea.sflag [#allocation8], %s1459
        %s1461 = sand.u32 %s196, 1
        %s1462 = smul.addr %s1461, 8
        %s1463 = scalar_lea.vmem [#allocation15], %s1462
        // Predicated region
        $region73: #{tpu_custom_call.1} parent=43 // pred_check
          %p1464 = pneg %p206
        $region74: #{tpu_custom_call.1} parent=43 // pred_check_branch
          %1466 = sbr.rel (%p1464) target = $region76
        $region75: #{tpu_custom_call.1} parent=43 // pred_region
          %s1468 = ssub.s32 128, 128
          %1469 = vsyncadd %s1460, %s1468
          %s1470 = sadd.s32 %s33, %s32
          %s1471 = smul.addr %s1470, 128
          %s1472 = scalar_lea.hbm %s6, %s1471
          %s1474 = sshll.u32 %s1463, 4
          %s1475 = int_to_ptr.vmem [resolvable:$true] %s1474
          %1477 = dma.vmem_to_hbm [thread:$0]  %s1475, 128, %s1472, %s1460
        $region76: #{tpu_custom_call.1} parent=43 // pred_fallthru
          _
      $region44: #{tpu_custom_call.1} parent=5 // pred_fallthru
        _
      %p1478 = scmp.le.s32.totalorder 2, %s22
      // Predicated region
      $region77: #{tpu_custom_call.1} parent=5 // pred_check
        %p1479 = pneg %p1478
      $region78: #{tpu_custom_call.1} parent=5 // pred_check_branch
        %1481 = sbr.rel (%p1479) target = $region80
      $region79: #{tpu_custom_call.1} parent=5 // pred_region
        %s1482 = ssub.s32 %s22, 2
        // Predicated region
        $region81: #{tpu_custom_call.1} parent=79 // pred_check
          %p1483 = pneg %p212
        $region82: #{tpu_custom_call.1} parent=79 // pred_check_branch
          %1485 = sbr.rel (%p1483) target = $region84
        $region83: #{tpu_custom_call.1} parent=79 // pred_region
          %s1486 = sand.u32 %s197, 1
          %s1487 = scalar_lea.sflag [#allocation8], %s1486
          %s1488 = sand.u32 %s197, 1
          %s1489 = smul.addr %s1488, 8
          %s1490 = scalar_lea.vmem [#allocation15], %s1489
          %1491 = dma.done %s1487, 128
        $region84: #{tpu_custom_call.1} parent=79 // pred_fallthru
          _
      $region80: #{tpu_custom_call.1} parent=5 // pred_fallthru
        _
    $region6: #{tpu_custom_call.1} parent=1 // loop_footer
      %s26 = sadd.s32 1, %s22
    $region7: #{tpu_custom_call.1} parent=1 // loop_footer_branch
      %21 = sbr.rel target = $region3
    $region8: #{tpu_custom_call.1} parent=1 // loop_exit
      _
    %1492 = vsyncpa [#allocation7], 1
    %s1493 = scalar_lea.sflag [#allocation7], 1
    %1494 = vsyncpa %s1493, 1
    %1495 = vsyncpa [#allocation10], 1
    %s1496 = scalar_lea.sflag [#allocation10], 1
    %1497 = vsyncpa %s1496, 1
    %1498 = vsyncpa [#allocation13], 1
    %1499 = vsyncpa [#allocation8], 1
    %s1500 = scalar_lea.sflag [#allocation8], 1
    %1501 = vsyncpa %s1500, 1

</llo_original>
